<compile_context>
chip_gen: v5e
topology: v5e:2x2
jax: 0.10.0
libtpu: 0.0.40
codegen_flags: <defaults>
</compile_context>

<pallas_src>
import functools

import jax
import jax.numpy as jnp
from jax import lax
from jax.experimental import pallas as pl
from jax.experimental.pallas import tpu as pltpu


def _mixing_kernel(gram_ref, gcols_ref, free_ref, segmask_ref, vinit_ref,
                   t_ref, v_scr, delta_scr,
                   *, max_iter, eps, n_vars, batch, bk):
    # ---------------- init state ----------------
    v_scr[...] = vinit_ref[...]                     # (N, BK)
    delta_scr[0] = jnp.float32(1e30)
    segmask = segmask_ref[...]                      # (B, BK), hot -> hoisted

    # -------- Mixing method: one fused-gradient Gauss-Seidel sweep per iter ----
    # TODO(synk): satnet re-permutes the variable order every sweep and stops on
    # the objective decrease; here we use a fixed order and the batch-summed
    # squared vector update per sweep vs eps.
    # TODO(synk): convert the fixed pl.loop + pl.when early-stop into a true
    # while-style loop to skip the per-iteration loop overhead after convergence.
    @pl.loop(0, max_iter)
    def _outer(_):
        @pl.when(delta_scr[0] > eps)
        def _sweep():
            vall = v_scr[...]                       # (N, BK) sweep-start snapshot
            # One MXU launch per sweep:
            #   gb[l] = sum_{j != l} (s_l . s_j) v_j   (diag(gram0) == 0)
            gb = lax.dot_general(gram_ref[...], vall,
                                 (((1,), (0,)), ((), ())),
                                 preferred_element_type=jnp.float32)   # (N, BK)
            dsq = jnp.zeros((1, bk), jnp.float32)   # vector delta accumulator
            for l in range(n_vars):                 # static: fully unrolled
                v_old = vall[l:l + 1, :]            # (1, BK) current v_l
                g = gb[l:l + 1, :]                  # (1, BK) exact GS gradient
                # per-batch squared norms over each K-lane segment
                gg = segmask * (g * g)                                  # (B, BK)
                nrm = jnp.sum(gg, axis=1, keepdims=True)                # (B, 1)
                # zero-gradient fallback: keep v_old when ||g|| ~ 0
                inv = jnp.where(nrm > 1e-20,
                                lax.rsqrt(jnp.maximum(nrm, 1e-30)),
                                0.0)                                    # (B, 1)
                # expand per-batch 1/||g|| back onto its lane segment
                scale = inv[0:1, :] * segmask[0:1, :]
                for b in range(1, batch):
                    scale = scale + inv[b:b + 1, :] * segmask[b:b + 1, :]
                v_cand = -(g * scale)
                v_free = jnp.where(scale > 0.0, v_cand, v_old)
                # clamped inputs (and padded vars) are frozen multiplicatively
                dv = free_ref[l:l + 1, :] * (v_free - v_old)            # (1, BK)
                v_scr[l:l + 1, :] = v_old + dv
                dsq = dsq + dv * dv
                if l + 1 < n_vars:
                    # delayed Gauss-Seidel correction of the remaining rows:
                    #   gb[j] += (s_j . s_l) dv_l
                    gb = gb + gcols_ref[l] * dv     # (N,1)*(1,BK) -> (N,BK)
            delta_scr[0] = jnp.sum(dsq)

    # -------- emit cosines: t[i, b] = -v_i(b) . v_truth(b) --------
    vfin = v_scr[...]                               # (N, BK)
    prod = vfin * vfin[0:1, :]                      # pair each segment with its truth vec
    t_ref[...] = -lax.dot_general(prod, segmask, (((1,), (1,)), ((), ())),
                                  preferred_element_type=jnp.float32)   # (N, B)


def satnet_mix_forward(gram0, gram_cols, free_flat, segmask, v_init,
                       *, max_iter, eps):
    Np = gram0.shape[0]
    B, BK = segmask.shape
    kernel = functools.partial(_mixing_kernel, max_iter=max_iter, eps=eps,
                               n_vars=Np, batch=B, bk=BK)
    # TODO(synk): on v7x (2 TensorCores) split the batch across a leading
    # "parallel" grid axis (per-batch index_maps / output slab); kept a single
    # program here because v5e/v6e have one TC and this latency-bound solve
    # would serialize with a batch grid there.
    return pl.pallas_call(
        kernel,
        out_shape=jax.ShapeDtypeStruct((Np, B), jnp.float32),
        grid=(1,),
        in_specs=[
            pl.BlockSpec((Np, Np), lambda i: (0, 0)),
            pl.BlockSpec((Np, Np, 1), lambda i: (0, 0, 0)),
            pl.BlockSpec((Np, BK), lambda i: (0, 0)),
            pl.BlockSpec((B, BK), lambda i: (0, 0)),
            pl.BlockSpec((Np, BK), lambda i: (0, 0)),
        ],
        out_specs=pl.BlockSpec((Np, B), lambda i: (0, 0)),
        scratch_shapes=[
            pltpu.VMEM((Np, BK), jnp.float32),      # V (current state)
            pltpu.SMEM((1,), jnp.float32),          # per-sweep delta (early stop)
        ],
        compiler_params=pltpu.CompilerParams(dimension_semantics=("arbitrary",)),
    )(gram0, gram_cols, free_flat, segmask, v_init)


class NQueensSolverPallas:
    """JAX/Pallas equivalent of NQueensSolver (satnet.SATNet forward)."""

    def __init__(self, boardSz, aux, m, key):
        self.n = boardSz ** 2
        self.aux = aux
        self.m = m
        self.max_iter = 100
        self.eps = 1e-6
        # k > sqrt(2*N) suffices (SATNet paper); rounded up to TPU-friendly 32.
        # NOTE: B*K lanes per variable row -- at B=2 only 64/128 lanes are used;
        # batching more boards (B>=4) is the main remaining throughput lever.
        self.k = 32
        N0 = self.n + 1 + aux                         # truth var + cells + aux
        self.N0 = N0
        self.Np = ((N0 + 7) // 8) * 8                 # pad vars to sublane multiple
        # Deterministic synthetic init of the SATNet weight S (n+1+aux, m).
        S = (jax.random.normal(key, (N0, m), dtype=jnp.float32)
             * jnp.float32(1.0 / (m ** 0.5)))
        S_pad = jnp.zeros((self.Np, m), jnp.float32).at[:N0, :].set(S)
        # Loop-invariant Gram matrix; zero diagonal folds the -||s_i||^2 v_i
        # term into the fused gradient matmul (no per-variable scalar needed).
        gram = jnp.dot(S_pad, S_pad.T, precision=lax.Precision.HIGHEST)
        gram0 = gram - jnp.diag(jnp.diag(gram))
        self.gram0 = gram0
        # column l of gram0 as a leading-indexable (Np, 1) tile
        self.gram_cols = jnp.transpose(gram0)[:, :, None]        # (Np, Np, 1)

    def __call__(self, y_in, mask, init_key):
        B, n = y_in.shape
        aux, K = self.aux, self.k
        N0, Np = self.N0, self.Np
        BK = B * K
        y_in = y_in.astype(jnp.float32)
        maskf = mask.astype(jnp.float32)

        # satnet glue: prepend the truth variable (z=1, input), append aux vars
        # (z=0.5, free), pad to a sublane multiple with inert frozen variables.
        z = jnp.concatenate([jnp.ones((B, 1), jnp.float32), y_in,
                             0.5 * jnp.ones((B, aux), jnp.float32)], axis=1)
        is_in = jnp.concatenate([jnp.ones((B, 1), jnp.float32), maskf,
                                 jnp.zeros((B, aux), jnp.float32)], axis=1)
        if Np > N0:
            z = jnp.concatenate([z, jnp.zeros((B, Np - N0), jnp.float32)], axis=1)
            is_in = jnp.concatenate([is_in, jnp.ones((B, Np - N0), jnp.float32)],
                                    axis=1)

        # Random unit-vector init; embed every variable at its input angle:
        #   v_i = -cos(pi z_i) v_truth + sin(pi z_i) * P_perp(r_i)/||.||
        r = jax.random.normal(init_key, (B, Np, K), dtype=jnp.float32)
        r = r / jnp.linalg.norm(r, axis=-1, keepdims=True)
        v_truth = r[:, 0:1, :]                                                # (B,1,K)
        perp = r - jnp.sum(r * v_truth, axis=-1, keepdims=True) * v_truth
        perp = perp / jnp.maximum(jnp.linalg.norm(perp, axis=-1, keepdims=True), 1e-30)
        V0 = (-jnp.cos(jnp.pi * z)[..., None] * v_truth
              + jnp.sin(jnp.pi * z)[..., None] * perp)                        # (B,Np,K)
        V0 = V0.at[:, 0, :].set(v_truth[:, 0, :])                             # truth dir

        # flat variable-major layouts (all cheap glue reshapes)
        v_init = jnp.transpose(V0, (1, 0, 2)).reshape(Np, BK)                 # (Np,BK)
        free_flat = jnp.broadcast_to((1.0 - is_in).T[:, :, None],
                                     (Np, B, K)).reshape(Np, BK)              # (Np,BK)
        segmask = (jnp.arange(BK)[None, :] // K
                   == jnp.arange(B)[:, None]).astype(jnp.float32)             # (B,BK)

        t = satnet_mix_forward(self.gram0, self.gram_cols, free_flat, segmask,
                               v_init, max_iter=self.max_iter, eps=self.eps)  # (Np,B)

        # decode: z_i = acos(-v_i . v_truth) / pi  (cheap elementwise glue)
        z_all = jnp.arccos(jnp.clip(t, -1.0, 1.0)) / jnp.pi                   # (Np,B)
        z_out = jnp.transpose(z_all)[:, 1:1 + n]                              # (B,n)
        # clamped input entries pass through exactly, as in satnet
        return jnp.where(mask.astype(bool), y_in, z_out)


if __name__ == "__main__":
    boardSz = 4            # n = 16 board cells
    aux = 15               # -> N = n + 1 + aux = 32 variables (incl. truth var)
    m = 64                 # number of clauses
    B = 2

    key = jax.random.PRNGKey(0)
    k_param, k_y, k_mask, k_init = jax.random.split(key, 4)

    solver = NQueensSolverPallas(boardSz, aux, m, k_param)

    n = boardSz ** 2
    y_in = jax.random.uniform(k_y, (B, n), dtype=jnp.float32)
    mask = (jax.random.uniform(k_mask, (B, n)) < 0.3).astype(jnp.int32)

    out = solver(y_in, mask, k_init)
    out = jax.block_until_ready(out)

    assert out.shape == (B, n), out.shape
    assert out.dtype == jnp.float32
    assert bool(jnp.all(jnp.isfinite(out)))
    assert bool(jnp.all((out >= -1e-3) & (out <= 1.0 + 1e-3)))
    print("KERNEL_OK")
</pallas_src>

<mosaic_0001>
module attributes {stable_mosaic.version = 11 : i64} {
  func.func @_mixing_kernel(%arg0: i32, %arg1: memref<32x32xf32, #tpu.memory_space<vmem>>, %arg2: memref<32x32x1xf32, #tpu.memory_space<vmem>>, %arg3: memref<32x64xf32, #tpu.memory_space<vmem>>, %arg4: memref<2x64xf32, #tpu.memory_space<vmem>>, %arg5: memref<32x64xf32, #tpu.memory_space<vmem>>, %arg6: memref<32x2xf32, #tpu.memory_space<vmem>>, %arg7: memref<32x64xf32, #tpu.memory_space<vmem>>, %arg8: memref<1xf32, #tpu.memory_space<smem>>) attributes {dimension_semantics = [#tpu.dimension_semantics<arbitrary>], iteration_bounds = array<i64: 1>, scalar_prefetch = 0 : i64, scratch_operands = 2 : i64, tpu.core_type = #tpu.core_type<tc>, window_params = [{pipeline_mode = #tpu.pipeline_mode<synchronous>, transform_indices = @transform_0, window_bounds = array<i64: 32, 32>}, {pipeline_mode = #tpu.pipeline_mode<synchronous>, transform_indices = @transform_1, window_bounds = array<i64: 32, 32, 1>}, {pipeline_mode = #tpu.pipeline_mode<synchronous>, transform_indices = @transform_2, window_bounds = array<i64: 32, 64>}, {pipeline_mode = #tpu.pipeline_mode<synchronous>, transform_indices = @transform_3, window_bounds = array<i64: 2, 64>}, {pipeline_mode = #tpu.pipeline_mode<synchronous>, transform_indices = @transform_4, window_bounds = array<i64: 32, 64>}, {pipeline_mode = #tpu.pipeline_mode<synchronous>, transform_indices = @transform_5, window_bounds = array<i64: 32, 2>}]} {
    %c0 = arith.constant 0 : index
    %c0_0 = arith.constant 0 : index
    %0 = vector.load %arg5[%c0, %c0_0] : memref<32x64xf32, #tpu.memory_space<vmem>>, vector<32x64xf32>
    %c0_1 = arith.constant 0 : index
    %c0_2 = arith.constant 0 : index
    %1 = vector.load %arg7[%c0_1, %c0_2] : memref<32x64xf32, #tpu.memory_space<vmem>>, vector<32x64xf32>
    tpu.vector_store %arg7[%c0_1, %c0_2], %0 {strides = array<i32>} : memref<32x64xf32, #tpu.memory_space<vmem>>, vector<32x64xf32>,
    %cst = arith.constant 1.000000e+30 : f32
    %c0_3 = arith.constant 0 : index
    %2 = memref.load %arg8[%c0_3] : memref<1xf32, #tpu.memory_space<smem>>
    memref.store %cst, %arg8[%c0_3] : memref<1xf32, #tpu.memory_space<smem>>
    %c0_4 = arith.constant 0 : index
    %c0_5 = arith.constant 0 : index
    %3 = vector.load %arg4[%c0_4, %c0_5] : memref<2x64xf32, #tpu.memory_space<vmem>>, vector<2x64xf32>
    %c0_i32 = arith.constant 0 : i32
    %c100_i32 = arith.constant 100 : i32
    %4 = arith.addi %c0_i32, %c100_i32 : i32
    %c1_i32 = arith.constant 1 : i32
    scf.for %arg9 = %c0_i32 to %4 step %c1_i32  : i32 {
      %c0_12 = arith.constant 0 : index
      %13 = memref.load %arg8[%c0_12] : memref<1xf32, #tpu.memory_space<smem>>
      %cst_13 = arith.constant 9.99999997E-7 : f32
      %14 = arith.cmpf ogt, %13, %cst_13 : f32
      %15 = arith.extui %14 : i1 to i32
      %c0_i32_14 = arith.constant 0 : i32
      %16 = arith.cmpi ne, %15, %c0_i32_14 : i32
      scf.if %16 {
        %c0_15 = arith.constant 0 : index
        %c0_16 = arith.constant 0 : index
        %17 = vector.load %arg7[%c0_15, %c0_16] : memref<32x64xf32, #tpu.memory_space<vmem>>, vector<32x64xf32>
        %c0_17 = arith.constant 0 : index
        %c0_18 = arith.constant 0 : index
        %18 = vector.load %arg1[%c0_17, %c0_18] : memref<32x32xf32, #tpu.memory_space<vmem>>, vector<32x32xf32>
        %cst_19 = arith.constant dense<0.000000e+00> : vector<32x64xf32>
        %19 = tpu.matmul %18, %17, %cst_19 {dimension_numbers = #tpu.dot_dimension_numbers<[1], [0], [0], [1], [0, 0, 1, 1], [], []>} : vector<32x32xf32>, vector<32x64xf32>, vector<32x64xf32> -> vector<32x64xf32>
        %cst_20 = arith.constant 0.000000e+00 : f32
        %20 = vector.broadcast %cst_20 : f32 to vector<1x64xf32>
        %21 = vector.extract_strided_slice %17 {offsets = [0, 0], sizes = [1, 64], strides = [1, 1]} : vector<32x64xf32> to vector<1x64xf32>
        %22 = vector.extract_strided_slice %19 {offsets = [0, 0], sizes = [1, 64], strides = [1, 1]} : vector<32x64xf32> to vector<1x64xf32>
        %23 = arith.mulf %22, %22 : vector<1x64xf32>
        %24 = vector.broadcast %23 : vector<1x64xf32> to vector<2x64xf32>
        %25 = arith.mulf %3, %24 : vector<2x64xf32>
        %cst_21 = arith.constant dense<0.000000e+00> : vector<2xf32>
        %26 = vector.multi_reduction <add>, %25, %cst_21 [1] : vector<2x64xf32> to vector<2xf32>
        %27 = vector.shape_cast %26 : vector<2xf32> to vector<2x1xf32>
        %cst_22 = arith.constant 9.99999968E-21 : f32
        %28 = vector.broadcast %cst_22 : f32 to vector<2x1xf32>
        %29 = arith.cmpf ogt, %27, %28 : vector<2x1xf32>
        %cst_23 = arith.constant 1.000000e-30 : f32
        %30 = vector.broadcast %cst_23 : f32 to vector<2x1xf32>
        %31 = arith.maximumf %27, %30 : vector<2x1xf32>
        %32 = math.rsqrt %31 : vector<2x1xf32>
        %cst_24 = arith.constant 0.000000e+00 : f32
        %33 = vector.broadcast %cst_24 : f32 to vector<2x1xf32>
        %34 = arith.select %29, %32, %33 : vector<2x1xi1>, vector<2x1xf32>
        %35 = vector.extract_strided_slice %34 {offsets = [0, 0], sizes = [1, 1], strides = [1, 1]} : vector<2x1xf32> to vector<1x1xf32>
        %36 = vector.extract_strided_slice %3 {offsets = [0, 0], sizes = [1, 64], strides = [1, 1]} : vector<2x64xf32> to vector<1x64xf32>
        %37 = vector.broadcast %35 : vector<1x1xf32> to vector<1x64xf32>
        %38 = arith.mulf %37, %36 : vector<1x64xf32>
        %39 = vector.extract_strided_slice %34 {offsets = [1, 0], sizes = [1, 1], strides = [1, 1]} : vector<2x1xf32> to vector<1x1xf32>
        %40 = vector.extract_strided_slice %3 {offsets = [1, 0], sizes = [1, 64], strides = [1, 1]} : vector<2x64xf32> to vector<1x64xf32>
        %41 = vector.broadcast %39 : vector<1x1xf32> to vector<1x64xf32>
        %42 = arith.mulf %41, %40 : vector<1x64xf32>
        %43 = arith.addf %38, %42 : vector<1x64xf32>
        %44 = arith.mulf %22, %43 : vector<1x64xf32>
        %cst_25 = arith.constant 0.000000e+00 : f32
        %45 = vector.broadcast %cst_25 : f32 to vector<1x64xf32>
        %46 = arith.subf %45, %44 : vector<1x64xf32>
        %cst_26 = arith.constant 0.000000e+00 : f32
        %47 = vector.broadcast %cst_26 : f32 to vector<1x64xf32>
        %48 = arith.cmpf ogt, %43, %47 : vector<1x64xf32>
        %49 = arith.select %48, %46, %21 : vector<1x64xi1>, vector<1x64xf32>
        %c0_27 = arith.constant 0 : index
        %c0_28 = arith.constant 0 : index
        %50 = vector.load %arg3[%c0_27, %c0_28] : memref<32x64xf32, #tpu.memory_space<vmem>>, vector<1x64xf32>
        %51 = arith.subf %49, %21 : vector<1x64xf32>
        %52 = arith.mulf %50, %51 : vector<1x64xf32>
        %53 = arith.addf %21, %52 : vector<1x64xf32>
        %c0_29 = arith.constant 0 : index
        %c0_30 = arith.constant 0 : index
        %54 = vector.load %arg7[%c0_29, %c0_30] : memref<32x64xf32, #tpu.memory_space<vmem>>, vector<1x64xf32>
        tpu.vector_store %arg7[%c0_29, %c0_30], %53 {strides = array<i32>} : memref<32x64xf32, #tpu.memory_space<vmem>>, vector<1x64xf32>,
        %55 = arith.mulf %52, %52 : vector<1x64xf32>
        %56 = arith.addf %20, %55 : vector<1x64xf32>
        %c0_31 = arith.constant 0 : index
        %c0_32 = arith.constant 0 : index
        %c0_33 = arith.constant 0 : index
        %57 = vector.load %arg2[%c0_31, %c0_32, %c0_33] : memref<32x32x1xf32, #tpu.memory_space<vmem>>, vector<1x32x1xf32>
        %58 = vector.shape_cast %57 : vector<1x32x1xf32> to vector<32x1xf32>
        %59 = vector.broadcast %58 : vector<32x1xf32> to vector<32x64xf32>
        %60 = vector.broadcast %52 : vector<1x64xf32> to vector<32x64xf32>
        %61 = arith.mulf %59, %60 : vector<32x64xf32>
        %62 = arith.addf %19, %61 : vector<32x64xf32>
        %63 = vector.extract_strided_slice %17 {offsets = [1, 0], sizes = [1, 64], strides = [1, 1]} : vector<32x64xf32> to vector<1x64xf32>
        %64 = vector.extract_strided_slice %62 {offsets = [1, 0], sizes = [1, 64], strides = [1, 1]} : vector<32x64xf32> to vector<1x64xf32>
        %65 = arith.mulf %64, %64 : vector<1x64xf32>
        %66 = vector.broadcast %65 : vector<1x64xf32> to vector<2x64xf32>
        %67 = arith.mulf %3, %66 : vector<2x64xf32>
        %cst_34 = arith.constant dense<0.000000e+00> : vector<2xf32>
        %68 = vector.multi_reduction <add>, %67, %cst_34 [1] : vector<2x64xf32> to vector<2xf32>
        %69 = vector.shape_cast %68 : vector<2xf32> to vector<2x1xf32>
        %cst_35 = arith.constant 9.99999968E-21 : f32
        %70 = vector.broadcast %cst_35 : f32 to vector<2x1xf32>
        %71 = arith.cmpf ogt, %69, %70 : vector<2x1xf32>
        %cst_36 = arith.constant 1.000000e-30 : f32
        %72 = vector.broadcast %cst_36 : f32 to vector<2x1xf32>
        %73 = arith.maximumf %69, %72 : vector<2x1xf32>
        %74 = math.rsqrt %73 : vector<2x1xf32>
        %cst_37 = arith.constant 0.000000e+00 : f32
        %75 = vector.broadcast %cst_37 : f32 to vector<2x1xf32>
        %76 = arith.select %71, %74, %75 : vector<2x1xi1>, vector<2x1xf32>
        %77 = vector.extract_strided_slice %76 {offsets = [0, 0], sizes = [1, 1], strides = [1, 1]} : vector<2x1xf32> to vector<1x1xf32>
        %78 = vector.extract_strided_slice %3 {offsets = [0, 0], sizes = [1, 64], strides = [1, 1]} : vector<2x64xf32> to vector<1x64xf32>
        %79 = vector.broadcast %77 : vector<1x1xf32> to vector<1x64xf32>
        %80 = arith.mulf %79, %78 : vector<1x64xf32>
        %81 = vector.extract_strided_slice %76 {offsets = [1, 0], sizes = [1, 1], strides = [1, 1]} : vector<2x1xf32> to vector<1x1xf32>
        %82 = vector.extract_strided_slice %3 {offsets = [1, 0], sizes = [1, 64], strides = [1, 1]} : vector<2x64xf32> to vector<1x64xf32>
        %83 = vector.broadcast %81 : vector<1x1xf32> to vector<1x64xf32>
        %84 = arith.mulf %83, %82 : vector<1x64xf32>
        %85 = arith.addf %80, %84 : vector<1x64xf32>
        %86 = arith.mulf %64, %85 : vector<1x64xf32>
        %cst_38 = arith.constant 0.000000e+00 : f32
        %87 = vector.broadcast %cst_38 : f32 to vector<1x64xf32>
        %88 = arith.subf %87, %86 : vector<1x64xf32>
        %cst_39 = arith.constant 0.000000e+00 : f32
        %89 = vector.broadcast %cst_39 : f32 to vector<1x64xf32>
        %90 = arith.cmpf ogt, %85, %89 : vector<1x64xf32>
        %91 = arith.select %90, %88, %63 : vector<1x64xi1>, vector<1x64xf32>
        %c1 = arith.constant 1 : index
        %c0_40 = arith.constant 0 : index
        %92 = vector.load %arg3[%c1, %c0_40] : memref<32x64xf32, #tpu.memory_space<vmem>>, vector<1x64xf32>
        %93 = arith.subf %91, %63 : vector<1x64xf32>
        %94 = arith.mulf %92, %93 : vector<1x64xf32>
        %95 = arith.addf %63, %94 : vector<1x64xf32>
        %c1_41 = arith.constant 1 : index
        %c0_42 = arith.constant 0 : index
        %96 = vector.load %arg7[%c1_41, %c0_42] : memref<32x64xf32, #tpu.memory_space<vmem>>, vector<1x64xf32>
        tpu.vector_store %arg7[%c1_41, %c0_42], %95 {strides = array<i32>} : memref<32x64xf32, #tpu.memory_space<vmem>>, vector<1x64xf32>,
        %97 = arith.mulf %94, %94 : vector<1x64xf32>
        %98 = arith.addf %56, %97 : vector<1x64xf32>
        %c1_43 = arith.constant 1 : index
        %c0_44 = arith.constant 0 : index
        %c0_45 = arith.constant 0 : index
        %99 = vector.load %arg2[%c1_43, %c0_44, %c0_45] : memref<32x32x1xf32, #tpu.memory_space<vmem>>, vector<1x32x1xf32>
        %100 = vector.shape_cast %99 : vector<1x32x1xf32> to vector<32x1xf32>
        %101 = vector.broadcast %100 : vector<32x1xf32> to vector<32x64xf32>
        %102 = vector.broadcast %94 : vector<1x64xf32> to vector<32x64xf32>
        %103 = arith.mulf %101, %102 : vector<32x64xf32>
        %104 = arith.addf %62, %103 : vector<32x64xf32>
        %105 = vector.extract_strided_slice %17 {offsets = [2, 0], sizes = [1, 64], strides = [1, 1]} : vector<32x64xf32> to vector<1x64xf32>
        %106 = vector.extract_strided_slice %104 {offsets = [2, 0], sizes = [1, 64], strides = [1, 1]} : vector<32x64xf32> to vector<1x64xf32>
        %107 = arith.mulf %106, %106 : vector<1x64xf32>
        %108 = vector.broadcast %107 : vector<1x64xf32> to vector<2x64xf32>
        %109 = arith.mulf %3, %108 : vector<2x64xf32>
        %cst_46 = arith.constant dense<0.000000e+00> : vector<2xf32>
        %110 = vector.multi_reduction <add>, %109, %cst_46 [1] : vector<2x64xf32> to vector<2xf32>
        %111 = vector.shape_cast %110 : vector<2xf32> to vector<2x1xf32>
        %cst_47 = arith.constant 9.99999968E-21 : f32
        %112 = vector.broadcast %cst_47 : f32 to vector<2x1xf32>
        %113 = arith.cmpf ogt, %111, %112 : vector<2x1xf32>
        %cst_48 = arith.constant 1.000000e-30 : f32
        %114 = vector.broadcast %cst_48 : f32 to vector<2x1xf32>
        %115 = arith.maximumf %111, %114 : vector<2x1xf32>
        %116 = math.rsqrt %115 : vector<2x1xf32>
        %cst_49 = arith.constant 0.000000e+00 : f32
        %117 = vector.broadcast %cst_49 : f32 to vector<2x1xf32>
        %118 = arith.select %113, %116, %117 : vector<2x1xi1>, vector<2x1xf32>
        %119 = vector.extract_strided_slice %118 {offsets = [0, 0], sizes = [1, 1], strides = [1, 1]} : vector<2x1xf32> to vector<1x1xf32>
        %120 = vector.extract_strided_slice %3 {offsets = [0, 0], sizes = [1, 64], strides = [1, 1]} : vector<2x64xf32> to vector<1x64xf32>
        %121 = vector.broadcast %119 : vector<1x1xf32> to vector<1x64xf32>
        %122 = arith.mulf %121, %120 : vector<1x64xf32>
        %123 = vector.extract_strided_slice %118 {offsets = [1, 0], sizes = [1, 1], strides = [1, 1]} : vector<2x1xf32> to vector<1x1xf32>
        %124 = vector.extract_strided_slice %3 {offsets = [1, 0], sizes = [1, 64], strides = [1, 1]} : vector<2x64xf32> to vector<1x64xf32>
        %125 = vector.broadcast %123 : vector<1x1xf32> to vector<1x64xf32>
        %126 = arith.mulf %125, %124 : vector<1x64xf32>
        %127 = arith.addf %122, %126 : vector<1x64xf32>
        %128 = arith.mulf %106, %127 : vector<1x64xf32>
        %cst_50 = arith.constant 0.000000e+00 : f32
        %129 = vector.broadcast %cst_50 : f32 to vector<1x64xf32>
        %130 = arith.subf %129, %128 : vector<1x64xf32>
        %cst_51 = arith.constant 0.000000e+00 : f32
        %131 = vector.broadcast %cst_51 : f32 to vector<1x64xf32>
        %132 = arith.cmpf ogt, %127, %131 : vector<1x64xf32>
        %133 = arith.select %132, %130, %105 : vector<1x64xi1>, vector<1x64xf32>
        %c2 = arith.constant 2 : index
        %c0_52 = arith.constant 0 : index
        %134 = vector.load %arg3[%c2, %c0_52] : memref<32x64xf32, #tpu.memory_space<vmem>>, vector<1x64xf32>
        %135 = arith.subf %133, %105 : vector<1x64xf32>
        %136 = arith.mulf %134, %135 : vector<1x64xf32>
        %137 = arith.addf %105, %136 : vector<1x64xf32>
        %c2_53 = arith.constant 2 : index
        %c0_54 = arith.constant 0 : index
        %138 = vector.load %arg7[%c2_53, %c0_54] : memref<32x64xf32, #tpu.memory_space<vmem>>, vector<1x64xf32>
        tpu.vector_store %arg7[%c2_53, %c0_54], %137 {strides = array<i32>} : memref<32x64xf32, #tpu.memory_space<vmem>>, vector<1x64xf32>,
        %139 = arith.mulf %136, %136 : vector<1x64xf32>
        %140 = arith.addf %98, %139 : vector<1x64xf32>
        %c2_55 = arith.constant 2 : index
        %c0_56 = arith.constant 0 : index
        %c0_57 = arith.constant 0 : index
        %141 = vector.load %arg2[%c2_55, %c0_56, %c0_57] : memref<32x32x1xf32, #tpu.memory_space<vmem>>, vector<1x32x1xf32>
        %142 = vector.shape_cast %141 : vector<1x32x1xf32> to vector<32x1xf32>
        %143 = vector.broadcast %142 : vector<32x1xf32> to vector<32x64xf32>
        %144 = vector.broadcast %136 : vector<1x64xf32> to vector<32x64xf32>
        %145 = arith.mulf %143, %144 : vector<32x64xf32>
        %146 = arith.addf %104, %145 : vector<32x64xf32>
        %147 = vector.extract_strided_slice %17 {offsets = [3, 0], sizes = [1, 64], strides = [1, 1]} : vector<32x64xf32> to vector<1x64xf32>
        %148 = vector.extract_strided_slice %146 {offsets = [3, 0], sizes = [1, 64], strides = [1, 1]} : vector<32x64xf32> to vector<1x64xf32>
        %149 = arith.mulf %148, %148 : vector<1x64xf32>
        %150 = vector.broadcast %149 : vector<1x64xf32> to vector<2x64xf32>
        %151 = arith.mulf %3, %150 : vector<2x64xf32>
        %cst_58 = arith.constant dense<0.000000e+00> : vector<2xf32>
        %152 = vector.multi_reduction <add>, %151, %cst_58 [1] : vector<2x64xf32> to vector<2xf32>
        %153 = vector.shape_cast %152 : vector<2xf32> to vector<2x1xf32>
        %cst_59 = arith.constant 9.99999968E-21 : f32
        %154 = vector.broadcast %cst_59 : f32 to vector<2x1xf32>
        %155 = arith.cmpf ogt, %153, %154 : vector<2x1xf32>
        %cst_60 = arith.constant 1.000000e-30 : f32
        %156 = vector.broadcast %cst_60 : f32 to vector<2x1xf32>
        %157 = arith.maximumf %153, %156 : vector<2x1xf32>
        %158 = math.rsqrt %157 : vector<2x1xf32>
        %cst_61 = arith.constant 0.000000e+00 : f32
        %159 = vector.broadcast %cst_61 : f32 to vector<2x1xf32>
        %160 = arith.select %155, %158, %159 : vector<2x1xi1>, vector<2x1xf32>
        %161 = vector.extract_strided_slice %160 {offsets = [0, 0], sizes = [1, 1], strides = [1, 1]} : vector<2x1xf32> to vector<1x1xf32>
        %162 = vector.extract_strided_slice %3 {offsets = [0, 0], sizes = [1, 64], strides = [1, 1]} : vector<2x64xf32> to vector<1x64xf32>
        %163 = vector.broadcast %161 : vector<1x1xf32> to vector<1x64xf32>
        %164 = arith.mulf %163, %162 : vector<1x64xf32>
        %165 = vector.extract_strided_slice %160 {offsets = [1, 0], sizes = [1, 1], strides = [1, 1]} : vector<2x1xf32> to vector<1x1xf32>
        %166 = vector.extract_strided_slice %3 {offsets = [1, 0], sizes = [1, 64], strides = [1, 1]} : vector<2x64xf32> to vector<1x64xf32>
        %167 = vector.broadcast %165 : vector<1x1xf32> to vector<1x64xf32>
        %168 = arith.mulf %167, %166 : vector<1x64xf32>
        %169 = arith.addf %164, %168 : vector<1x64xf32>
        %170 = arith.mulf %148, %169 : vector<1x64xf32>
        %cst_62 = arith.constant 0.000000e+00 : f32
        %171 = vector.broadcast %cst_62 : f32 to vector<1x64xf32>
        %172 = arith.subf %171, %170 : vector<1x64xf32>
        %cst_63 = arith.constant 0.000000e+00 : f32
        %173 = vector.broadcast %cst_63 : f32 to vector<1x64xf32>
        %174 = arith.cmpf ogt, %169, %173 : vector<1x64xf32>
        %175 = arith.select %174, %172, %147 : vector<1x64xi1>, vector<1x64xf32>
        %c3 = arith.constant 3 : index
        %c0_64 = arith.constant 0 : index
        %176 = vector.load %arg3[%c3, %c0_64] : memref<32x64xf32, #tpu.memory_space<vmem>>, vector<1x64xf32>
        %177 = arith.subf %175, %147 : vector<1x64xf32>
        %178 = arith.mulf %176, %177 : vector<1x64xf32>
        %179 = arith.addf %147, %178 : vector<1x64xf32>
        %c3_65 = arith.constant 3 : index
        %c0_66 = arith.constant 0 : index
        %180 = vector.load %arg7[%c3_65, %c0_66] : memref<32x64xf32, #tpu.memory_space<vmem>>, vector<1x64xf32>
        tpu.vector_store %arg7[%c3_65, %c0_66], %179 {strides = array<i32>} : memref<32x64xf32, #tpu.memory_space<vmem>>, vector<1x64xf32>,
        %181 = arith.mulf %178, %178 : vector<1x64xf32>
        %182 = arith.addf %140, %181 : vector<1x64xf32>
        %c3_67 = arith.constant 3 : index
        %c0_68 = arith.constant 0 : index
        %c0_69 = arith.constant 0 : index
        %183 = vector.load %arg2[%c3_67, %c0_68, %c0_69] : memref<32x32x1xf32, #tpu.memory_space<vmem>>, vector<1x32x1xf32>
        %184 = vector.shape_cast %183 : vector<1x32x1xf32> to vector<32x1xf32>
        %185 = vector.broadcast %184 : vector<32x1xf32> to vector<32x64xf32>
        %186 = vector.broadcast %178 : vector<1x64xf32> to vector<32x64xf32>
        %187 = arith.mulf %185, %186 : vector<32x64xf32>
        %188 = arith.addf %146, %187 : vector<32x64xf32>
        %189 = vector.extract_strided_slice %17 {offsets = [4, 0], sizes = [1, 64], strides = [1, 1]} : vector<32x64xf32> to vector<1x64xf32>
        %190 = vector.extract_strided_slice %188 {offsets = [4, 0], sizes = [1, 64], strides = [1, 1]} : vector<32x64xf32> to vector<1x64xf32>
        %191 = arith.mulf %190, %190 : vector<1x64xf32>
        %192 = vector.broadcast %191 : vector<1x64xf32> to vector<2x64xf32>
        %193 = arith.mulf %3, %192 : vector<2x64xf32>
        %cst_70 = arith.constant dense<0.000000e+00> : vector<2xf32>
        %194 = vector.multi_reduction <add>, %193, %cst_70 [1] : vector<2x64xf32> to vector<2xf32>
        %195 = vector.shape_cast %194 : vector<2xf32> to vector<2x1xf32>
        %cst_71 = arith.constant 9.99999968E-21 : f32
        %196 = vector.broadcast %cst_71 : f32 to vector<2x1xf32>
        %197 = arith.cmpf ogt, %195, %196 : vector<2x1xf32>
        %cst_72 = arith.constant 1.000000e-30 : f32
        %198 = vector.broadcast %cst_72 : f32 to vector<2x1xf32>
        %199 = arith.maximumf %195, %198 : vector<2x1xf32>
        %200 = math.rsqrt %199 : vector<2x1xf32>
        %cst_73 = arith.constant 0.000000e+00 : f32
        %201 = vector.broadcast %cst_73 : f32 to vector<2x1xf32>
        %202 = arith.select %197, %200, %201 : vector<2x1xi1>, vector<2x1xf32>
        %203 = vector.extract_strided_slice %202 {offsets = [0, 0], sizes = [1, 1], strides = [1, 1]} : vector<2x1xf32> to vector<1x1xf32>
        %204 = vector.extract_strided_slice %3 {offsets = [0, 0], sizes = [1, 64], strides = [1, 1]} : vector<2x64xf32> to vector<1x64xf32>
        %205 = vector.broadcast %203 : vector<1x1xf32> to vector<1x64xf32>
        %206 = arith.mulf %205, %204 : vector<1x64xf32>
        %207 = vector.extract_strided_slice %202 {offsets = [1, 0], sizes = [1, 1], strides = [1, 1]} : vector<2x1xf32> to vector<1x1xf32>
        %208 = vector.extract_strided_slice %3 {offsets = [1, 0], sizes = [1, 64], strides = [1, 1]} : vector<2x64xf32> to vector<1x64xf32>
        %209 = vector.broadcast %207 : vector<1x1xf32> to vector<1x64xf32>
        %210 = arith.mulf %209, %208 : vector<1x64xf32>
        %211 = arith.addf %206, %210 : vector<1x64xf32>
        %212 = arith.mulf %190, %211 : vector<1x64xf32>
        %cst_74 = arith.constant 0.000000e+00 : f32
        %213 = vector.broadcast %cst_74 : f32 to vector<1x64xf32>
        %214 = arith.subf %213, %212 : vector<1x64xf32>
        %cst_75 = arith.constant 0.000000e+00 : f32
        %215 = vector.broadcast %cst_75 : f32 to vector<1x64xf32>
        %216 = arith.cmpf ogt, %211, %215 : vector<1x64xf32>
        %217 = arith.select %216, %214, %189 : vector<1x64xi1>, vector<1x64xf32>
        %c4 = arith.constant 4 : index
        %c0_76 = arith.constant 0 : index
        %218 = vector.load %arg3[%c4, %c0_76] : memref<32x64xf32, #tpu.memory_space<vmem>>, vector<1x64xf32>
        %219 = arith.subf %217, %189 : vector<1x64xf32>
        %220 = arith.mulf %218, %219 : vector<1x64xf32>
        %221 = arith.addf %189, %220 : vector<1x64xf32>
        %c4_77 = arith.constant 4 : index
        %c0_78 = arith.constant 0 : index
        %222 = vector.load %arg7[%c4_77, %c0_78] : memref<32x64xf32, #tpu.memory_space<vmem>>, vector<1x64xf32>
        tpu.vector_store %arg7[%c4_77, %c0_78], %221 {strides = array<i32>} : memref<32x64xf32, #tpu.memory_space<vmem>>, vector<1x64xf32>,
        %223 = arith.mulf %220, %220 : vector<1x64xf32>
        %224 = arith.addf %182, %223 : vector<1x64xf32>
        %c4_79 = arith.constant 4 : index
        %c0_80 = arith.constant 0 : index
        %c0_81 = arith.constant 0 : index
        %225 = vector.load %arg2[%c4_79, %c0_80, %c0_81] : memref<32x32x1xf32, #tpu.memory_space<vmem>>, vector<1x32x1xf32>
        %226 = vector.shape_cast %225 : vector<1x32x1xf32> to vector<32x1xf32>
        %227 = vector.broadcast %226 : vector<32x1xf32> to vector<32x64xf32>
        %228 = vector.broadcast %220 : vector<1x64xf32> to vector<32x64xf32>
        %229 = arith.mulf %227, %228 : vector<32x64xf32>
        %230 = arith.addf %188, %229 : vector<32x64xf32>
        %231 = vector.extract_strided_slice %17 {offsets = [5, 0], sizes = [1, 64], strides = [1, 1]} : vector<32x64xf32> to vector<1x64xf32>
        %232 = vector.extract_strided_slice %230 {offsets = [5, 0], sizes = [1, 64], strides = [1, 1]} : vector<32x64xf32> to vector<1x64xf32>
        %233 = arith.mulf %232, %232 : vector<1x64xf32>
        %234 = vector.broadcast %233 : vector<1x64xf32> to vector<2x64xf32>
        %235 = arith.mulf %3, %234 : vector<2x64xf32>
        %cst_82 = arith.constant dense<0.000000e+00> : vector<2xf32>
        %236 = vector.multi_reduction <add>, %235, %cst_82 [1] : vector<2x64xf32> to vector<2xf32>
        %237 = vector.shape_cast %236 : vector<2xf32> to vector<2x1xf32>
        %cst_83 = arith.constant 9.99999968E-21 : f32
        %238 = vector.broadcast %cst_83 : f32 to vector<2x1xf32>
        %239 = arith.cmpf ogt, %237, %238 : vector<2x1xf32>
        %cst_84 = arith.constant 1.000000e-30 : f32
        %240 = vector.broadcast %cst_84 : f32 to vector<2x1xf32>
        %241 = arith.maximumf %237, %240 : vector<2x1xf32>
        %242 = math.rsqrt %241 : vector<2x1xf32>
        %cst_85 = arith.constant 0.000000e+00 : f32
        %243 = vector.broadcast %cst_85 : f32 to vector<2x1xf32>
        %244 = arith.select %239, %242, %243 : vector<2x1xi1>, vector<2x1xf32>
        %245 = vector.extract_strided_slice %244 {offsets = [0, 0], sizes = [1, 1], strides = [1, 1]} : vector<2x1xf32> to vector<1x1xf32>
        %246 = vector.extract_strided_slice %3 {offsets = [0, 0], sizes = [1, 64], strides = [1, 1]} : vector<2x64xf32> to vector<1x64xf32>
        %247 = vector.broadcast %245 : vector<1x1xf32> to vector<1x64xf32>
        %248 = arith.mulf %247, %246 : vector<1x64xf32>
        %249 = vector.extract_strided_slice %244 {offsets = [1, 0], sizes = [1, 1], strides = [1, 1]} : vector<2x1xf32> to vector<1x1xf32>
        %250 = vector.extract_strided_slice %3 {offsets = [1, 0], sizes = [1, 64], strides = [1, 1]} : vector<2x64xf32> to vector<1x64xf32>
        %251 = vector.broadcast %249 : vector<1x1xf32> to vector<1x64xf32>
        %252 = arith.mulf %251, %250 : vector<1x64xf32>
        %253 = arith.addf %248, %252 : vector<1x64xf32>
        %254 = arith.mulf %232, %253 : vector<1x64xf32>
        %cst_86 = arith.constant 0.000000e+00 : f32
        %255 = vector.broadcast %cst_86 : f32 to vector<1x64xf32>
        %256 = arith.subf %255, %254 : vector<1x64xf32>
        %cst_87 = arith.constant 0.000000e+00 : f32
        %257 = vector.broadcast %cst_87 : f32 to vector<1x64xf32>
        %258 = arith.cmpf ogt, %253, %257 : vector<1x64xf32>
        %259 = arith.select %258, %256, %231 : vector<1x64xi1>, vector<1x64xf32>
        %c5 = arith.constant 5 : index
        %c0_88 = arith.constant 0 : index
        %260 = vector.load %arg3[%c5, %c0_88] : memref<32x64xf32, #tpu.memory_space<vmem>>, vector<1x64xf32>
        %261 = arith.subf %259, %231 : vector<1x64xf32>
        %262 = arith.mulf %260, %261 : vector<1x64xf32>
        %263 = arith.addf %231, %262 : vector<1x64xf32>
        %c5_89 = arith.constant 5 : index
        %c0_90 = arith.constant 0 : index
        %264 = vector.load %arg7[%c5_89, %c0_90] : memref<32x64xf32, #tpu.memory_space<vmem>>, vector<1x64xf32>
        tpu.vector_store %arg7[%c5_89, %c0_90], %263 {strides = array<i32>} : memref<32x64xf32, #tpu.memory_space<vmem>>, vector<1x64xf32>,
        %265 = arith.mulf %262, %262 : vector<1x64xf32>
        %266 = arith.addf %224, %265 : vector<1x64xf32>
        %c5_91 = arith.constant 5 : index
        %c0_92 = arith.constant 0 : index
        %c0_93 = arith.constant 0 : index
        %267 = vector.load %arg2[%c5_91, %c0_92, %c0_93] : memref<32x32x1xf32, #tpu.memory_space<vmem>>, vector<1x32x1xf32>
        %268 = vector.shape_cast %267 : vector<1x32x1xf32> to vector<32x1xf32>
        %269 = vector.broadcast %268 : vector<32x1xf32> to vector<32x64xf32>
        %270 = vector.broadcast %262 : vector<1x64xf32> to vector<32x64xf32>
        %271 = arith.mulf %269, %270 : vector<32x64xf32>
        %272 = arith.addf %230, %271 : vector<32x64xf32>
        %273 = vector.extract_strided_slice %17 {offsets = [6, 0], sizes = [1, 64], strides = [1, 1]} : vector<32x64xf32> to vector<1x64xf32>
        %274 = vector.extract_strided_slice %272 {offsets = [6, 0], sizes = [1, 64], strides = [1, 1]} : vector<32x64xf32> to vector<1x64xf32>
        %275 = arith.mulf %274, %274 : vector<1x64xf32>
        %276 = vector.broadcast %275 : vector<1x64xf32> to vector<2x64xf32>
        %277 = arith.mulf %3, %276 : vector<2x64xf32>
        %cst_94 = arith.constant dense<0.000000e+00> : vector<2xf32>
        %278 = vector.multi_reduction <add>, %277, %cst_94 [1] : vector<2x64xf32> to vector<2xf32>
        %279 = vector.shape_cast %278 : vector<2xf32> to vector<2x1xf32>
        %cst_95 = arith.constant 9.99999968E-21 : f32
        %280 = vector.broadcast %cst_95 : f32 to vector<2x1xf32>
        %281 = arith.cmpf ogt, %279, %280 : vector<2x1xf32>
        %cst_96 = arith.constant 1.000000e-30 : f32
        %282 = vector.broadcast %cst_96 : f32 to vector<2x1xf32>
        %283 = arith.maximumf %279, %282 : vector<2x1xf32>
        %284 = math.rsqrt %283 : vector<2x1xf32>
        %cst_97 = arith.constant 0.000000e+00 : f32
        %285 = vector.broadcast %cst_97 : f32 to vector<2x1xf32>
        %286 = arith.select %281, %284, %285 : vector<2x1xi1>, vector<2x1xf32>
        %287 = vector.extract_strided_slice %286 {offsets = [0, 0], sizes = [1, 1], strides = [1, 1]} : vector<2x1xf32> to vector<1x1xf32>
        %288 = vector.extract_strided_slice %3 {offsets = [0, 0], sizes = [1, 64], strides = [1, 1]} : vector<2x64xf32> to vector<1x64xf32>
        %289 = vector.broadcast %287 : vector<1x1xf32> to vector<1x64xf32>
        %290 = arith.mulf %289, %288 : vector<1x64xf32>
        %291 = vector.extract_strided_slice %286 {offsets = [1, 0], sizes = [1, 1], strides = [1, 1]} : vector<2x1xf32> to vector<1x1xf32>
        %292 = vector.extract_strided_slice %3 {offsets = [1, 0], sizes = [1, 64], strides = [1, 1]} : vector<2x64xf32> to vector<1x64xf32>
        %293 = vector.broadcast %291 : vector<1x1xf32> to vector<1x64xf32>
        %294 = arith.mulf %293, %292 : vector<1x64xf32>
        %295 = arith.addf %290, %294 : vector<1x64xf32>
        %296 = arith.mulf %274, %295 : vector<1x64xf32>
        %cst_98 = arith.constant 0.000000e+00 : f32
        %297 = vector.broadcast %cst_98 : f32 to vector<1x64xf32>
        %298 = arith.subf %297, %296 : vector<1x64xf32>
        %cst_99 = arith.constant 0.000000e+00 : f32
        %299 = vector.broadcast %cst_99 : f32 to vector<1x64xf32>
        %300 = arith.cmpf ogt, %295, %299 : vector<1x64xf32>
        %301 = arith.select %300, %298, %273 : vector<1x64xi1>, vector<1x64xf32>
        %c6 = arith.constant 6 : index
        %c0_100 = arith.constant 0 : index
        %302 = vector.load %arg3[%c6, %c0_100] : memref<32x64xf32, #tpu.memory_space<vmem>>, vector<1x64xf32>
        %303 = arith.subf %301, %273 : vector<1x64xf32>
        %304 = arith.mulf %302, %303 : vector<1x64xf32>
        %305 = arith.addf %273, %304 : vector<1x64xf32>
        %c6_101 = arith.constant 6 : index
        %c0_102 = arith.constant 0 : index
        %306 = vector.load %arg7[%c6_101, %c0_102] : memref<32x64xf32, #tpu.memory_space<vmem>>, vector<1x64xf32>
        tpu.vector_store %arg7[%c6_101, %c0_102], %305 {strides = array<i32>} : memref<32x64xf32, #tpu.memory_space<vmem>>, vector<1x64xf32>,
        %307 = arith.mulf %304, %304 : vector<1x64xf32>
        %308 = arith.addf %266, %307 : vector<1x64xf32>
        %c6_103 = arith.constant 6 : index
        %c0_104 = arith.constant 0 : index
        %c0_105 = arith.constant 0 : index
        %309 = vector.load %arg2[%c6_103, %c0_104, %c0_105] : memref<32x32x1xf32, #tpu.memory_space<vmem>>, vector<1x32x1xf32>
        %310 = vector.shape_cast %309 : vector<1x32x1xf32> to vector<32x1xf32>
        %311 = vector.broadcast %310 : vector<32x1xf32> to vector<32x64xf32>
        %312 = vector.broadcast %304 : vector<1x64xf32> to vector<32x64xf32>
        %313 = arith.mulf %311, %312 : vector<32x64xf32>
        %314 = arith.addf %272, %313 : vector<32x64xf32>
        %315 = vector.extract_strided_slice %17 {offsets = [7, 0], sizes = [1, 64], strides = [1, 1]} : vector<32x64xf32> to vector<1x64xf32>
        %316 = vector.extract_strided_slice %314 {offsets = [7, 0], sizes = [1, 64], strides = [1, 1]} : vector<32x64xf32> to vector<1x64xf32>
        %317 = arith.mulf %316, %316 : vector<1x64xf32>
        %318 = vector.broadcast %317 : vector<1x64xf32> to vector<2x64xf32>
        %319 = arith.mulf %3, %318 : vector<2x64xf32>
        %cst_106 = arith.constant dense<0.000000e+00> : vector<2xf32>
        %320 = vector.multi_reduction <add>, %319, %cst_106 [1] : vector<2x64xf32> to vector<2xf32>
        %321 = vector.shape_cast %320 : vector<2xf32> to vector<2x1xf32>
        %cst_107 = arith.constant 9.99999968E-21 : f32
        %322 = vector.broadcast %cst_107 : f32 to vector<2x1xf32>
        %323 = arith.cmpf ogt, %321, %322 : vector<2x1xf32>
        %cst_108 = arith.constant 1.000000e-30 : f32
        %324 = vector.broadcast %cst_108 : f32 to vector<2x1xf32>
        %325 = arith.maximumf %321, %324 : vector<2x1xf32>
        %326 = math.rsqrt %325 : vector<2x1xf32>
        %cst_109 = arith.constant 0.000000e+00 : f32
        %327 = vector.broadcast %cst_109 : f32 to vector<2x1xf32>
        %328 = arith.select %323, %326, %327 : vector<2x1xi1>, vector<2x1xf32>
        %329 = vector.extract_strided_slice %328 {offsets = [0, 0], sizes = [1, 1], strides = [1, 1]} : vector<2x1xf32> to vector<1x1xf32>
        %330 = vector.extract_strided_slice %3 {offsets = [0, 0], sizes = [1, 64], strides = [1, 1]} : vector<2x64xf32> to vector<1x64xf32>
        %331 = vector.broadcast %329 : vector<1x1xf32> to vector<1x64xf32>
        %332 = arith.mulf %331, %330 : vector<1x64xf32>
        %333 = vector.extract_strided_slice %328 {offsets = [1, 0], sizes = [1, 1], strides = [1, 1]} : vector<2x1xf32> to vector<1x1xf32>
        %334 = vector.extract_strided_slice %3 {offsets = [1, 0], sizes = [1, 64], strides = [1, 1]} : vector<2x64xf32> to vector<1x64xf32>
        %335 = vector.broadcast %333 : vector<1x1xf32> to vector<1x64xf32>
        %336 = arith.mulf %335, %334 : vector<1x64xf32>
        %337 = arith.addf %332, %336 : vector<1x64xf32>
        %338 = arith.mulf %316, %337 : vector<1x64xf32>
        %cst_110 = arith.constant 0.000000e+00 : f32
        %339 = vector.broadcast %cst_110 : f32 to vector<1x64xf32>
        %340 = arith.subf %339, %338 : vector<1x64xf32>
        %cst_111 = arith.constant 0.000000e+00 : f32
        %341 = vector.broadcast %cst_111 : f32 to vector<1x64xf32>
        %342 = arith.cmpf ogt, %337, %341 : vector<1x64xf32>
        %343 = arith.select %342, %340, %315 : vector<1x64xi1>, vector<1x64xf32>
        %c7 = arith.constant 7 : index
        %c0_112 = arith.constant 0 : index
        %344 = vector.load %arg3[%c7, %c0_112] : memref<32x64xf32, #tpu.memory_space<vmem>>, vector<1x64xf32>
        %345 = arith.subf %343, %315 : vector<1x64xf32>
        %346 = arith.mulf %344, %345 : vector<1x64xf32>
        %347 = arith.addf %315, %346 : vector<1x64xf32>
        %c7_113 = arith.constant 7 : index
        %c0_114 = arith.constant 0 : index
        %348 = vector.load %arg7[%c7_113, %c0_114] : memref<32x64xf32, #tpu.memory_space<vmem>>, vector<1x64xf32>
        tpu.vector_store %arg7[%c7_113, %c0_114], %347 {strides = array<i32>} : memref<32x64xf32, #tpu.memory_space<vmem>>, vector<1x64xf32>,
        %349 = arith.mulf %346, %346 : vector<1x64xf32>
        %350 = arith.addf %308, %349 : vector<1x64xf32>
        %c7_115 = arith.constant 7 : index
        %c0_116 = arith.constant 0 : index
        %c0_117 = arith.constant 0 : index
        %351 = vector.load %arg2[%c7_115, %c0_116, %c0_117] : memref<32x32x1xf32, #tpu.memory_space<vmem>>, vector<1x32x1xf32>
        %352 = vector.shape_cast %351 : vector<1x32x1xf32> to vector<32x1xf32>
        %353 = vector.broadcast %352 : vector<32x1xf32> to vector<32x64xf32>
        %354 = vector.broadcast %346 : vector<1x64xf32> to vector<32x64xf32>
        %355 = arith.mulf %353, %354 : vector<32x64xf32>
        %356 = arith.addf %314, %355 : vector<32x64xf32>
        %357 = vector.extract_strided_slice %17 {offsets = [8, 0], sizes = [1, 64], strides = [1, 1]} : vector<32x64xf32> to vector<1x64xf32>
        %358 = vector.extract_strided_slice %356 {offsets = [8, 0], sizes = [1, 64], strides = [1, 1]} : vector<32x64xf32> to vector<1x64xf32>
        %359 = arith.mulf %358, %358 : vector<1x64xf32>
        %360 = vector.broadcast %359 : vector<1x64xf32> to vector<2x64xf32>
        %361 = arith.mulf %3, %360 : vector<2x64xf32>
        %cst_118 = arith.constant dense<0.000000e+00> : vector<2xf32>
        %362 = vector.multi_reduction <add>, %361, %cst_118 [1] : vector<2x64xf32> to vector<2xf32>
        %363 = vector.shape_cast %362 : vector<2xf32> to vector<2x1xf32>
        %cst_119 = arith.constant 9.99999968E-21 : f32
        %364 = vector.broadcast %cst_119 : f32 to vector<2x1xf32>
        %365 = arith.cmpf ogt, %363, %364 : vector<2x1xf32>
        %cst_120 = arith.constant 1.000000e-30 : f32
        %366 = vector.broadcast %cst_120 : f32 to vector<2x1xf32>
        %367 = arith.maximumf %363, %366 : vector<2x1xf32>
        %368 = math.rsqrt %367 : vector<2x1xf32>
        %cst_121 = arith.constant 0.000000e+00 : f32
        %369 = vector.broadcast %cst_121 : f32 to vector<2x1xf32>
        %370 = arith.select %365, %368, %369 : vector<2x1xi1>, vector<2x1xf32>
        %371 = vector.extract_strided_slice %370 {offsets = [0, 0], sizes = [1, 1], strides = [1, 1]} : vector<2x1xf32> to vector<1x1xf32>
        %372 = vector.extract_strided_slice %3 {offsets = [0, 0], sizes = [1, 64], strides = [1, 1]} : vector<2x64xf32> to vector<1x64xf32>
        %373 = vector.broadcast %371 : vector<1x1xf32> to vector<1x64xf32>
        %374 = arith.mulf %373, %372 : vector<1x64xf32>
        %375 = vector.extract_strided_slice %370 {offsets = [1, 0], sizes = [1, 1], strides = [1, 1]} : vector<2x1xf32> to vector<1x1xf32>
        %376 = vector.extract_strided_slice %3 {offsets = [1, 0], sizes = [1, 64], strides = [1, 1]} : vector<2x64xf32> to vector<1x64xf32>
        %377 = vector.broadcast %375 : vector<1x1xf32> to vector<1x64xf32>
        %378 = arith.mulf %377, %376 : vector<1x64xf32>
        %379 = arith.addf %374, %378 : vector<1x64xf32>
        %380 = arith.mulf %358, %379 : vector<1x64xf32>
        %cst_122 = arith.constant 0.000000e+00 : f32
        %381 = vector.broadcast %cst_122 : f32 to vector<1x64xf32>
        %382 = arith.subf %381, %380 : vector<1x64xf32>
        %cst_123 = arith.constant 0.000000e+00 : f32
        %383 = vector.broadcast %cst_123 : f32 to vector<1x64xf32>
        %384 = arith.cmpf ogt, %379, %383 : vector<1x64xf32>
        %385 = arith.select %384, %382, %357 : vector<1x64xi1>, vector<1x64xf32>
        %c8 = arith.constant 8 : index
        %c0_124 = arith.constant 0 : index
        %386 = vector.load %arg3[%c8, %c0_124] : memref<32x64xf32, #tpu.memory_space<vmem>>, vector<1x64xf32>
        %387 = arith.subf %385, %357 : vector<1x64xf32>
        %388 = arith.mulf %386, %387 : vector<1x64xf32>
        %389 = arith.addf %357, %388 : vector<1x64xf32>
        %c8_125 = arith.constant 8 : index
        %c0_126 = arith.constant 0 : index
        %390 = vector.load %arg7[%c8_125, %c0_126] : memref<32x64xf32, #tpu.memory_space<vmem>>, vector<1x64xf32>
        tpu.vector_store %arg7[%c8_125, %c0_126], %389 {strides = array<i32>} : memref<32x64xf32, #tpu.memory_space<vmem>>, vector<1x64xf32>,
        %391 = arith.mulf %388, %388 : vector<1x64xf32>
        %392 = arith.addf %350, %391 : vector<1x64xf32>
        %c8_127 = arith.constant 8 : index
        %c0_128 = arith.constant 0 : index
        %c0_129 = arith.constant 0 : index
        %393 = vector.load %arg2[%c8_127, %c0_128, %c0_129] : memref<32x32x1xf32, #tpu.memory_space<vmem>>, vector<1x32x1xf32>
        %394 = vector.shape_cast %393 : vector<1x32x1xf32> to vector<32x1xf32>
        %395 = vector.broadcast %394 : vector<32x1xf32> to vector<32x64xf32>
        %396 = vector.broadcast %388 : vector<1x64xf32> to vector<32x64xf32>
        %397 = arith.mulf %395, %396 : vector<32x64xf32>
        %398 = arith.addf %356, %397 : vector<32x64xf32>
        %399 = vector.extract_strided_slice %17 {offsets = [9, 0], sizes = [1, 64], strides = [1, 1]} : vector<32x64xf32> to vector<1x64xf32>
        %400 = vector.extract_strided_slice %398 {offsets = [9, 0], sizes = [1, 64], strides = [1, 1]} : vector<32x64xf32> to vector<1x64xf32>
        %401 = arith.mulf %400, %400 : vector<1x64xf32>
        %402 = vector.broadcast %401 : vector<1x64xf32> to vector<2x64xf32>
        %403 = arith.mulf %3, %402 : vector<2x64xf32>
        %cst_130 = arith.constant dense<0.000000e+00> : vector<2xf32>
        %404 = vector.multi_reduction <add>, %403, %cst_130 [1] : vector<2x64xf32> to vector<2xf32>
        %405 = vector.shape_cast %404 : vector<2xf32> to vector<2x1xf32>
        %cst_131 = arith.constant 9.99999968E-21 : f32
        %406 = vector.broadcast %cst_131 : f32 to vector<2x1xf32>
        %407 = arith.cmpf ogt, %405, %406 : vector<2x1xf32>
        %cst_132 = arith.constant 1.000000e-30 : f32
        %408 = vector.broadcast %cst_132 : f32 to vector<2x1xf32>
        %409 = arith.maximumf %405, %408 : vector<2x1xf32>
        %410 = math.rsqrt %409 : vector<2x1xf32>
        %cst_133 = arith.constant 0.000000e+00 : f32
        %411 = vector.broadcast %cst_133 : f32 to vector<2x1xf32>
        %412 = arith.select %407, %410, %411 : vector<2x1xi1>, vector<2x1xf32>
        %413 = vector.extract_strided_slice %412 {offsets = [0, 0], sizes = [1, 1], strides = [1, 1]} : vector<2x1xf32> to vector<1x1xf32>
        %414 = vector.extract_strided_slice %3 {offsets = [0, 0], sizes = [1, 64], strides = [1, 1]} : vector<2x64xf32> to vector<1x64xf32>
        %415 = vector.broadcast %413 : vector<1x1xf32> to vector<1x64xf32>
        %416 = arith.mulf %415, %414 : vector<1x64xf32>
        %417 = vector.extract_strided_slice %412 {offsets = [1, 0], sizes = [1, 1], strides = [1, 1]} : vector<2x1xf32> to vector<1x1xf32>
        %418 = vector.extract_strided_slice %3 {offsets = [1, 0], sizes = [1, 64], strides = [1, 1]} : vector<2x64xf32> to vector<1x64xf32>
        %419 = vector.broadcast %417 : vector<1x1xf32> to vector<1x64xf32>
        %420 = arith.mulf %419, %418 : vector<1x64xf32>
        %421 = arith.addf %416, %420 : vector<1x64xf32>
        %422 = arith.mulf %400, %421 : vector<1x64xf32>
        %cst_134 = arith.constant 0.000000e+00 : f32
        %423 = vector.broadcast %cst_134 : f32 to vector<1x64xf32>
        %424 = arith.subf %423, %422 : vector<1x64xf32>
        %cst_135 = arith.constant 0.000000e+00 : f32
        %425 = vector.broadcast %cst_135 : f32 to vector<1x64xf32>
        %426 = arith.cmpf ogt, %421, %425 : vector<1x64xf32>
        %427 = arith.select %426, %424, %399 : vector<1x64xi1>, vector<1x64xf32>
        %c9 = arith.constant 9 : index
        %c0_136 = arith.constant 0 : index
        %428 = vector.load %arg3[%c9, %c0_136] : memref<32x64xf32, #tpu.memory_space<vmem>>, vector<1x64xf32>
        %429 = arith.subf %427, %399 : vector<1x64xf32>
        %430 = arith.mulf %428, %429 : vector<1x64xf32>
        %431 = arith.addf %399, %430 : vector<1x64xf32>
        %c9_137 = arith.constant 9 : index
        %c0_138 = arith.constant 0 : index
        %432 = vector.load %arg7[%c9_137, %c0_138] : memref<32x64xf32, #tpu.memory_space<vmem>>, vector<1x64xf32>
        tpu.vector_store %arg7[%c9_137, %c0_138], %431 {strides = array<i32>} : memref<32x64xf32, #tpu.memory_space<vmem>>, vector<1x64xf32>,
        %433 = arith.mulf %430, %430 : vector<1x64xf32>
        %434 = arith.addf %392, %433 : vector<1x64xf32>
        %c9_139 = arith.constant 9 : index
        %c0_140 = arith.constant 0 : index
        %c0_141 = arith.constant 0 : index
        %435 = vector.load %arg2[%c9_139, %c0_140, %c0_141] : memref<32x32x1xf32, #tpu.memory_space<vmem>>, vector<1x32x1xf32>
        %436 = vector.shape_cast %435 : vector<1x32x1xf32> to vector<32x1xf32>
        %437 = vector.broadcast %436 : vector<32x1xf32> to vector<32x64xf32>
        %438 = vector.broadcast %430 : vector<1x64xf32> to vector<32x64xf32>
        %439 = arith.mulf %437, %438 : vector<32x64xf32>
        %440 = arith.addf %398, %439 : vector<32x64xf32>
        %441 = vector.extract_strided_slice %17 {offsets = [10, 0], sizes = [1, 64], strides = [1, 1]} : vector<32x64xf32> to vector<1x64xf32>
        %442 = vector.extract_strided_slice %440 {offsets = [10, 0], sizes = [1, 64], strides = [1, 1]} : vector<32x64xf32> to vector<1x64xf32>
        %443 = arith.mulf %442, %442 : vector<1x64xf32>
        %444 = vector.broadcast %443 : vector<1x64xf32> to vector<2x64xf32>
        %445 = arith.mulf %3, %444 : vector<2x64xf32>
        %cst_142 = arith.constant dense<0.000000e+00> : vector<2xf32>
        %446 = vector.multi_reduction <add>, %445, %cst_142 [1] : vector<2x64xf32> to vector<2xf32>
        %447 = vector.shape_cast %446 : vector<2xf32> to vector<2x1xf32>
        %cst_143 = arith.constant 9.99999968E-21 : f32
        %448 = vector.broadcast %cst_143 : f32 to vector<2x1xf32>
        %449 = arith.cmpf ogt, %447, %448 : vector<2x1xf32>
        %cst_144 = arith.constant 1.000000e-30 : f32
        %450 = vector.broadcast %cst_144 : f32 to vector<2x1xf32>
        %451 = arith.maximumf %447, %450 : vector<2x1xf32>
        %452 = math.rsqrt %451 : vector<2x1xf32>
        %cst_145 = arith.constant 0.000000e+00 : f32
        %453 = vector.broadcast %cst_145 : f32 to vector<2x1xf32>
        %454 = arith.select %449, %452, %453 : vector<2x1xi1>, vector<2x1xf32>
        %455 = vector.extract_strided_slice %454 {offsets = [0, 0], sizes = [1, 1], strides = [1, 1]} : vector<2x1xf32> to vector<1x1xf32>
        %456 = vector.extract_strided_slice %3 {offsets = [0, 0], sizes = [1, 64], strides = [1, 1]} : vector<2x64xf32> to vector<1x64xf32>
        %457 = vector.broadcast %455 : vector<1x1xf32> to vector<1x64xf32>
        %458 = arith.mulf %457, %456 : vector<1x64xf32>
        %459 = vector.extract_strided_slice %454 {offsets = [1, 0], sizes = [1, 1], strides = [1, 1]} : vector<2x1xf32> to vector<1x1xf32>
        %460 = vector.extract_strided_slice %3 {offsets = [1, 0], sizes = [1, 64], strides = [1, 1]} : vector<2x64xf32> to vector<1x64xf32>
        %461 = vector.broadcast %459 : vector<1x1xf32> to vector<1x64xf32>
        %462 = arith.mulf %461, %460 : vector<1x64xf32>
        %463 = arith.addf %458, %462 : vector<1x64xf32>
        %464 = arith.mulf %442, %463 : vector<1x64xf32>
        %cst_146 = arith.constant 0.000000e+00 : f32
        %465 = vector.broadcast %cst_146 : f32 to vector<1x64xf32>
        %466 = arith.subf %465, %464 : vector<1x64xf32>
        %cst_147 = arith.constant 0.000000e+00 : f32
        %467 = vector.broadcast %cst_147 : f32 to vector<1x64xf32>
        %468 = arith.cmpf ogt, %463, %467 : vector<1x64xf32>
        %469 = arith.select %468, %466, %441 : vector<1x64xi1>, vector<1x64xf32>
        %c10 = arith.constant 10 : index
        %c0_148 = arith.constant 0 : index
        %470 = vector.load %arg3[%c10, %c0_148] : memref<32x64xf32, #tpu.memory_space<vmem>>, vector<1x64xf32>
        %471 = arith.subf %469, %441 : vector<1x64xf32>
        %472 = arith.mulf %470, %471 : vector<1x64xf32>
        %473 = arith.addf %441, %472 : vector<1x64xf32>
        %c10_149 = arith.constant 10 : index
        %c0_150 = arith.constant 0 : index
        %474 = vector.load %arg7[%c10_149, %c0_150] : memref<32x64xf32, #tpu.memory_space<vmem>>, vector<1x64xf32>
        tpu.vector_store %arg7[%c10_149, %c0_150], %473 {strides = array<i32>} : memref<32x64xf32, #tpu.memory_space<vmem>>, vector<1x64xf32>,
        %475 = arith.mulf %472, %472 : vector<1x64xf32>
        %476 = arith.addf %434, %475 : vector<1x64xf32>
        %c10_151 = arith.constant 10 : index
        %c0_152 = arith.constant 0 : index
        %c0_153 = arith.constant 0 : index
        %477 = vector.load %arg2[%c10_151, %c0_152, %c0_153] : memref<32x32x1xf32, #tpu.memory_space<vmem>>, vector<1x32x1xf32>
        %478 = vector.shape_cast %477 : vector<1x32x1xf32> to vector<32x1xf32>
        %479 = vector.broadcast %478 : vector<32x1xf32> to vector<32x64xf32>
        %480 = vector.broadcast %472 : vector<1x64xf32> to vector<32x64xf32>
        %481 = arith.mulf %479, %480 : vector<32x64xf32>
        %482 = arith.addf %440, %481 : vector<32x64xf32>
        %483 = vector.extract_strided_slice %17 {offsets = [11, 0], sizes = [1, 64], strides = [1, 1]} : vector<32x64xf32> to vector<1x64xf32>
        %484 = vector.extract_strided_slice %482 {offsets = [11, 0], sizes = [1, 64], strides = [1, 1]} : vector<32x64xf32> to vector<1x64xf32>
        %485 = arith.mulf %484, %484 : vector<1x64xf32>
        %486 = vector.broadcast %485 : vector<1x64xf32> to vector<2x64xf32>
        %487 = arith.mulf %3, %486 : vector<2x64xf32>
        %cst_154 = arith.constant dense<0.000000e+00> : vector<2xf32>
        %488 = vector.multi_reduction <add>, %487, %cst_154 [1] : vector<2x64xf32> to vector<2xf32>
        %489 = vector.shape_cast %488 : vector<2xf32> to vector<2x1xf32>
        %cst_155 = arith.constant 9.99999968E-21 : f32
        %490 = vector.broadcast %cst_155 : f32 to vector<2x1xf32>
        %491 = arith.cmpf ogt, %489, %490 : vector<2x1xf32>
        %cst_156 = arith.constant 1.000000e-30 : f32
        %492 = vector.broadcast %cst_156 : f32 to vector<2x1xf32>
        %493 = arith.maximumf %489, %492 : vector<2x1xf32>
        %494 = math.rsqrt %493 : vector<2x1xf32>
        %cst_157 = arith.constant 0.000000e+00 : f32
        %495 = vector.broadcast %cst_157 : f32 to vector<2x1xf32>
        %496 = arith.select %491, %494, %495 : vector<2x1xi1>, vector<2x1xf32>
        %497 = vector.extract_strided_slice %496 {offsets = [0, 0], sizes = [1, 1], strides = [1, 1]} : vector<2x1xf32> to vector<1x1xf32>
        %498 = vector.extract_strided_slice %3 {offsets = [0, 0], sizes = [1, 64], strides = [1, 1]} : vector<2x64xf32> to vector<1x64xf32>
        %499 = vector.broadcast %497 : vector<1x1xf32> to vector<1x64xf32>
        %500 = arith.mulf %499, %498 : vector<1x64xf32>
        %501 = vector.extract_strided_slice %496 {offsets = [1, 0], sizes = [1, 1], strides = [1, 1]} : vector<2x1xf32> to vector<1x1xf32>
        %502 = vector.extract_strided_slice %3 {offsets = [1, 0], sizes = [1, 64], strides = [1, 1]} : vector<2x64xf32> to vector<1x64xf32>
        %503 = vector.broadcast %501 : vector<1x1xf32> to vector<1x64xf32>
        %504 = arith.mulf %503, %502 : vector<1x64xf32>
        %505 = arith.addf %500, %504 : vector<1x64xf32>
        %506 = arith.mulf %484, %505 : vector<1x64xf32>
        %cst_158 = arith.constant 0.000000e+00 : f32
        %507 = vector.broadcast %cst_158 : f32 to vector<1x64xf32>
        %508 = arith.subf %507, %506 : vector<1x64xf32>
        %cst_159 = arith.constant 0.000000e+00 : f32
        %509 = vector.broadcast %cst_159 : f32 to vector<1x64xf32>
        %510 = arith.cmpf ogt, %505, %509 : vector<1x64xf32>
        %511 = arith.select %510, %508, %483 : vector<1x64xi1>, vector<1x64xf32>
        %c11 = arith.constant 11 : index
        %c0_160 = arith.constant 0 : index
        %512 = vector.load %arg3[%c11, %c0_160] : memref<32x64xf32, #tpu.memory_space<vmem>>, vector<1x64xf32>
        %513 = arith.subf %511, %483 : vector<1x64xf32>
        %514 = arith.mulf %512, %513 : vector<1x64xf32>
        %515 = arith.addf %483, %514 : vector<1x64xf32>
        %c11_161 = arith.constant 11 : index
        %c0_162 = arith.constant 0 : index
        %516 = vector.load %arg7[%c11_161, %c0_162] : memref<32x64xf32, #tpu.memory_space<vmem>>, vector<1x64xf32>
        tpu.vector_store %arg7[%c11_161, %c0_162], %515 {strides = array<i32>} : memref<32x64xf32, #tpu.memory_space<vmem>>, vector<1x64xf32>,
        %517 = arith.mulf %514, %514 : vector<1x64xf32>
        %518 = arith.addf %476, %517 : vector<1x64xf32>
        %c11_163 = arith.constant 11 : index
        %c0_164 = arith.constant 0 : index
        %c0_165 = arith.constant 0 : index
        %519 = vector.load %arg2[%c11_163, %c0_164, %c0_165] : memref<32x32x1xf32, #tpu.memory_space<vmem>>, vector<1x32x1xf32>
        %520 = vector.shape_cast %519 : vector<1x32x1xf32> to vector<32x1xf32>
        %521 = vector.broadcast %520 : vector<32x1xf32> to vector<32x64xf32>
        %522 = vector.broadcast %514 : vector<1x64xf32> to vector<32x64xf32>
        %523 = arith.mulf %521, %522 : vector<32x64xf32>
        %524 = arith.addf %482, %523 : vector<32x64xf32>
        %525 = vector.extract_strided_slice %17 {offsets = [12, 0], sizes = [1, 64], strides = [1, 1]} : vector<32x64xf32> to vector<1x64xf32>
        %526 = vector.extract_strided_slice %524 {offsets = [12, 0], sizes = [1, 64], strides = [1, 1]} : vector<32x64xf32> to vector<1x64xf32>
        %527 = arith.mulf %526, %526 : vector<1x64xf32>
        %528 = vector.broadcast %527 : vector<1x64xf32> to vector<2x64xf32>
        %529 = arith.mulf %3, %528 : vector<2x64xf32>
        %cst_166 = arith.constant dense<0.000000e+00> : vector<2xf32>
        %530 = vector.multi_reduction <add>, %529, %cst_166 [1] : vector<2x64xf32> to vector<2xf32>
        %531 = vector.shape_cast %530 : vector<2xf32> to vector<2x1xf32>
        %cst_167 = arith.constant 9.99999968E-21 : f32
        %532 = vector.broadcast %cst_167 : f32 to vector<2x1xf32>
        %533 = arith.cmpf ogt, %531, %532 : vector<2x1xf32>
        %cst_168 = arith.constant 1.000000e-30 : f32
        %534 = vector.broadcast %cst_168 : f32 to vector<2x1xf32>
        %535 = arith.maximumf %531, %534 : vector<2x1xf32>
        %536 = math.rsqrt %535 : vector<2x1xf32>
        %cst_169 = arith.constant 0.000000e+00 : f32
        %537 = vector.broadcast %cst_169 : f32 to vector<2x1xf32>
        %538 = arith.select %533, %536, %537 : vector<2x1xi1>, vector<2x1xf32>
        %539 = vector.extract_strided_slice %538 {offsets = [0, 0], sizes = [1, 1], strides = [1, 1]} : vector<2x1xf32> to vector<1x1xf32>
        %540 = vector.extract_strided_slice %3 {offsets = [0, 0], sizes = [1, 64], strides = [1, 1]} : vector<2x64xf32> to vector<1x64xf32>
        %541 = vector.broadcast %539 : vector<1x1xf32> to vector<1x64xf32>
        %542 = arith.mulf %541, %540 : vector<1x64xf32>
        %543 = vector.extract_strided_slice %538 {offsets = [1, 0], sizes = [1, 1], strides = [1, 1]} : vector<2x1xf32> to vector<1x1xf32>
        %544 = vector.extract_strided_slice %3 {offsets = [1, 0], sizes = [1, 64], strides = [1, 1]} : vector<2x64xf32> to vector<1x64xf32>
        %545 = vector.broadcast %543 : vector<1x1xf32> to vector<1x64xf32>
        %546 = arith.mulf %545, %544 : vector<1x64xf32>
        %547 = arith.addf %542, %546 : vector<1x64xf32>
        %548 = arith.mulf %526, %547 : vector<1x64xf32>
        %cst_170 = arith.constant 0.000000e+00 : f32
        %549 = vector.broadcast %cst_170 : f32 to vector<1x64xf32>
        %550 = arith.subf %549, %548 : vector<1x64xf32>
        %cst_171 = arith.constant 0.000000e+00 : f32
        %551 = vector.broadcast %cst_171 : f32 to vector<1x64xf32>
        %552 = arith.cmpf ogt, %547, %551 : vector<1x64xf32>
        %553 = arith.select %552, %550, %525 : vector<1x64xi1>, vector<1x64xf32>
        %c12 = arith.constant 12 : index
        %c0_172 = arith.constant 0 : index
        %554 = vector.load %arg3[%c12, %c0_172] : memref<32x64xf32, #tpu.memory_space<vmem>>, vector<1x64xf32>
        %555 = arith.subf %553, %525 : vector<1x64xf32>
        %556 = arith.mulf %554, %555 : vector<1x64xf32>
        %557 = arith.addf %525, %556 : vector<1x64xf32>
        %c12_173 = arith.constant 12 : index
        %c0_174 = arith.constant 0 : index
        %558 = vector.load %arg7[%c12_173, %c0_174] : memref<32x64xf32, #tpu.memory_space<vmem>>, vector<1x64xf32>
        tpu.vector_store %arg7[%c12_173, %c0_174], %557 {strides = array<i32>} : memref<32x64xf32, #tpu.memory_space<vmem>>, vector<1x64xf32>,
        %559 = arith.mulf %556, %556 : vector<1x64xf32>
        %560 = arith.addf %518, %559 : vector<1x64xf32>
        %c12_175 = arith.constant 12 : index
        %c0_176 = arith.constant 0 : index
        %c0_177 = arith.constant 0 : index
        %561 = vector.load %arg2[%c12_175, %c0_176, %c0_177] : memref<32x32x1xf32, #tpu.memory_space<vmem>>, vector<1x32x1xf32>
        %562 = vector.shape_cast %561 : vector<1x32x1xf32> to vector<32x1xf32>
        %563 = vector.broadcast %562 : vector<32x1xf32> to vector<32x64xf32>
        %564 = vector.broadcast %556 : vector<1x64xf32> to vector<32x64xf32>
        %565 = arith.mulf %563, %564 : vector<32x64xf32>
        %566 = arith.addf %524, %565 : vector<32x64xf32>
        %567 = vector.extract_strided_slice %17 {offsets = [13, 0], sizes = [1, 64], strides = [1, 1]} : vector<32x64xf32> to vector<1x64xf32>
        %568 = vector.extract_strided_slice %566 {offsets = [13, 0], sizes = [1, 64], strides = [1, 1]} : vector<32x64xf32> to vector<1x64xf32>
        %569 = arith.mulf %568, %568 : vector<1x64xf32>
        %570 = vector.broadcast %569 : vector<1x64xf32> to vector<2x64xf32>
        %571 = arith.mulf %3, %570 : vector<2x64xf32>
        %cst_178 = arith.constant dense<0.000000e+00> : vector<2xf32>
        %572 = vector.multi_reduction <add>, %571, %cst_178 [1] : vector<2x64xf32> to vector<2xf32>
        %573 = vector.shape_cast %572 : vector<2xf32> to vector<2x1xf32>
        %cst_179 = arith.constant 9.99999968E-21 : f32
        %574 = vector.broadcast %cst_179 : f32 to vector<2x1xf32>
        %575 = arith.cmpf ogt, %573, %574 : vector<2x1xf32>
        %cst_180 = arith.constant 1.000000e-30 : f32
        %576 = vector.broadcast %cst_180 : f32 to vector<2x1xf32>
        %577 = arith.maximumf %573, %576 : vector<2x1xf32>
        %578 = math.rsqrt %577 : vector<2x1xf32>
        %cst_181 = arith.constant 0.000000e+00 : f32
        %579 = vector.broadcast %cst_181 : f32 to vector<2x1xf32>
        %580 = arith.select %575, %578, %579 : vector<2x1xi1>, vector<2x1xf32>
        %581 = vector.extract_strided_slice %580 {offsets = [0, 0], sizes = [1, 1], strides = [1, 1]} : vector<2x1xf32> to vector<1x1xf32>
        %582 = vector.extract_strided_slice %3 {offsets = [0, 0], sizes = [1, 64], strides = [1, 1]} : vector<2x64xf32> to vector<1x64xf32>
        %583 = vector.broadcast %581 : vector<1x1xf32> to vector<1x64xf32>
        %584 = arith.mulf %583, %582 : vector<1x64xf32>
        %585 = vector.extract_strided_slice %580 {offsets = [1, 0], sizes = [1, 1], strides = [1, 1]} : vector<2x1xf32> to vector<1x1xf32>
        %586 = vector.extract_strided_slice %3 {offsets = [1, 0], sizes = [1, 64], strides = [1, 1]} : vector<2x64xf32> to vector<1x64xf32>
        %587 = vector.broadcast %585 : vector<1x1xf32> to vector<1x64xf32>
        %588 = arith.mulf %587, %586 : vector<1x64xf32>
        %589 = arith.addf %584, %588 : vector<1x64xf32>
        %590 = arith.mulf %568, %589 : vector<1x64xf32>
        %cst_182 = arith.constant 0.000000e+00 : f32
        %591 = vector.broadcast %cst_182 : f32 to vector<1x64xf32>
        %592 = arith.subf %591, %590 : vector<1x64xf32>
        %cst_183 = arith.constant 0.000000e+00 : f32
        %593 = vector.broadcast %cst_183 : f32 to vector<1x64xf32>
        %594 = arith.cmpf ogt, %589, %593 : vector<1x64xf32>
        %595 = arith.select %594, %592, %567 : vector<1x64xi1>, vector<1x64xf32>
        %c13 = arith.constant 13 : index
        %c0_184 = arith.constant 0 : index
        %596 = vector.load %arg3[%c13, %c0_184] : memref<32x64xf32, #tpu.memory_space<vmem>>, vector<1x64xf32>
        %597 = arith.subf %595, %567 : vector<1x64xf32>
        %598 = arith.mulf %596, %597 : vector<1x64xf32>
        %599 = arith.addf %567, %598 : vector<1x64xf32>
        %c13_185 = arith.constant 13 : index
        %c0_186 = arith.constant 0 : index
        %600 = vector.load %arg7[%c13_185, %c0_186] : memref<32x64xf32, #tpu.memory_space<vmem>>, vector<1x64xf32>
        tpu.vector_store %arg7[%c13_185, %c0_186], %599 {strides = array<i32>} : memref<32x64xf32, #tpu.memory_space<vmem>>, vector<1x64xf32>,
        %601 = arith.mulf %598, %598 : vector<1x64xf32>
        %602 = arith.addf %560, %601 : vector<1x64xf32>
        %c13_187 = arith.constant 13 : index
        %c0_188 = arith.constant 0 : index
        %c0_189 = arith.constant 0 : index
        %603 = vector.load %arg2[%c13_187, %c0_188, %c0_189] : memref<32x32x1xf32, #tpu.memory_space<vmem>>, vector<1x32x1xf32>
        %604 = vector.shape_cast %603 : vector<1x32x1xf32> to vector<32x1xf32>
        %605 = vector.broadcast %604 : vector<32x1xf32> to vector<32x64xf32>
        %606 = vector.broadcast %598 : vector<1x64xf32> to vector<32x64xf32>
        %607 = arith.mulf %605, %606 : vector<32x64xf32>
        %608 = arith.addf %566, %607 : vector<32x64xf32>
        %609 = vector.extract_strided_slice %17 {offsets = [14, 0], sizes = [1, 64], strides = [1, 1]} : vector<32x64xf32> to vector<1x64xf32>
        %610 = vector.extract_strided_slice %608 {offsets = [14, 0], sizes = [1, 64], strides = [1, 1]} : vector<32x64xf32> to vector<1x64xf32>
        %611 = arith.mulf %610, %610 : vector<1x64xf32>
        %612 = vector.broadcast %611 : vector<1x64xf32> to vector<2x64xf32>
        %613 = arith.mulf %3, %612 : vector<2x64xf32>
        %cst_190 = arith.constant dense<0.000000e+00> : vector<2xf32>
        %614 = vector.multi_reduction <add>, %613, %cst_190 [1] : vector<2x64xf32> to vector<2xf32>
        %615 = vector.shape_cast %614 : vector<2xf32> to vector<2x1xf32>
        %cst_191 = arith.constant 9.99999968E-21 : f32
        %616 = vector.broadcast %cst_191 : f32 to vector<2x1xf32>
        %617 = arith.cmpf ogt, %615, %616 : vector<2x1xf32>
        %cst_192 = arith.constant 1.000000e-30 : f32
        %618 = vector.broadcast %cst_192 : f32 to vector<2x1xf32>
        %619 = arith.maximumf %615, %618 : vector<2x1xf32>
        %620 = math.rsqrt %619 : vector<2x1xf32>
        %cst_193 = arith.constant 0.000000e+00 : f32
        %621 = vector.broadcast %cst_193 : f32 to vector<2x1xf32>
        %622 = arith.select %617, %620, %621 : vector<2x1xi1>, vector<2x1xf32>
        %623 = vector.extract_strided_slice %622 {offsets = [0, 0], sizes = [1, 1], strides = [1, 1]} : vector<2x1xf32> to vector<1x1xf32>
        %624 = vector.extract_strided_slice %3 {offsets = [0, 0], sizes = [1, 64], strides = [1, 1]} : vector<2x64xf32> to vector<1x64xf32>
        %625 = vector.broadcast %623 : vector<1x1xf32> to vector<1x64xf32>
        %626 = arith.mulf %625, %624 : vector<1x64xf32>
        %627 = vector.extract_strided_slice %622 {offsets = [1, 0], sizes = [1, 1], strides = [1, 1]} : vector<2x1xf32> to vector<1x1xf32>
        %628 = vector.extract_strided_slice %3 {offsets = [1, 0], sizes = [1, 64], strides = [1, 1]} : vector<2x64xf32> to vector<1x64xf32>
        %629 = vector.broadcast %627 : vector<1x1xf32> to vector<1x64xf32>
        %630 = arith.mulf %629, %628 : vector<1x64xf32>
        %631 = arith.addf %626, %630 : vector<1x64xf32>
        %632 = arith.mulf %610, %631 : vector<1x64xf32>
        %cst_194 = arith.constant 0.000000e+00 : f32
        %633 = vector.broadcast %cst_194 : f32 to vector<1x64xf32>
        %634 = arith.subf %633, %632 : vector<1x64xf32>
        %cst_195 = arith.constant 0.000000e+00 : f32
        %635 = vector.broadcast %cst_195 : f32 to vector<1x64xf32>
        %636 = arith.cmpf ogt, %631, %635 : vector<1x64xf32>
        %637 = arith.select %636, %634, %609 : vector<1x64xi1>, vector<1x64xf32>
        %c14 = arith.constant 14 : index
        %c0_196 = arith.constant 0 : index
        %638 = vector.load %arg3[%c14, %c0_196] : memref<32x64xf32, #tpu.memory_space<vmem>>, vector<1x64xf32>
        %639 = arith.subf %637, %609 : vector<1x64xf32>
        %640 = arith.mulf %638, %639 : vector<1x64xf32>
        %641 = arith.addf %609, %640 : vector<1x64xf32>
        %c14_197 = arith.constant 14 : index
        %c0_198 = arith.constant 0 : index
        %642 = vector.load %arg7[%c14_197, %c0_198] : memref<32x64xf32, #tpu.memory_space<vmem>>, vector<1x64xf32>
        tpu.vector_store %arg7[%c14_197, %c0_198], %641 {strides = array<i32>} : memref<32x64xf32, #tpu.memory_space<vmem>>, vector<1x64xf32>,
        %643 = arith.mulf %640, %640 : vector<1x64xf32>
        %644 = arith.addf %602, %643 : vector<1x64xf32>
        %c14_199 = arith.constant 14 : index
        %c0_200 = arith.constant 0 : index
        %c0_201 = arith.constant 0 : index
        %645 = vector.load %arg2[%c14_199, %c0_200, %c0_201] : memref<32x32x1xf32, #tpu.memory_space<vmem>>, vector<1x32x1xf32>
        %646 = vector.shape_cast %645 : vector<1x32x1xf32> to vector<32x1xf32>
        %647 = vector.broadcast %646 : vector<32x1xf32> to vector<32x64xf32>
        %648 = vector.broadcast %640 : vector<1x64xf32> to vector<32x64xf32>
        %649 = arith.mulf %647, %648 : vector<32x64xf32>
        %650 = arith.addf %608, %649 : vector<32x64xf32>
        %651 = vector.extract_strided_slice %17 {offsets = [15, 0], sizes = [1, 64], strides = [1, 1]} : vector<32x64xf32> to vector<1x64xf32>
        %652 = vector.extract_strided_slice %650 {offsets = [15, 0], sizes = [1, 64], strides = [1, 1]} : vector<32x64xf32> to vector<1x64xf32>
        %653 = arith.mulf %652, %652 : vector<1x64xf32>
        %654 = vector.broadcast %653 : vector<1x64xf32> to vector<2x64xf32>
        %655 = arith.mulf %3, %654 : vector<2x64xf32>
        %cst_202 = arith.constant dense<0.000000e+00> : vector<2xf32>
        %656 = vector.multi_reduction <add>, %655, %cst_202 [1] : vector<2x64xf32> to vector<2xf32>
        %657 = vector.shape_cast %656 : vector<2xf32> to vector<2x1xf32>
        %cst_203 = arith.constant 9.99999968E-21 : f32
        %658 = vector.broadcast %cst_203 : f32 to vector<2x1xf32>
        %659 = arith.cmpf ogt, %657, %658 : vector<2x1xf32>
        %cst_204 = arith.constant 1.000000e-30 : f32
        %660 = vector.broadcast %cst_204 : f32 to vector<2x1xf32>
        %661 = arith.maximumf %657, %660 : vector<2x1xf32>
        %662 = math.rsqrt %661 : vector<2x1xf32>
        %cst_205 = arith.constant 0.000000e+00 : f32
        %663 = vector.broadcast %cst_205 : f32 to vector<2x1xf32>
        %664 = arith.select %659, %662, %663 : vector<2x1xi1>, vector<2x1xf32>
        %665 = vector.extract_strided_slice %664 {offsets = [0, 0], sizes = [1, 1], strides = [1, 1]} : vector<2x1xf32> to vector<1x1xf32>
        %666 = vector.extract_strided_slice %3 {offsets = [0, 0], sizes = [1, 64], strides = [1, 1]} : vector<2x64xf32> to vector<1x64xf32>
        %667 = vector.broadcast %665 : vector<1x1xf32> to vector<1x64xf32>
        %668 = arith.mulf %667, %666 : vector<1x64xf32>
        %669 = vector.extract_strided_slice %664 {offsets = [1, 0], sizes = [1, 1], strides = [1, 1]} : vector<2x1xf32> to vector<1x1xf32>
        %670 = vector.extract_strided_slice %3 {offsets = [1, 0], sizes = [1, 64], strides = [1, 1]} : vector<2x64xf32> to vector<1x64xf32>
        %671 = vector.broadcast %669 : vector<1x1xf32> to vector<1x64xf32>
        %672 = arith.mulf %671, %670 : vector<1x64xf32>
        %673 = arith.addf %668, %672 : vector<1x64xf32>
        %674 = arith.mulf %652, %673 : vector<1x64xf32>
        %cst_206 = arith.constant 0.000000e+00 : f32
        %675 = vector.broadcast %cst_206 : f32 to vector<1x64xf32>
        %676 = arith.subf %675, %674 : vector<1x64xf32>
        %cst_207 = arith.constant 0.000000e+00 : f32
        %677 = vector.broadcast %cst_207 : f32 to vector<1x64xf32>
        %678 = arith.cmpf ogt, %673, %677 : vector<1x64xf32>
        %679 = arith.select %678, %676, %651 : vector<1x64xi1>, vector<1x64xf32>
        %c15 = arith.constant 15 : index
        %c0_208 = arith.constant 0 : index
        %680 = vector.load %arg3[%c15, %c0_208] : memref<32x64xf32, #tpu.memory_space<vmem>>, vector<1x64xf32>
        %681 = arith.subf %679, %651 : vector<1x64xf32>
        %682 = arith.mulf %680, %681 : vector<1x64xf32>
        %683 = arith.addf %651, %682 : vector<1x64xf32>
        %c15_209 = arith.constant 15 : index
        %c0_210 = arith.constant 0 : index
        %684 = vector.load %arg7[%c15_209, %c0_210] : memref<32x64xf32, #tpu.memory_space<vmem>>, vector<1x64xf32>
        tpu.vector_store %arg7[%c15_209, %c0_210], %683 {strides = array<i32>} : memref<32x64xf32, #tpu.memory_space<vmem>>, vector<1x64xf32>,
        %685 = arith.mulf %682, %682 : vector<1x64xf32>
        %686 = arith.addf %644, %685 : vector<1x64xf32>
        %c15_211 = arith.constant 15 : index
        %c0_212 = arith.constant 0 : index
        %c0_213 = arith.constant 0 : index
        %687 = vector.load %arg2[%c15_211, %c0_212, %c0_213] : memref<32x32x1xf32, #tpu.memory_space<vmem>>, vector<1x32x1xf32>
        %688 = vector.shape_cast %687 : vector<1x32x1xf32> to vector<32x1xf32>
        %689 = vector.broadcast %688 : vector<32x1xf32> to vector<32x64xf32>
        %690 = vector.broadcast %682 : vector<1x64xf32> to vector<32x64xf32>
        %691 = arith.mulf %689, %690 : vector<32x64xf32>
        %692 = arith.addf %650, %691 : vector<32x64xf32>
        %693 = vector.extract_strided_slice %17 {offsets = [16, 0], sizes = [1, 64], strides = [1, 1]} : vector<32x64xf32> to vector<1x64xf32>
        %694 = vector.extract_strided_slice %692 {offsets = [16, 0], sizes = [1, 64], strides = [1, 1]} : vector<32x64xf32> to vector<1x64xf32>
        %695 = arith.mulf %694, %694 : vector<1x64xf32>
        %696 = vector.broadcast %695 : vector<1x64xf32> to vector<2x64xf32>
        %697 = arith.mulf %3, %696 : vector<2x64xf32>
        %cst_214 = arith.constant dense<0.000000e+00> : vector<2xf32>
        %698 = vector.multi_reduction <add>, %697, %cst_214 [1] : vector<2x64xf32> to vector<2xf32>
        %699 = vector.shape_cast %698 : vector<2xf32> to vector<2x1xf32>
        %cst_215 = arith.constant 9.99999968E-21 : f32
        %700 = vector.broadcast %cst_215 : f32 to vector<2x1xf32>
        %701 = arith.cmpf ogt, %699, %700 : vector<2x1xf32>
        %cst_216 = arith.constant 1.000000e-30 : f32
        %702 = vector.broadcast %cst_216 : f32 to vector<2x1xf32>
        %703 = arith.maximumf %699, %702 : vector<2x1xf32>
        %704 = math.rsqrt %703 : vector<2x1xf32>
        %cst_217 = arith.constant 0.000000e+00 : f32
        %705 = vector.broadcast %cst_217 : f32 to vector<2x1xf32>
        %706 = arith.select %701, %704, %705 : vector<2x1xi1>, vector<2x1xf32>
        %707 = vector.extract_strided_slice %706 {offsets = [0, 0], sizes = [1, 1], strides = [1, 1]} : vector<2x1xf32> to vector<1x1xf32>
        %708 = vector.extract_strided_slice %3 {offsets = [0, 0], sizes = [1, 64], strides = [1, 1]} : vector<2x64xf32> to vector<1x64xf32>
        %709 = vector.broadcast %707 : vector<1x1xf32> to vector<1x64xf32>
        %710 = arith.mulf %709, %708 : vector<1x64xf32>
        %711 = vector.extract_strided_slice %706 {offsets = [1, 0], sizes = [1, 1], strides = [1, 1]} : vector<2x1xf32> to vector<1x1xf32>
        %712 = vector.extract_strided_slice %3 {offsets = [1, 0], sizes = [1, 64], strides = [1, 1]} : vector<2x64xf32> to vector<1x64xf32>
        %713 = vector.broadcast %711 : vector<1x1xf32> to vector<1x64xf32>
        %714 = arith.mulf %713, %712 : vector<1x64xf32>
        %715 = arith.addf %710, %714 : vector<1x64xf32>
        %716 = arith.mulf %694, %715 : vector<1x64xf32>
        %cst_218 = arith.constant 0.000000e+00 : f32
        %717 = vector.broadcast %cst_218 : f32 to vector<1x64xf32>
        %718 = arith.subf %717, %716 : vector<1x64xf32>
        %cst_219 = arith.constant 0.000000e+00 : f32
        %719 = vector.broadcast %cst_219 : f32 to vector<1x64xf32>
        %720 = arith.cmpf ogt, %715, %719 : vector<1x64xf32>
        %721 = arith.select %720, %718, %693 : vector<1x64xi1>, vector<1x64xf32>
        %c16 = arith.constant 16 : index
        %c0_220 = arith.constant 0 : index
        %722 = vector.load %arg3[%c16, %c0_220] : memref<32x64xf32, #tpu.memory_space<vmem>>, vector<1x64xf32>
        %723 = arith.subf %721, %693 : vector<1x64xf32>
        %724 = arith.mulf %722, %723 : vector<1x64xf32>
        %725 = arith.addf %693, %724 : vector<1x64xf32>
        %c16_221 = arith.constant 16 : index
        %c0_222 = arith.constant 0 : index
        %726 = vector.load %arg7[%c16_221, %c0_222] : memref<32x64xf32, #tpu.memory_space<vmem>>, vector<1x64xf32>
        tpu.vector_store %arg7[%c16_221, %c0_222], %725 {strides = array<i32>} : memref<32x64xf32, #tpu.memory_space<vmem>>, vector<1x64xf32>,
        %727 = arith.mulf %724, %724 : vector<1x64xf32>
        %728 = arith.addf %686, %727 : vector<1x64xf32>
        %c16_223 = arith.constant 16 : index
        %c0_224 = arith.constant 0 : index
        %c0_225 = arith.constant 0 : index
        %729 = vector.load %arg2[%c16_223, %c0_224, %c0_225] : memref<32x32x1xf32, #tpu.memory_space<vmem>>, vector<1x32x1xf32>
        %730 = vector.shape_cast %729 : vector<1x32x1xf32> to vector<32x1xf32>
        %731 = vector.broadcast %730 : vector<32x1xf32> to vector<32x64xf32>
        %732 = vector.broadcast %724 : vector<1x64xf32> to vector<32x64xf32>
        %733 = arith.mulf %731, %732 : vector<32x64xf32>
        %734 = arith.addf %692, %733 : vector<32x64xf32>
        %735 = vector.extract_strided_slice %17 {offsets = [17, 0], sizes = [1, 64], strides = [1, 1]} : vector<32x64xf32> to vector<1x64xf32>
        %736 = vector.extract_strided_slice %734 {offsets = [17, 0], sizes = [1, 64], strides = [1, 1]} : vector<32x64xf32> to vector<1x64xf32>
        %737 = arith.mulf %736, %736 : vector<1x64xf32>
        %738 = vector.broadcast %737 : vector<1x64xf32> to vector<2x64xf32>
        %739 = arith.mulf %3, %738 : vector<2x64xf32>
        %cst_226 = arith.constant dense<0.000000e+00> : vector<2xf32>
        %740 = vector.multi_reduction <add>, %739, %cst_226 [1] : vector<2x64xf32> to vector<2xf32>
        %741 = vector.shape_cast %740 : vector<2xf32> to vector<2x1xf32>
        %cst_227 = arith.constant 9.99999968E-21 : f32
        %742 = vector.broadcast %cst_227 : f32 to vector<2x1xf32>
        %743 = arith.cmpf ogt, %741, %742 : vector<2x1xf32>
        %cst_228 = arith.constant 1.000000e-30 : f32
        %744 = vector.broadcast %cst_228 : f32 to vector<2x1xf32>
        %745 = arith.maximumf %741, %744 : vector<2x1xf32>
        %746 = math.rsqrt %745 : vector<2x1xf32>
        %cst_229 = arith.constant 0.000000e+00 : f32
        %747 = vector.broadcast %cst_229 : f32 to vector<2x1xf32>
        %748 = arith.select %743, %746, %747 : vector<2x1xi1>, vector<2x1xf32>
        %749 = vector.extract_strided_slice %748 {offsets = [0, 0], sizes = [1, 1], strides = [1, 1]} : vector<2x1xf32> to vector<1x1xf32>
        %750 = vector.extract_strided_slice %3 {offsets = [0, 0], sizes = [1, 64], strides = [1, 1]} : vector<2x64xf32> to vector<1x64xf32>
        %751 = vector.broadcast %749 : vector<1x1xf32> to vector<1x64xf32>
        %752 = arith.mulf %751, %750 : vector<1x64xf32>
        %753 = vector.extract_strided_slice %748 {offsets = [1, 0], sizes = [1, 1], strides = [1, 1]} : vector<2x1xf32> to vector<1x1xf32>
        %754 = vector.extract_strided_slice %3 {offsets = [1, 0], sizes = [1, 64], strides = [1, 1]} : vector<2x64xf32> to vector<1x64xf32>
        %755 = vector.broadcast %753 : vector<1x1xf32> to vector<1x64xf32>
        %756 = arith.mulf %755, %754 : vector<1x64xf32>
        %757 = arith.addf %752, %756 : vector<1x64xf32>
        %758 = arith.mulf %736, %757 : vector<1x64xf32>
        %cst_230 = arith.constant 0.000000e+00 : f32
        %759 = vector.broadcast %cst_230 : f32 to vector<1x64xf32>
        %760 = arith.subf %759, %758 : vector<1x64xf32>
        %cst_231 = arith.constant 0.000000e+00 : f32
        %761 = vector.broadcast %cst_231 : f32 to vector<1x64xf32>
        %762 = arith.cmpf ogt, %757, %761 : vector<1x64xf32>
        %763 = arith.select %762, %760, %735 : vector<1x64xi1>, vector<1x64xf32>
        %c17 = arith.constant 17 : index
        %c0_232 = arith.constant 0 : index
        %764 = vector.load %arg3[%c17, %c0_232] : memref<32x64xf32, #tpu.memory_space<vmem>>, vector<1x64xf32>
        %765 = arith.subf %763, %735 : vector<1x64xf32>
        %766 = arith.mulf %764, %765 : vector<1x64xf32>
        %767 = arith.addf %735, %766 : vector<1x64xf32>
        %c17_233 = arith.constant 17 : index
        %c0_234 = arith.constant 0 : index
        %768 = vector.load %arg7[%c17_233, %c0_234] : memref<32x64xf32, #tpu.memory_space<vmem>>, vector<1x64xf32>
        tpu.vector_store %arg7[%c17_233, %c0_234], %767 {strides = array<i32>} : memref<32x64xf32, #tpu.memory_space<vmem>>, vector<1x64xf32>,
        %769 = arith.mulf %766, %766 : vector<1x64xf32>
        %770 = arith.addf %728, %769 : vector<1x64xf32>
        %c17_235 = arith.constant 17 : index
        %c0_236 = arith.constant 0 : index
        %c0_237 = arith.constant 0 : index
        %771 = vector.load %arg2[%c17_235, %c0_236, %c0_237] : memref<32x32x1xf32, #tpu.memory_space<vmem>>, vector<1x32x1xf32>
        %772 = vector.shape_cast %771 : vector<1x32x1xf32> to vector<32x1xf32>
        %773 = vector.broadcast %772 : vector<32x1xf32> to vector<32x64xf32>
        %774 = vector.broadcast %766 : vector<1x64xf32> to vector<32x64xf32>
        %775 = arith.mulf %773, %774 : vector<32x64xf32>
        %776 = arith.addf %734, %775 : vector<32x64xf32>
        %777 = vector.extract_strided_slice %17 {offsets = [18, 0], sizes = [1, 64], strides = [1, 1]} : vector<32x64xf32> to vector<1x64xf32>
        %778 = vector.extract_strided_slice %776 {offsets = [18, 0], sizes = [1, 64], strides = [1, 1]} : vector<32x64xf32> to vector<1x64xf32>
        %779 = arith.mulf %778, %778 : vector<1x64xf32>
        %780 = vector.broadcast %779 : vector<1x64xf32> to vector<2x64xf32>
        %781 = arith.mulf %3, %780 : vector<2x64xf32>
        %cst_238 = arith.constant dense<0.000000e+00> : vector<2xf32>
        %782 = vector.multi_reduction <add>, %781, %cst_238 [1] : vector<2x64xf32> to vector<2xf32>
        %783 = vector.shape_cast %782 : vector<2xf32> to vector<2x1xf32>
        %cst_239 = arith.constant 9.99999968E-21 : f32
        %784 = vector.broadcast %cst_239 : f32 to vector<2x1xf32>
        %785 = arith.cmpf ogt, %783, %784 : vector<2x1xf32>
        %cst_240 = arith.constant 1.000000e-30 : f32
        %786 = vector.broadcast %cst_240 : f32 to vector<2x1xf32>
        %787 = arith.maximumf %783, %786 : vector<2x1xf32>
        %788 = math.rsqrt %787 : vector<2x1xf32>
        %cst_241 = arith.constant 0.000000e+00 : f32
        %789 = vector.broadcast %cst_241 : f32 to vector<2x1xf32>
        %790 = arith.select %785, %788, %789 : vector<2x1xi1>, vector<2x1xf32>
        %791 = vector.extract_strided_slice %790 {offsets = [0, 0], sizes = [1, 1], strides = [1, 1]} : vector<2x1xf32> to vector<1x1xf32>
        %792 = vector.extract_strided_slice %3 {offsets = [0, 0], sizes = [1, 64], strides = [1, 1]} : vector<2x64xf32> to vector<1x64xf32>
        %793 = vector.broadcast %791 : vector<1x1xf32> to vector<1x64xf32>
        %794 = arith.mulf %793, %792 : vector<1x64xf32>
        %795 = vector.extract_strided_slice %790 {offsets = [1, 0], sizes = [1, 1], strides = [1, 1]} : vector<2x1xf32> to vector<1x1xf32>
        %796 = vector.extract_strided_slice %3 {offsets = [1, 0], sizes = [1, 64], strides = [1, 1]} : vector<2x64xf32> to vector<1x64xf32>
        %797 = vector.broadcast %795 : vector<1x1xf32> to vector<1x64xf32>
        %798 = arith.mulf %797, %796 : vector<1x64xf32>
        %799 = arith.addf %794, %798 : vector<1x64xf32>
        %800 = arith.mulf %778, %799 : vector<1x64xf32>
        %cst_242 = arith.constant 0.000000e+00 : f32
        %801 = vector.broadcast %cst_242 : f32 to vector<1x64xf32>
        %802 = arith.subf %801, %800 : vector<1x64xf32>
        %cst_243 = arith.constant 0.000000e+00 : f32
        %803 = vector.broadcast %cst_243 : f32 to vector<1x64xf32>
        %804 = arith.cmpf ogt, %799, %803 : vector<1x64xf32>
        %805 = arith.select %804, %802, %777 : vector<1x64xi1>, vector<1x64xf32>
        %c18 = arith.constant 18 : index
        %c0_244 = arith.constant 0 : index
        %806 = vector.load %arg3[%c18, %c0_244] : memref<32x64xf32, #tpu.memory_space<vmem>>, vector<1x64xf32>
        %807 = arith.subf %805, %777 : vector<1x64xf32>
        %808 = arith.mulf %806, %807 : vector<1x64xf32>
        %809 = arith.addf %777, %808 : vector<1x64xf32>
        %c18_245 = arith.constant 18 : index
        %c0_246 = arith.constant 0 : index
        %810 = vector.load %arg7[%c18_245, %c0_246] : memref<32x64xf32, #tpu.memory_space<vmem>>, vector<1x64xf32>
        tpu.vector_store %arg7[%c18_245, %c0_246], %809 {strides = array<i32>} : memref<32x64xf32, #tpu.memory_space<vmem>>, vector<1x64xf32>,
        %811 = arith.mulf %808, %808 : vector<1x64xf32>
        %812 = arith.addf %770, %811 : vector<1x64xf32>
        %c18_247 = arith.constant 18 : index
        %c0_248 = arith.constant 0 : index
        %c0_249 = arith.constant 0 : index
        %813 = vector.load %arg2[%c18_247, %c0_248, %c0_249] : memref<32x32x1xf32, #tpu.memory_space<vmem>>, vector<1x32x1xf32>
        %814 = vector.shape_cast %813 : vector<1x32x1xf32> to vector<32x1xf32>
        %815 = vector.broadcast %814 : vector<32x1xf32> to vector<32x64xf32>
        %816 = vector.broadcast %808 : vector<1x64xf32> to vector<32x64xf32>
        %817 = arith.mulf %815, %816 : vector<32x64xf32>
        %818 = arith.addf %776, %817 : vector<32x64xf32>
        %819 = vector.extract_strided_slice %17 {offsets = [19, 0], sizes = [1, 64], strides = [1, 1]} : vector<32x64xf32> to vector<1x64xf32>
        %820 = vector.extract_strided_slice %818 {offsets = [19, 0], sizes = [1, 64], strides = [1, 1]} : vector<32x64xf32> to vector<1x64xf32>
        %821 = arith.mulf %820, %820 : vector<1x64xf32>
        %822 = vector.broadcast %821 : vector<1x64xf32> to vector<2x64xf32>
        %823 = arith.mulf %3, %822 : vector<2x64xf32>
        %cst_250 = arith.constant dense<0.000000e+00> : vector<2xf32>
        %824 = vector.multi_reduction <add>, %823, %cst_250 [1] : vector<2x64xf32> to vector<2xf32>
        %825 = vector.shape_cast %824 : vector<2xf32> to vector<2x1xf32>
        %cst_251 = arith.constant 9.99999968E-21 : f32
        %826 = vector.broadcast %cst_251 : f32 to vector<2x1xf32>
        %827 = arith.cmpf ogt, %825, %826 : vector<2x1xf32>
        %cst_252 = arith.constant 1.000000e-30 : f32
        %828 = vector.broadcast %cst_252 : f32 to vector<2x1xf32>
        %829 = arith.maximumf %825, %828 : vector<2x1xf32>
        %830 = math.rsqrt %829 : vector<2x1xf32>
        %cst_253 = arith.constant 0.000000e+00 : f32
        %831 = vector.broadcast %cst_253 : f32 to vector<2x1xf32>
        %832 = arith.select %827, %830, %831 : vector<2x1xi1>, vector<2x1xf32>
        %833 = vector.extract_strided_slice %832 {offsets = [0, 0], sizes = [1, 1], strides = [1, 1]} : vector<2x1xf32> to vector<1x1xf32>
        %834 = vector.extract_strided_slice %3 {offsets = [0, 0], sizes = [1, 64], strides = [1, 1]} : vector<2x64xf32> to vector<1x64xf32>
        %835 = vector.broadcast %833 : vector<1x1xf32> to vector<1x64xf32>
        %836 = arith.mulf %835, %834 : vector<1x64xf32>
        %837 = vector.extract_strided_slice %832 {offsets = [1, 0], sizes = [1, 1], strides = [1, 1]} : vector<2x1xf32> to vector<1x1xf32>
        %838 = vector.extract_strided_slice %3 {offsets = [1, 0], sizes = [1, 64], strides = [1, 1]} : vector<2x64xf32> to vector<1x64xf32>
        %839 = vector.broadcast %837 : vector<1x1xf32> to vector<1x64xf32>
        %840 = arith.mulf %839, %838 : vector<1x64xf32>
        %841 = arith.addf %836, %840 : vector<1x64xf32>
        %842 = arith.mulf %820, %841 : vector<1x64xf32>
        %cst_254 = arith.constant 0.000000e+00 : f32
        %843 = vector.broadcast %cst_254 : f32 to vector<1x64xf32>
        %844 = arith.subf %843, %842 : vector<1x64xf32>
        %cst_255 = arith.constant 0.000000e+00 : f32
        %845 = vector.broadcast %cst_255 : f32 to vector<1x64xf32>
        %846 = arith.cmpf ogt, %841, %845 : vector<1x64xf32>
        %847 = arith.select %846, %844, %819 : vector<1x64xi1>, vector<1x64xf32>
        %c19 = arith.constant 19 : index
        %c0_256 = arith.constant 0 : index
        %848 = vector.load %arg3[%c19, %c0_256] : memref<32x64xf32, #tpu.memory_space<vmem>>, vector<1x64xf32>
        %849 = arith.subf %847, %819 : vector<1x64xf32>
        %850 = arith.mulf %848, %849 : vector<1x64xf32>
        %851 = arith.addf %819, %850 : vector<1x64xf32>
        %c19_257 = arith.constant 19 : index
        %c0_258 = arith.constant 0 : index
        %852 = vector.load %arg7[%c19_257, %c0_258] : memref<32x64xf32, #tpu.memory_space<vmem>>, vector<1x64xf32>
        tpu.vector_store %arg7[%c19_257, %c0_258], %851 {strides = array<i32>} : memref<32x64xf32, #tpu.memory_space<vmem>>, vector<1x64xf32>,
        %853 = arith.mulf %850, %850 : vector<1x64xf32>
        %854 = arith.addf %812, %853 : vector<1x64xf32>
        %c19_259 = arith.constant 19 : index
        %c0_260 = arith.constant 0 : index
        %c0_261 = arith.constant 0 : index
        %855 = vector.load %arg2[%c19_259, %c0_260, %c0_261] : memref<32x32x1xf32, #tpu.memory_space<vmem>>, vector<1x32x1xf32>
        %856 = vector.shape_cast %855 : vector<1x32x1xf32> to vector<32x1xf32>
        %857 = vector.broadcast %856 : vector<32x1xf32> to vector<32x64xf32>
        %858 = vector.broadcast %850 : vector<1x64xf32> to vector<32x64xf32>
        %859 = arith.mulf %857, %858 : vector<32x64xf32>
        %860 = arith.addf %818, %859 : vector<32x64xf32>
        %861 = vector.extract_strided_slice %17 {offsets = [20, 0], sizes = [1, 64], strides = [1, 1]} : vector<32x64xf32> to vector<1x64xf32>
        %862 = vector.extract_strided_slice %860 {offsets = [20, 0], sizes = [1, 64], strides = [1, 1]} : vector<32x64xf32> to vector<1x64xf32>
        %863 = arith.mulf %862, %862 : vector<1x64xf32>
        %864 = vector.broadcast %863 : vector<1x64xf32> to vector<2x64xf32>
        %865 = arith.mulf %3, %864 : vector<2x64xf32>
        %cst_262 = arith.constant dense<0.000000e+00> : vector<2xf32>
        %866 = vector.multi_reduction <add>, %865, %cst_262 [1] : vector<2x64xf32> to vector<2xf32>
        %867 = vector.shape_cast %866 : vector<2xf32> to vector<2x1xf32>
        %cst_263 = arith.constant 9.99999968E-21 : f32
        %868 = vector.broadcast %cst_263 : f32 to vector<2x1xf32>
        %869 = arith.cmpf ogt, %867, %868 : vector<2x1xf32>
        %cst_264 = arith.constant 1.000000e-30 : f32
        %870 = vector.broadcast %cst_264 : f32 to vector<2x1xf32>
        %871 = arith.maximumf %867, %870 : vector<2x1xf32>
        %872 = math.rsqrt %871 : vector<2x1xf32>
        %cst_265 = arith.constant 0.000000e+00 : f32
        %873 = vector.broadcast %cst_265 : f32 to vector<2x1xf32>
        %874 = arith.select %869, %872, %873 : vector<2x1xi1>, vector<2x1xf32>
        %875 = vector.extract_strided_slice %874 {offsets = [0, 0], sizes = [1, 1], strides = [1, 1]} : vector<2x1xf32> to vector<1x1xf32>
        %876 = vector.extract_strided_slice %3 {offsets = [0, 0], sizes = [1, 64], strides = [1, 1]} : vector<2x64xf32> to vector<1x64xf32>
        %877 = vector.broadcast %875 : vector<1x1xf32> to vector<1x64xf32>
        %878 = arith.mulf %877, %876 : vector<1x64xf32>
        %879 = vector.extract_strided_slice %874 {offsets = [1, 0], sizes = [1, 1], strides = [1, 1]} : vector<2x1xf32> to vector<1x1xf32>
        %880 = vector.extract_strided_slice %3 {offsets = [1, 0], sizes = [1, 64], strides = [1, 1]} : vector<2x64xf32> to vector<1x64xf32>
        %881 = vector.broadcast %879 : vector<1x1xf32> to vector<1x64xf32>
        %882 = arith.mulf %881, %880 : vector<1x64xf32>
        %883 = arith.addf %878, %882 : vector<1x64xf32>
        %884 = arith.mulf %862, %883 : vector<1x64xf32>
        %cst_266 = arith.constant 0.000000e+00 : f32
        %885 = vector.broadcast %cst_266 : f32 to vector<1x64xf32>
        %886 = arith.subf %885, %884 : vector<1x64xf32>
        %cst_267 = arith.constant 0.000000e+00 : f32
        %887 = vector.broadcast %cst_267 : f32 to vector<1x64xf32>
        %888 = arith.cmpf ogt, %883, %887 : vector<1x64xf32>
        %889 = arith.select %888, %886, %861 : vector<1x64xi1>, vector<1x64xf32>
        %c20 = arith.constant 20 : index
        %c0_268 = arith.constant 0 : index
        %890 = vector.load %arg3[%c20, %c0_268] : memref<32x64xf32, #tpu.memory_space<vmem>>, vector<1x64xf32>
        %891 = arith.subf %889, %861 : vector<1x64xf32>
        %892 = arith.mulf %890, %891 : vector<1x64xf32>
        %893 = arith.addf %861, %892 : vector<1x64xf32>
        %c20_269 = arith.constant 20 : index
        %c0_270 = arith.constant 0 : index
        %894 = vector.load %arg7[%c20_269, %c0_270] : memref<32x64xf32, #tpu.memory_space<vmem>>, vector<1x64xf32>
        tpu.vector_store %arg7[%c20_269, %c0_270], %893 {strides = array<i32>} : memref<32x64xf32, #tpu.memory_space<vmem>>, vector<1x64xf32>,
        %895 = arith.mulf %892, %892 : vector<1x64xf32>
        %896 = arith.addf %854, %895 : vector<1x64xf32>
        %c20_271 = arith.constant 20 : index
        %c0_272 = arith.constant 0 : index
        %c0_273 = arith.constant 0 : index
        %897 = vector.load %arg2[%c20_271, %c0_272, %c0_273] : memref<32x32x1xf32, #tpu.memory_space<vmem>>, vector<1x32x1xf32>
        %898 = vector.shape_cast %897 : vector<1x32x1xf32> to vector<32x1xf32>
        %899 = vector.broadcast %898 : vector<32x1xf32> to vector<32x64xf32>
        %900 = vector.broadcast %892 : vector<1x64xf32> to vector<32x64xf32>
        %901 = arith.mulf %899, %900 : vector<32x64xf32>
        %902 = arith.addf %860, %901 : vector<32x64xf32>
        %903 = vector.extract_strided_slice %17 {offsets = [21, 0], sizes = [1, 64], strides = [1, 1]} : vector<32x64xf32> to vector<1x64xf32>
        %904 = vector.extract_strided_slice %902 {offsets = [21, 0], sizes = [1, 64], strides = [1, 1]} : vector<32x64xf32> to vector<1x64xf32>
        %905 = arith.mulf %904, %904 : vector<1x64xf32>
        %906 = vector.broadcast %905 : vector<1x64xf32> to vector<2x64xf32>
        %907 = arith.mulf %3, %906 : vector<2x64xf32>
        %cst_274 = arith.constant dense<0.000000e+00> : vector<2xf32>
        %908 = vector.multi_reduction <add>, %907, %cst_274 [1] : vector<2x64xf32> to vector<2xf32>
        %909 = vector.shape_cast %908 : vector<2xf32> to vector<2x1xf32>
        %cst_275 = arith.constant 9.99999968E-21 : f32
        %910 = vector.broadcast %cst_275 : f32 to vector<2x1xf32>
        %911 = arith.cmpf ogt, %909, %910 : vector<2x1xf32>
        %cst_276 = arith.constant 1.000000e-30 : f32
        %912 = vector.broadcast %cst_276 : f32 to vector<2x1xf32>
        %913 = arith.maximumf %909, %912 : vector<2x1xf32>
        %914 = math.rsqrt %913 : vector<2x1xf32>
        %cst_277 = arith.constant 0.000000e+00 : f32
        %915 = vector.broadcast %cst_277 : f32 to vector<2x1xf32>
        %916 = arith.select %911, %914, %915 : vector<2x1xi1>, vector<2x1xf32>
        %917 = vector.extract_strided_slice %916 {offsets = [0, 0], sizes = [1, 1], strides = [1, 1]} : vector<2x1xf32> to vector<1x1xf32>
        %918 = vector.extract_strided_slice %3 {offsets = [0, 0], sizes = [1, 64], strides = [1, 1]} : vector<2x64xf32> to vector<1x64xf32>
        %919 = vector.broadcast %917 : vector<1x1xf32> to vector<1x64xf32>
        %920 = arith.mulf %919, %918 : vector<1x64xf32>
        %921 = vector.extract_strided_slice %916 {offsets = [1, 0], sizes = [1, 1], strides = [1, 1]} : vector<2x1xf32> to vector<1x1xf32>
        %922 = vector.extract_strided_slice %3 {offsets = [1, 0], sizes = [1, 64], strides = [1, 1]} : vector<2x64xf32> to vector<1x64xf32>
        %923 = vector.broadcast %921 : vector<1x1xf32> to vector<1x64xf32>
        %924 = arith.mulf %923, %922 : vector<1x64xf32>
        %925 = arith.addf %920, %924 : vector<1x64xf32>
        %926 = arith.mulf %904, %925 : vector<1x64xf32>
        %cst_278 = arith.constant 0.000000e+00 : f32
        %927 = vector.broadcast %cst_278 : f32 to vector<1x64xf32>
        %928 = arith.subf %927, %926 : vector<1x64xf32>
        %cst_279 = arith.constant 0.000000e+00 : f32
        %929 = vector.broadcast %cst_279 : f32 to vector<1x64xf32>
        %930 = arith.cmpf ogt, %925, %929 : vector<1x64xf32>
        %931 = arith.select %930, %928, %903 : vector<1x64xi1>, vector<1x64xf32>
        %c21 = arith.constant 21 : index
        %c0_280 = arith.constant 0 : index
        %932 = vector.load %arg3[%c21, %c0_280] : memref<32x64xf32, #tpu.memory_space<vmem>>, vector<1x64xf32>
        %933 = arith.subf %931, %903 : vector<1x64xf32>
        %934 = arith.mulf %932, %933 : vector<1x64xf32>
        %935 = arith.addf %903, %934 : vector<1x64xf32>
        %c21_281 = arith.constant 21 : index
        %c0_282 = arith.constant 0 : index
        %936 = vector.load %arg7[%c21_281, %c0_282] : memref<32x64xf32, #tpu.memory_space<vmem>>, vector<1x64xf32>
        tpu.vector_store %arg7[%c21_281, %c0_282], %935 {strides = array<i32>} : memref<32x64xf32, #tpu.memory_space<vmem>>, vector<1x64xf32>,
        %937 = arith.mulf %934, %934 : vector<1x64xf32>
        %938 = arith.addf %896, %937 : vector<1x64xf32>
        %c21_283 = arith.constant 21 : index
        %c0_284 = arith.constant 0 : index
        %c0_285 = arith.constant 0 : index
        %939 = vector.load %arg2[%c21_283, %c0_284, %c0_285] : memref<32x32x1xf32, #tpu.memory_space<vmem>>, vector<1x32x1xf32>
        %940 = vector.shape_cast %939 : vector<1x32x1xf32> to vector<32x1xf32>
        %941 = vector.broadcast %940 : vector<32x1xf32> to vector<32x64xf32>
        %942 = vector.broadcast %934 : vector<1x64xf32> to vector<32x64xf32>
        %943 = arith.mulf %941, %942 : vector<32x64xf32>
        %944 = arith.addf %902, %943 : vector<32x64xf32>
        %945 = vector.extract_strided_slice %17 {offsets = [22, 0], sizes = [1, 64], strides = [1, 1]} : vector<32x64xf32> to vector<1x64xf32>
        %946 = vector.extract_strided_slice %944 {offsets = [22, 0], sizes = [1, 64], strides = [1, 1]} : vector<32x64xf32> to vector<1x64xf32>
        %947 = arith.mulf %946, %946 : vector<1x64xf32>
        %948 = vector.broadcast %947 : vector<1x64xf32> to vector<2x64xf32>
        %949 = arith.mulf %3, %948 : vector<2x64xf32>
        %cst_286 = arith.constant dense<0.000000e+00> : vector<2xf32>
        %950 = vector.multi_reduction <add>, %949, %cst_286 [1] : vector<2x64xf32> to vector<2xf32>
        %951 = vector.shape_cast %950 : vector<2xf32> to vector<2x1xf32>
        %cst_287 = arith.constant 9.99999968E-21 : f32
        %952 = vector.broadcast %cst_287 : f32 to vector<2x1xf32>
        %953 = arith.cmpf ogt, %951, %952 : vector<2x1xf32>
        %cst_288 = arith.constant 1.000000e-30 : f32
        %954 = vector.broadcast %cst_288 : f32 to vector<2x1xf32>
        %955 = arith.maximumf %951, %954 : vector<2x1xf32>
        %956 = math.rsqrt %955 : vector<2x1xf32>
        %cst_289 = arith.constant 0.000000e+00 : f32
        %957 = vector.broadcast %cst_289 : f32 to vector<2x1xf32>
        %958 = arith.select %953, %956, %957 : vector<2x1xi1>, vector<2x1xf32>
        %959 = vector.extract_strided_slice %958 {offsets = [0, 0], sizes = [1, 1], strides = [1, 1]} : vector<2x1xf32> to vector<1x1xf32>
        %960 = vector.extract_strided_slice %3 {offsets = [0, 0], sizes = [1, 64], strides = [1, 1]} : vector<2x64xf32> to vector<1x64xf32>
        %961 = vector.broadcast %959 : vector<1x1xf32> to vector<1x64xf32>
        %962 = arith.mulf %961, %960 : vector<1x64xf32>
        %963 = vector.extract_strided_slice %958 {offsets = [1, 0], sizes = [1, 1], strides = [1, 1]} : vector<2x1xf32> to vector<1x1xf32>
        %964 = vector.extract_strided_slice %3 {offsets = [1, 0], sizes = [1, 64], strides = [1, 1]} : vector<2x64xf32> to vector<1x64xf32>
        %965 = vector.broadcast %963 : vector<1x1xf32> to vector<1x64xf32>
        %966 = arith.mulf %965, %964 : vector<1x64xf32>
        %967 = arith.addf %962, %966 : vector<1x64xf32>
        %968 = arith.mulf %946, %967 : vector<1x64xf32>
        %cst_290 = arith.constant 0.000000e+00 : f32
        %969 = vector.broadcast %cst_290 : f32 to vector<1x64xf32>
        %970 = arith.subf %969, %968 : vector<1x64xf32>
        %cst_291 = arith.constant 0.000000e+00 : f32
        %971 = vector.broadcast %cst_291 : f32 to vector<1x64xf32>
        %972 = arith.cmpf ogt, %967, %971 : vector<1x64xf32>
        %973 = arith.select %972, %970, %945 : vector<1x64xi1>, vector<1x64xf32>
        %c22 = arith.constant 22 : index
        %c0_292 = arith.constant 0 : index
        %974 = vector.load %arg3[%c22, %c0_292] : memref<32x64xf32, #tpu.memory_space<vmem>>, vector<1x64xf32>
        %975 = arith.subf %973, %945 : vector<1x64xf32>
        %976 = arith.mulf %974, %975 : vector<1x64xf32>
        %977 = arith.addf %945, %976 : vector<1x64xf32>
        %c22_293 = arith.constant 22 : index
        %c0_294 = arith.constant 0 : index
        %978 = vector.load %arg7[%c22_293, %c0_294] : memref<32x64xf32, #tpu.memory_space<vmem>>, vector<1x64xf32>
        tpu.vector_store %arg7[%c22_293, %c0_294], %977 {strides = array<i32>} : memref<32x64xf32, #tpu.memory_space<vmem>>, vector<1x64xf32>,
        %979 = arith.mulf %976, %976 : vector<1x64xf32>
        %980 = arith.addf %938, %979 : vector<1x64xf32>
        %c22_295 = arith.constant 22 : index
        %c0_296 = arith.constant 0 : index
        %c0_297 = arith.constant 0 : index
        %981 = vector.load %arg2[%c22_295, %c0_296, %c0_297] : memref<32x32x1xf32, #tpu.memory_space<vmem>>, vector<1x32x1xf32>
        %982 = vector.shape_cast %981 : vector<1x32x1xf32> to vector<32x1xf32>
        %983 = vector.broadcast %982 : vector<32x1xf32> to vector<32x64xf32>
        %984 = vector.broadcast %976 : vector<1x64xf32> to vector<32x64xf32>
        %985 = arith.mulf %983, %984 : vector<32x64xf32>
        %986 = arith.addf %944, %985 : vector<32x64xf32>
        %987 = vector.extract_strided_slice %17 {offsets = [23, 0], sizes = [1, 64], strides = [1, 1]} : vector<32x64xf32> to vector<1x64xf32>
        %988 = vector.extract_strided_slice %986 {offsets = [23, 0], sizes = [1, 64], strides = [1, 1]} : vector<32x64xf32> to vector<1x64xf32>
        %989 = arith.mulf %988, %988 : vector<1x64xf32>
        %990 = vector.broadcast %989 : vector<1x64xf32> to vector<2x64xf32>
        %991 = arith.mulf %3, %990 : vector<2x64xf32>
        %cst_298 = arith.constant dense<0.000000e+00> : vector<2xf32>
        %992 = vector.multi_reduction <add>, %991, %cst_298 [1] : vector<2x64xf32> to vector<2xf32>
        %993 = vector.shape_cast %992 : vector<2xf32> to vector<2x1xf32>
        %cst_299 = arith.constant 9.99999968E-21 : f32
        %994 = vector.broadcast %cst_299 : f32 to vector<2x1xf32>
        %995 = arith.cmpf ogt, %993, %994 : vector<2x1xf32>
        %cst_300 = arith.constant 1.000000e-30 : f32
        %996 = vector.broadcast %cst_300 : f32 to vector<2x1xf32>
        %997 = arith.maximumf %993, %996 : vector<2x1xf32>
        %998 = math.rsqrt %997 : vector<2x1xf32>
        %cst_301 = arith.constant 0.000000e+00 : f32
        %999 = vector.broadcast %cst_301 : f32 to vector<2x1xf32>
        %1000 = arith.select %995, %998, %999 : vector<2x1xi1>, vector<2x1xf32>
        %1001 = vector.extract_strided_slice %1000 {offsets = [0, 0], sizes = [1, 1], strides = [1, 1]} : vector<2x1xf32> to vector<1x1xf32>
        %1002 = vector.extract_strided_slice %3 {offsets = [0, 0], sizes = [1, 64], strides = [1, 1]} : vector<2x64xf32> to vector<1x64xf32>
        %1003 = vector.broadcast %1001 : vector<1x1xf32> to vector<1x64xf32>
        %1004 = arith.mulf %1003, %1002 : vector<1x64xf32>
        %1005 = vector.extract_strided_slice %1000 {offsets = [1, 0], sizes = [1, 1], strides = [1, 1]} : vector<2x1xf32> to vector<1x1xf32>
        %1006 = vector.extract_strided_slice %3 {offsets = [1, 0], sizes = [1, 64], strides = [1, 1]} : vector<2x64xf32> to vector<1x64xf32>
        %1007 = vector.broadcast %1005 : vector<1x1xf32> to vector<1x64xf32>
        %1008 = arith.mulf %1007, %1006 : vector<1x64xf32>
        %1009 = arith.addf %1004, %1008 : vector<1x64xf32>
        %1010 = arith.mulf %988, %1009 : vector<1x64xf32>
        %cst_302 = arith.constant 0.000000e+00 : f32
        %1011 = vector.broadcast %cst_302 : f32 to vector<1x64xf32>
        %1012 = arith.subf %1011, %1010 : vector<1x64xf32>
        %cst_303 = arith.constant 0.000000e+00 : f32
        %1013 = vector.broadcast %cst_303 : f32 to vector<1x64xf32>
        %1014 = arith.cmpf ogt, %1009, %1013 : vector<1x64xf32>
        %1015 = arith.select %1014, %1012, %987 : vector<1x64xi1>, vector<1x64xf32>
        %c23 = arith.constant 23 : index
        %c0_304 = arith.constant 0 : index
        %1016 = vector.load %arg3[%c23, %c0_304] : memref<32x64xf32, #tpu.memory_space<vmem>>, vector<1x64xf32>
        %1017 = arith.subf %1015, %987 : vector<1x64xf32>
        %1018 = arith.mulf %1016, %1017 : vector<1x64xf32>
        %1019 = arith.addf %987, %1018 : vector<1x64xf32>
        %c23_305 = arith.constant 23 : index
        %c0_306 = arith.constant 0 : index
        %1020 = vector.load %arg7[%c23_305, %c0_306] : memref<32x64xf32, #tpu.memory_space<vmem>>, vector<1x64xf32>
        tpu.vector_store %arg7[%c23_305, %c0_306], %1019 {strides = array<i32>} : memref<32x64xf32, #tpu.memory_space<vmem>>, vector<1x64xf32>,
        %1021 = arith.mulf %1018, %1018 : vector<1x64xf32>
        %1022 = arith.addf %980, %1021 : vector<1x64xf32>
        %c23_307 = arith.constant 23 : index
        %c0_308 = arith.constant 0 : index
        %c0_309 = arith.constant 0 : index
        %1023 = vector.load %arg2[%c23_307, %c0_308, %c0_309] : memref<32x32x1xf32, #tpu.memory_space<vmem>>, vector<1x32x1xf32>
        %1024 = vector.shape_cast %1023 : vector<1x32x1xf32> to vector<32x1xf32>
        %1025 = vector.broadcast %1024 : vector<32x1xf32> to vector<32x64xf32>
        %1026 = vector.broadcast %1018 : vector<1x64xf32> to vector<32x64xf32>
        %1027 = arith.mulf %1025, %1026 : vector<32x64xf32>
        %1028 = arith.addf %986, %1027 : vector<32x64xf32>
        %1029 = vector.extract_strided_slice %17 {offsets = [24, 0], sizes = [1, 64], strides = [1, 1]} : vector<32x64xf32> to vector<1x64xf32>
        %1030 = vector.extract_strided_slice %1028 {offsets = [24, 0], sizes = [1, 64], strides = [1, 1]} : vector<32x64xf32> to vector<1x64xf32>
        %1031 = arith.mulf %1030, %1030 : vector<1x64xf32>
        %1032 = vector.broadcast %1031 : vector<1x64xf32> to vector<2x64xf32>
        %1033 = arith.mulf %3, %1032 : vector<2x64xf32>
        %cst_310 = arith.constant dense<0.000000e+00> : vector<2xf32>
        %1034 = vector.multi_reduction <add>, %1033, %cst_310 [1] : vector<2x64xf32> to vector<2xf32>
        %1035 = vector.shape_cast %1034 : vector<2xf32> to vector<2x1xf32>
        %cst_311 = arith.constant 9.99999968E-21 : f32
        %1036 = vector.broadcast %cst_311 : f32 to vector<2x1xf32>
        %1037 = arith.cmpf ogt, %1035, %1036 : vector<2x1xf32>
        %cst_312 = arith.constant 1.000000e-30 : f32
        %1038 = vector.broadcast %cst_312 : f32 to vector<2x1xf32>
        %1039 = arith.maximumf %1035, %1038 : vector<2x1xf32>
        %1040 = math.rsqrt %1039 : vector<2x1xf32>
        %cst_313 = arith.constant 0.000000e+00 : f32
        %1041 = vector.broadcast %cst_313 : f32 to vector<2x1xf32>
        %1042 = arith.select %1037, %1040, %1041 : vector<2x1xi1>, vector<2x1xf32>
        %1043 = vector.extract_strided_slice %1042 {offsets = [0, 0], sizes = [1, 1], strides = [1, 1]} : vector<2x1xf32> to vector<1x1xf32>
        %1044 = vector.extract_strided_slice %3 {offsets = [0, 0], sizes = [1, 64], strides = [1, 1]} : vector<2x64xf32> to vector<1x64xf32>
        %1045 = vector.broadcast %1043 : vector<1x1xf32> to vector<1x64xf32>
        %1046 = arith.mulf %1045, %1044 : vector<1x64xf32>
        %1047 = vector.extract_strided_slice %1042 {offsets = [1, 0], sizes = [1, 1], strides = [1, 1]} : vector<2x1xf32> to vector<1x1xf32>
        %1048 = vector.extract_strided_slice %3 {offsets = [1, 0], sizes = [1, 64], strides = [1, 1]} : vector<2x64xf32> to vector<1x64xf32>
        %1049 = vector.broadcast %1047 : vector<1x1xf32> to vector<1x64xf32>
        %1050 = arith.mulf %1049, %1048 : vector<1x64xf32>
        %1051 = arith.addf %1046, %1050 : vector<1x64xf32>
        %1052 = arith.mulf %1030, %1051 : vector<1x64xf32>
        %cst_314 = arith.constant 0.000000e+00 : f32
        %1053 = vector.broadcast %cst_314 : f32 to vector<1x64xf32>
        %1054 = arith.subf %1053, %1052 : vector<1x64xf32>
        %cst_315 = arith.constant 0.000000e+00 : f32
        %1055 = vector.broadcast %cst_315 : f32 to vector<1x64xf32>
        %1056 = arith.cmpf ogt, %1051, %1055 : vector<1x64xf32>
        %1057 = arith.select %1056, %1054, %1029 : vector<1x64xi1>, vector<1x64xf32>
        %c24 = arith.constant 24 : index
        %c0_316 = arith.constant 0 : index
        %1058 = vector.load %arg3[%c24, %c0_316] : memref<32x64xf32, #tpu.memory_space<vmem>>, vector<1x64xf32>
        %1059 = arith.subf %1057, %1029 : vector<1x64xf32>
        %1060 = arith.mulf %1058, %1059 : vector<1x64xf32>
        %1061 = arith.addf %1029, %1060 : vector<1x64xf32>
        %c24_317 = arith.constant 24 : index
        %c0_318 = arith.constant 0 : index
        %1062 = vector.load %arg7[%c24_317, %c0_318] : memref<32x64xf32, #tpu.memory_space<vmem>>, vector<1x64xf32>
        tpu.vector_store %arg7[%c24_317, %c0_318], %1061 {strides = array<i32>} : memref<32x64xf32, #tpu.memory_space<vmem>>, vector<1x64xf32>,
        %1063 = arith.mulf %1060, %1060 : vector<1x64xf32>
        %1064 = arith.addf %1022, %1063 : vector<1x64xf32>
        %c24_319 = arith.constant 24 : index
        %c0_320 = arith.constant 0 : index
        %c0_321 = arith.constant 0 : index
        %1065 = vector.load %arg2[%c24_319, %c0_320, %c0_321] : memref<32x32x1xf32, #tpu.memory_space<vmem>>, vector<1x32x1xf32>
        %1066 = vector.shape_cast %1065 : vector<1x32x1xf32> to vector<32x1xf32>
        %1067 = vector.broadcast %1066 : vector<32x1xf32> to vector<32x64xf32>
        %1068 = vector.broadcast %1060 : vector<1x64xf32> to vector<32x64xf32>
        %1069 = arith.mulf %1067, %1068 : vector<32x64xf32>
        %1070 = arith.addf %1028, %1069 : vector<32x64xf32>
        %1071 = vector.extract_strided_slice %17 {offsets = [25, 0], sizes = [1, 64], strides = [1, 1]} : vector<32x64xf32> to vector<1x64xf32>
        %1072 = vector.extract_strided_slice %1070 {offsets = [25, 0], sizes = [1, 64], strides = [1, 1]} : vector<32x64xf32> to vector<1x64xf32>
        %1073 = arith.mulf %1072, %1072 : vector<1x64xf32>
        %1074 = vector.broadcast %1073 : vector<1x64xf32> to vector<2x64xf32>
        %1075 = arith.mulf %3, %1074 : vector<2x64xf32>
        %cst_322 = arith.constant dense<0.000000e+00> : vector<2xf32>
        %1076 = vector.multi_reduction <add>, %1075, %cst_322 [1] : vector<2x64xf32> to vector<2xf32>
        %1077 = vector.shape_cast %1076 : vector<2xf32> to vector<2x1xf32>
        %cst_323 = arith.constant 9.99999968E-21 : f32
        %1078 = vector.broadcast %cst_323 : f32 to vector<2x1xf32>
        %1079 = arith.cmpf ogt, %1077, %1078 : vector<2x1xf32>
        %cst_324 = arith.constant 1.000000e-30 : f32
        %1080 = vector.broadcast %cst_324 : f32 to vector<2x1xf32>
        %1081 = arith.maximumf %1077, %1080 : vector<2x1xf32>
        %1082 = math.rsqrt %1081 : vector<2x1xf32>
        %cst_325 = arith.constant 0.000000e+00 : f32
        %1083 = vector.broadcast %cst_325 : f32 to vector<2x1xf32>
        %1084 = arith.select %1079, %1082, %1083 : vector<2x1xi1>, vector<2x1xf32>
        %1085 = vector.extract_strided_slice %1084 {offsets = [0, 0], sizes = [1, 1], strides = [1, 1]} : vector<2x1xf32> to vector<1x1xf32>
        %1086 = vector.extract_strided_slice %3 {offsets = [0, 0], sizes = [1, 64], strides = [1, 1]} : vector<2x64xf32> to vector<1x64xf32>
        %1087 = vector.broadcast %1085 : vector<1x1xf32> to vector<1x64xf32>
        %1088 = arith.mulf %1087, %1086 : vector<1x64xf32>
        %1089 = vector.extract_strided_slice %1084 {offsets = [1, 0], sizes = [1, 1], strides = [1, 1]} : vector<2x1xf32> to vector<1x1xf32>
        %1090 = vector.extract_strided_slice %3 {offsets = [1, 0], sizes = [1, 64], strides = [1, 1]} : vector<2x64xf32> to vector<1x64xf32>
        %1091 = vector.broadcast %1089 : vector<1x1xf32> to vector<1x64xf32>
        %1092 = arith.mulf %1091, %1090 : vector<1x64xf32>
        %1093 = arith.addf %1088, %1092 : vector<1x64xf32>
        %1094 = arith.mulf %1072, %1093 : vector<1x64xf32>
        %cst_326 = arith.constant 0.000000e+00 : f32
        %1095 = vector.broadcast %cst_326 : f32 to vector<1x64xf32>
        %1096 = arith.subf %1095, %1094 : vector<1x64xf32>
        %cst_327 = arith.constant 0.000000e+00 : f32
        %1097 = vector.broadcast %cst_327 : f32 to vector<1x64xf32>
        %1098 = arith.cmpf ogt, %1093, %1097 : vector<1x64xf32>
        %1099 = arith.select %1098, %1096, %1071 : vector<1x64xi1>, vector<1x64xf32>
        %c25 = arith.constant 25 : index
        %c0_328 = arith.constant 0 : index
        %1100 = vector.load %arg3[%c25, %c0_328] : memref<32x64xf32, #tpu.memory_space<vmem>>, vector<1x64xf32>
        %1101 = arith.subf %1099, %1071 : vector<1x64xf32>
        %1102 = arith.mulf %1100, %1101 : vector<1x64xf32>
        %1103 = arith.addf %1071, %1102 : vector<1x64xf32>
        %c25_329 = arith.constant 25 : index
        %c0_330 = arith.constant 0 : index
        %1104 = vector.load %arg7[%c25_329, %c0_330] : memref<32x64xf32, #tpu.memory_space<vmem>>, vector<1x64xf32>
        tpu.vector_store %arg7[%c25_329, %c0_330], %1103 {strides = array<i32>} : memref<32x64xf32, #tpu.memory_space<vmem>>, vector<1x64xf32>,
        %1105 = arith.mulf %1102, %1102 : vector<1x64xf32>
        %1106 = arith.addf %1064, %1105 : vector<1x64xf32>
        %c25_331 = arith.constant 25 : index
        %c0_332 = arith.constant 0 : index
        %c0_333 = arith.constant 0 : index
        %1107 = vector.load %arg2[%c25_331, %c0_332, %c0_333] : memref<32x32x1xf32, #tpu.memory_space<vmem>>, vector<1x32x1xf32>
        %1108 = vector.shape_cast %1107 : vector<1x32x1xf32> to vector<32x1xf32>
        %1109 = vector.broadcast %1108 : vector<32x1xf32> to vector<32x64xf32>
        %1110 = vector.broadcast %1102 : vector<1x64xf32> to vector<32x64xf32>
        %1111 = arith.mulf %1109, %1110 : vector<32x64xf32>
        %1112 = arith.addf %1070, %1111 : vector<32x64xf32>
        %1113 = vector.extract_strided_slice %17 {offsets = [26, 0], sizes = [1, 64], strides = [1, 1]} : vector<32x64xf32> to vector<1x64xf32>
        %1114 = vector.extract_strided_slice %1112 {offsets = [26, 0], sizes = [1, 64], strides = [1, 1]} : vector<32x64xf32> to vector<1x64xf32>
        %1115 = arith.mulf %1114, %1114 : vector<1x64xf32>
        %1116 = vector.broadcast %1115 : vector<1x64xf32> to vector<2x64xf32>
        %1117 = arith.mulf %3, %1116 : vector<2x64xf32>
        %cst_334 = arith.constant dense<0.000000e+00> : vector<2xf32>
        %1118 = vector.multi_reduction <add>, %1117, %cst_334 [1] : vector<2x64xf32> to vector<2xf32>
        %1119 = vector.shape_cast %1118 : vector<2xf32> to vector<2x1xf32>
        %cst_335 = arith.constant 9.99999968E-21 : f32
        %1120 = vector.broadcast %cst_335 : f32 to vector<2x1xf32>
        %1121 = arith.cmpf ogt, %1119, %1120 : vector<2x1xf32>
        %cst_336 = arith.constant 1.000000e-30 : f32
        %1122 = vector.broadcast %cst_336 : f32 to vector<2x1xf32>
        %1123 = arith.maximumf %1119, %1122 : vector<2x1xf32>
        %1124 = math.rsqrt %1123 : vector<2x1xf32>
        %cst_337 = arith.constant 0.000000e+00 : f32
        %1125 = vector.broadcast %cst_337 : f32 to vector<2x1xf32>
        %1126 = arith.select %1121, %1124, %1125 : vector<2x1xi1>, vector<2x1xf32>
        %1127 = vector.extract_strided_slice %1126 {offsets = [0, 0], sizes = [1, 1], strides = [1, 1]} : vector<2x1xf32> to vector<1x1xf32>
        %1128 = vector.extract_strided_slice %3 {offsets = [0, 0], sizes = [1, 64], strides = [1, 1]} : vector<2x64xf32> to vector<1x64xf32>
        %1129 = vector.broadcast %1127 : vector<1x1xf32> to vector<1x64xf32>
        %1130 = arith.mulf %1129, %1128 : vector<1x64xf32>
        %1131 = vector.extract_strided_slice %1126 {offsets = [1, 0], sizes = [1, 1], strides = [1, 1]} : vector<2x1xf32> to vector<1x1xf32>
        %1132 = vector.extract_strided_slice %3 {offsets = [1, 0], sizes = [1, 64], strides = [1, 1]} : vector<2x64xf32> to vector<1x64xf32>
        %1133 = vector.broadcast %1131 : vector<1x1xf32> to vector<1x64xf32>
        %1134 = arith.mulf %1133, %1132 : vector<1x64xf32>
        %1135 = arith.addf %1130, %1134 : vector<1x64xf32>
        %1136 = arith.mulf %1114, %1135 : vector<1x64xf32>
        %cst_338 = arith.constant 0.000000e+00 : f32
        %1137 = vector.broadcast %cst_338 : f32 to vector<1x64xf32>
        %1138 = arith.subf %1137, %1136 : vector<1x64xf32>
        %cst_339 = arith.constant 0.000000e+00 : f32
        %1139 = vector.broadcast %cst_339 : f32 to vector<1x64xf32>
        %1140 = arith.cmpf ogt, %1135, %1139 : vector<1x64xf32>
        %1141 = arith.select %1140, %1138, %1113 : vector<1x64xi1>, vector<1x64xf32>
        %c26 = arith.constant 26 : index
        %c0_340 = arith.constant 0 : index
        %1142 = vector.load %arg3[%c26, %c0_340] : memref<32x64xf32, #tpu.memory_space<vmem>>, vector<1x64xf32>
        %1143 = arith.subf %1141, %1113 : vector<1x64xf32>
        %1144 = arith.mulf %1142, %1143 : vector<1x64xf32>
        %1145 = arith.addf %1113, %1144 : vector<1x64xf32>
        %c26_341 = arith.constant 26 : index
        %c0_342 = arith.constant 0 : index
        %1146 = vector.load %arg7[%c26_341, %c0_342] : memref<32x64xf32, #tpu.memory_space<vmem>>, vector<1x64xf32>
        tpu.vector_store %arg7[%c26_341, %c0_342], %1145 {strides = array<i32>} : memref<32x64xf32, #tpu.memory_space<vmem>>, vector<1x64xf32>,
        %1147 = arith.mulf %1144, %1144 : vector<1x64xf32>
        %1148 = arith.addf %1106, %1147 : vector<1x64xf32>
        %c26_343 = arith.constant 26 : index
        %c0_344 = arith.constant 0 : index
        %c0_345 = arith.constant 0 : index
        %1149 = vector.load %arg2[%c26_343, %c0_344, %c0_345] : memref<32x32x1xf32, #tpu.memory_space<vmem>>, vector<1x32x1xf32>
        %1150 = vector.shape_cast %1149 : vector<1x32x1xf32> to vector<32x1xf32>
        %1151 = vector.broadcast %1150 : vector<32x1xf32> to vector<32x64xf32>
        %1152 = vector.broadcast %1144 : vector<1x64xf32> to vector<32x64xf32>
        %1153 = arith.mulf %1151, %1152 : vector<32x64xf32>
        %1154 = arith.addf %1112, %1153 : vector<32x64xf32>
        %1155 = vector.extract_strided_slice %17 {offsets = [27, 0], sizes = [1, 64], strides = [1, 1]} : vector<32x64xf32> to vector<1x64xf32>
        %1156 = vector.extract_strided_slice %1154 {offsets = [27, 0], sizes = [1, 64], strides = [1, 1]} : vector<32x64xf32> to vector<1x64xf32>
        %1157 = arith.mulf %1156, %1156 : vector<1x64xf32>
        %1158 = vector.broadcast %1157 : vector<1x64xf32> to vector<2x64xf32>
        %1159 = arith.mulf %3, %1158 : vector<2x64xf32>
        %cst_346 = arith.constant dense<0.000000e+00> : vector<2xf32>
        %1160 = vector.multi_reduction <add>, %1159, %cst_346 [1] : vector<2x64xf32> to vector<2xf32>
        %1161 = vector.shape_cast %1160 : vector<2xf32> to vector<2x1xf32>
        %cst_347 = arith.constant 9.99999968E-21 : f32
        %1162 = vector.broadcast %cst_347 : f32 to vector<2x1xf32>
        %1163 = arith.cmpf ogt, %1161, %1162 : vector<2x1xf32>
        %cst_348 = arith.constant 1.000000e-30 : f32
        %1164 = vector.broadcast %cst_348 : f32 to vector<2x1xf32>
        %1165 = arith.maximumf %1161, %1164 : vector<2x1xf32>
        %1166 = math.rsqrt %1165 : vector<2x1xf32>
        %cst_349 = arith.constant 0.000000e+00 : f32
        %1167 = vector.broadcast %cst_349 : f32 to vector<2x1xf32>
        %1168 = arith.select %1163, %1166, %1167 : vector<2x1xi1>, vector<2x1xf32>
        %1169 = vector.extract_strided_slice %1168 {offsets = [0, 0], sizes = [1, 1], strides = [1, 1]} : vector<2x1xf32> to vector<1x1xf32>
        %1170 = vector.extract_strided_slice %3 {offsets = [0, 0], sizes = [1, 64], strides = [1, 1]} : vector<2x64xf32> to vector<1x64xf32>
        %1171 = vector.broadcast %1169 : vector<1x1xf32> to vector<1x64xf32>
        %1172 = arith.mulf %1171, %1170 : vector<1x64xf32>
        %1173 = vector.extract_strided_slice %1168 {offsets = [1, 0], sizes = [1, 1], strides = [1, 1]} : vector<2x1xf32> to vector<1x1xf32>
        %1174 = vector.extract_strided_slice %3 {offsets = [1, 0], sizes = [1, 64], strides = [1, 1]} : vector<2x64xf32> to vector<1x64xf32>
        %1175 = vector.broadcast %1173 : vector<1x1xf32> to vector<1x64xf32>
        %1176 = arith.mulf %1175, %1174 : vector<1x64xf32>
        %1177 = arith.addf %1172, %1176 : vector<1x64xf32>
        %1178 = arith.mulf %1156, %1177 : vector<1x64xf32>
        %cst_350 = arith.constant 0.000000e+00 : f32
        %1179 = vector.broadcast %cst_350 : f32 to vector<1x64xf32>
        %1180 = arith.subf %1179, %1178 : vector<1x64xf32>
        %cst_351 = arith.constant 0.000000e+00 : f32
        %1181 = vector.broadcast %cst_351 : f32 to vector<1x64xf32>
        %1182 = arith.cmpf ogt, %1177, %1181 : vector<1x64xf32>
        %1183 = arith.select %1182, %1180, %1155 : vector<1x64xi1>, vector<1x64xf32>
        %c27 = arith.constant 27 : index
        %c0_352 = arith.constant 0 : index
        %1184 = vector.load %arg3[%c27, %c0_352] : memref<32x64xf32, #tpu.memory_space<vmem>>, vector<1x64xf32>
        %1185 = arith.subf %1183, %1155 : vector<1x64xf32>
        %1186 = arith.mulf %1184, %1185 : vector<1x64xf32>
        %1187 = arith.addf %1155, %1186 : vector<1x64xf32>
        %c27_353 = arith.constant 27 : index
        %c0_354 = arith.constant 0 : index
        %1188 = vector.load %arg7[%c27_353, %c0_354] : memref<32x64xf32, #tpu.memory_space<vmem>>, vector<1x64xf32>
        tpu.vector_store %arg7[%c27_353, %c0_354], %1187 {strides = array<i32>} : memref<32x64xf32, #tpu.memory_space<vmem>>, vector<1x64xf32>,
        %1189 = arith.mulf %1186, %1186 : vector<1x64xf32>
        %1190 = arith.addf %1148, %1189 : vector<1x64xf32>
        %c27_355 = arith.constant 27 : index
        %c0_356 = arith.constant 0 : index
        %c0_357 = arith.constant 0 : index
        %1191 = vector.load %arg2[%c27_355, %c0_356, %c0_357] : memref<32x32x1xf32, #tpu.memory_space<vmem>>, vector<1x32x1xf32>
        %1192 = vector.shape_cast %1191 : vector<1x32x1xf32> to vector<32x1xf32>
        %1193 = vector.broadcast %1192 : vector<32x1xf32> to vector<32x64xf32>
        %1194 = vector.broadcast %1186 : vector<1x64xf32> to vector<32x64xf32>
        %1195 = arith.mulf %1193, %1194 : vector<32x64xf32>
        %1196 = arith.addf %1154, %1195 : vector<32x64xf32>
        %1197 = vector.extract_strided_slice %17 {offsets = [28, 0], sizes = [1, 64], strides = [1, 1]} : vector<32x64xf32> to vector<1x64xf32>
        %1198 = vector.extract_strided_slice %1196 {offsets = [28, 0], sizes = [1, 64], strides = [1, 1]} : vector<32x64xf32> to vector<1x64xf32>
        %1199 = arith.mulf %1198, %1198 : vector<1x64xf32>
        %1200 = vector.broadcast %1199 : vector<1x64xf32> to vector<2x64xf32>
        %1201 = arith.mulf %3, %1200 : vector<2x64xf32>
        %cst_358 = arith.constant dense<0.000000e+00> : vector<2xf32>
        %1202 = vector.multi_reduction <add>, %1201, %cst_358 [1] : vector<2x64xf32> to vector<2xf32>
        %1203 = vector.shape_cast %1202 : vector<2xf32> to vector<2x1xf32>
        %cst_359 = arith.constant 9.99999968E-21 : f32
        %1204 = vector.broadcast %cst_359 : f32 to vector<2x1xf32>
        %1205 = arith.cmpf ogt, %1203, %1204 : vector<2x1xf32>
        %cst_360 = arith.constant 1.000000e-30 : f32
        %1206 = vector.broadcast %cst_360 : f32 to vector<2x1xf32>
        %1207 = arith.maximumf %1203, %1206 : vector<2x1xf32>
        %1208 = math.rsqrt %1207 : vector<2x1xf32>
        %cst_361 = arith.constant 0.000000e+00 : f32
        %1209 = vector.broadcast %cst_361 : f32 to vector<2x1xf32>
        %1210 = arith.select %1205, %1208, %1209 : vector<2x1xi1>, vector<2x1xf32>
        %1211 = vector.extract_strided_slice %1210 {offsets = [0, 0], sizes = [1, 1], strides = [1, 1]} : vector<2x1xf32> to vector<1x1xf32>
        %1212 = vector.extract_strided_slice %3 {offsets = [0, 0], sizes = [1, 64], strides = [1, 1]} : vector<2x64xf32> to vector<1x64xf32>
        %1213 = vector.broadcast %1211 : vector<1x1xf32> to vector<1x64xf32>
        %1214 = arith.mulf %1213, %1212 : vector<1x64xf32>
        %1215 = vector.extract_strided_slice %1210 {offsets = [1, 0], sizes = [1, 1], strides = [1, 1]} : vector<2x1xf32> to vector<1x1xf32>
        %1216 = vector.extract_strided_slice %3 {offsets = [1, 0], sizes = [1, 64], strides = [1, 1]} : vector<2x64xf32> to vector<1x64xf32>
        %1217 = vector.broadcast %1215 : vector<1x1xf32> to vector<1x64xf32>
        %1218 = arith.mulf %1217, %1216 : vector<1x64xf32>
        %1219 = arith.addf %1214, %1218 : vector<1x64xf32>
        %1220 = arith.mulf %1198, %1219 : vector<1x64xf32>
        %cst_362 = arith.constant 0.000000e+00 : f32
        %1221 = vector.broadcast %cst_362 : f32 to vector<1x64xf32>
        %1222 = arith.subf %1221, %1220 : vector<1x64xf32>
        %cst_363 = arith.constant 0.000000e+00 : f32
        %1223 = vector.broadcast %cst_363 : f32 to vector<1x64xf32>
        %1224 = arith.cmpf ogt, %1219, %1223 : vector<1x64xf32>
        %1225 = arith.select %1224, %1222, %1197 : vector<1x64xi1>, vector<1x64xf32>
        %c28 = arith.constant 28 : index
        %c0_364 = arith.constant 0 : index
        %1226 = vector.load %arg3[%c28, %c0_364] : memref<32x64xf32, #tpu.memory_space<vmem>>, vector<1x64xf32>
        %1227 = arith.subf %1225, %1197 : vector<1x64xf32>
        %1228 = arith.mulf %1226, %1227 : vector<1x64xf32>
        %1229 = arith.addf %1197, %1228 : vector<1x64xf32>
        %c28_365 = arith.constant 28 : index
        %c0_366 = arith.constant 0 : index
        %1230 = vector.load %arg7[%c28_365, %c0_366] : memref<32x64xf32, #tpu.memory_space<vmem>>, vector<1x64xf32>
        tpu.vector_store %arg7[%c28_365, %c0_366], %1229 {strides = array<i32>} : memref<32x64xf32, #tpu.memory_space<vmem>>, vector<1x64xf32>,
        %1231 = arith.mulf %1228, %1228 : vector<1x64xf32>
        %1232 = arith.addf %1190, %1231 : vector<1x64xf32>
        %c28_367 = arith.constant 28 : index
        %c0_368 = arith.constant 0 : index
        %c0_369 = arith.constant 0 : index
        %1233 = vector.load %arg2[%c28_367, %c0_368, %c0_369] : memref<32x32x1xf32, #tpu.memory_space<vmem>>, vector<1x32x1xf32>
        %1234 = vector.shape_cast %1233 : vector<1x32x1xf32> to vector<32x1xf32>
        %1235 = vector.broadcast %1234 : vector<32x1xf32> to vector<32x64xf32>
        %1236 = vector.broadcast %1228 : vector<1x64xf32> to vector<32x64xf32>
        %1237 = arith.mulf %1235, %1236 : vector<32x64xf32>
        %1238 = arith.addf %1196, %1237 : vector<32x64xf32>
        %1239 = vector.extract_strided_slice %17 {offsets = [29, 0], sizes = [1, 64], strides = [1, 1]} : vector<32x64xf32> to vector<1x64xf32>
        %1240 = vector.extract_strided_slice %1238 {offsets = [29, 0], sizes = [1, 64], strides = [1, 1]} : vector<32x64xf32> to vector<1x64xf32>
        %1241 = arith.mulf %1240, %1240 : vector<1x64xf32>
        %1242 = vector.broadcast %1241 : vector<1x64xf32> to vector<2x64xf32>
        %1243 = arith.mulf %3, %1242 : vector<2x64xf32>
        %cst_370 = arith.constant dense<0.000000e+00> : vector<2xf32>
        %1244 = vector.multi_reduction <add>, %1243, %cst_370 [1] : vector<2x64xf32> to vector<2xf32>
        %1245 = vector.shape_cast %1244 : vector<2xf32> to vector<2x1xf32>
        %cst_371 = arith.constant 9.99999968E-21 : f32
        %1246 = vector.broadcast %cst_371 : f32 to vector<2x1xf32>
        %1247 = arith.cmpf ogt, %1245, %1246 : vector<2x1xf32>
        %cst_372 = arith.constant 1.000000e-30 : f32
        %1248 = vector.broadcast %cst_372 : f32 to vector<2x1xf32>
        %1249 = arith.maximumf %1245, %1248 : vector<2x1xf32>
        %1250 = math.rsqrt %1249 : vector<2x1xf32>
        %cst_373 = arith.constant 0.000000e+00 : f32
        %1251 = vector.broadcast %cst_373 : f32 to vector<2x1xf32>
        %1252 = arith.select %1247, %1250, %1251 : vector<2x1xi1>, vector<2x1xf32>
        %1253 = vector.extract_strided_slice %1252 {offsets = [0, 0], sizes = [1, 1], strides = [1, 1]} : vector<2x1xf32> to vector<1x1xf32>
        %1254 = vector.extract_strided_slice %3 {offsets = [0, 0], sizes = [1, 64], strides = [1, 1]} : vector<2x64xf32> to vector<1x64xf32>
        %1255 = vector.broadcast %1253 : vector<1x1xf32> to vector<1x64xf32>
        %1256 = arith.mulf %1255, %1254 : vector<1x64xf32>
        %1257 = vector.extract_strided_slice %1252 {offsets = [1, 0], sizes = [1, 1], strides = [1, 1]} : vector<2x1xf32> to vector<1x1xf32>
        %1258 = vector.extract_strided_slice %3 {offsets = [1, 0], sizes = [1, 64], strides = [1, 1]} : vector<2x64xf32> to vector<1x64xf32>
        %1259 = vector.broadcast %1257 : vector<1x1xf32> to vector<1x64xf32>
        %1260 = arith.mulf %1259, %1258 : vector<1x64xf32>
        %1261 = arith.addf %1256, %1260 : vector<1x64xf32>
        %1262 = arith.mulf %1240, %1261 : vector<1x64xf32>
        %cst_374 = arith.constant 0.000000e+00 : f32
        %1263 = vector.broadcast %cst_374 : f32 to vector<1x64xf32>
        %1264 = arith.subf %1263, %1262 : vector<1x64xf32>
        %cst_375 = arith.constant 0.000000e+00 : f32
        %1265 = vector.broadcast %cst_375 : f32 to vector<1x64xf32>
        %1266 = arith.cmpf ogt, %1261, %1265 : vector<1x64xf32>
        %1267 = arith.select %1266, %1264, %1239 : vector<1x64xi1>, vector<1x64xf32>
        %c29 = arith.constant 29 : index
        %c0_376 = arith.constant 0 : index
        %1268 = vector.load %arg3[%c29, %c0_376] : memref<32x64xf32, #tpu.memory_space<vmem>>, vector<1x64xf32>
        %1269 = arith.subf %1267, %1239 : vector<1x64xf32>
        %1270 = arith.mulf %1268, %1269 : vector<1x64xf32>
        %1271 = arith.addf %1239, %1270 : vector<1x64xf32>
        %c29_377 = arith.constant 29 : index
        %c0_378 = arith.constant 0 : index
        %1272 = vector.load %arg7[%c29_377, %c0_378] : memref<32x64xf32, #tpu.memory_space<vmem>>, vector<1x64xf32>
        tpu.vector_store %arg7[%c29_377, %c0_378], %1271 {strides = array<i32>} : memref<32x64xf32, #tpu.memory_space<vmem>>, vector<1x64xf32>,
        %1273 = arith.mulf %1270, %1270 : vector<1x64xf32>
        %1274 = arith.addf %1232, %1273 : vector<1x64xf32>
        %c29_379 = arith.constant 29 : index
        %c0_380 = arith.constant 0 : index
        %c0_381 = arith.constant 0 : index
        %1275 = vector.load %arg2[%c29_379, %c0_380, %c0_381] : memref<32x32x1xf32, #tpu.memory_space<vmem>>, vector<1x32x1xf32>
        %1276 = vector.shape_cast %1275 : vector<1x32x1xf32> to vector<32x1xf32>
        %1277 = vector.broadcast %1276 : vector<32x1xf32> to vector<32x64xf32>
        %1278 = vector.broadcast %1270 : vector<1x64xf32> to vector<32x64xf32>
        %1279 = arith.mulf %1277, %1278 : vector<32x64xf32>
        %1280 = arith.addf %1238, %1279 : vector<32x64xf32>
        %1281 = vector.extract_strided_slice %17 {offsets = [30, 0], sizes = [1, 64], strides = [1, 1]} : vector<32x64xf32> to vector<1x64xf32>
        %1282 = vector.extract_strided_slice %1280 {offsets = [30, 0], sizes = [1, 64], strides = [1, 1]} : vector<32x64xf32> to vector<1x64xf32>
        %1283 = arith.mulf %1282, %1282 : vector<1x64xf32>
        %1284 = vector.broadcast %1283 : vector<1x64xf32> to vector<2x64xf32>
        %1285 = arith.mulf %3, %1284 : vector<2x64xf32>
        %cst_382 = arith.constant dense<0.000000e+00> : vector<2xf32>
        %1286 = vector.multi_reduction <add>, %1285, %cst_382 [1] : vector<2x64xf32> to vector<2xf32>
        %1287 = vector.shape_cast %1286 : vector<2xf32> to vector<2x1xf32>
        %cst_383 = arith.constant 9.99999968E-21 : f32
        %1288 = vector.broadcast %cst_383 : f32 to vector<2x1xf32>
        %1289 = arith.cmpf ogt, %1287, %1288 : vector<2x1xf32>
        %cst_384 = arith.constant 1.000000e-30 : f32
        %1290 = vector.broadcast %cst_384 : f32 to vector<2x1xf32>
        %1291 = arith.maximumf %1287, %1290 : vector<2x1xf32>
        %1292 = math.rsqrt %1291 : vector<2x1xf32>
        %cst_385 = arith.constant 0.000000e+00 : f32
        %1293 = vector.broadcast %cst_385 : f32 to vector<2x1xf32>
        %1294 = arith.select %1289, %1292, %1293 : vector<2x1xi1>, vector<2x1xf32>
        %1295 = vector.extract_strided_slice %1294 {offsets = [0, 0], sizes = [1, 1], strides = [1, 1]} : vector<2x1xf32> to vector<1x1xf32>
        %1296 = vector.extract_strided_slice %3 {offsets = [0, 0], sizes = [1, 64], strides = [1, 1]} : vector<2x64xf32> to vector<1x64xf32>
        %1297 = vector.broadcast %1295 : vector<1x1xf32> to vector<1x64xf32>
        %1298 = arith.mulf %1297, %1296 : vector<1x64xf32>
        %1299 = vector.extract_strided_slice %1294 {offsets = [1, 0], sizes = [1, 1], strides = [1, 1]} : vector<2x1xf32> to vector<1x1xf32>
        %1300 = vector.extract_strided_slice %3 {offsets = [1, 0], sizes = [1, 64], strides = [1, 1]} : vector<2x64xf32> to vector<1x64xf32>
        %1301 = vector.broadcast %1299 : vector<1x1xf32> to vector<1x64xf32>
        %1302 = arith.mulf %1301, %1300 : vector<1x64xf32>
        %1303 = arith.addf %1298, %1302 : vector<1x64xf32>
        %1304 = arith.mulf %1282, %1303 : vector<1x64xf32>
        %cst_386 = arith.constant 0.000000e+00 : f32
        %1305 = vector.broadcast %cst_386 : f32 to vector<1x64xf32>
        %1306 = arith.subf %1305, %1304 : vector<1x64xf32>
        %cst_387 = arith.constant 0.000000e+00 : f32
        %1307 = vector.broadcast %cst_387 : f32 to vector<1x64xf32>
        %1308 = arith.cmpf ogt, %1303, %1307 : vector<1x64xf32>
        %1309 = arith.select %1308, %1306, %1281 : vector<1x64xi1>, vector<1x64xf32>
        %c30 = arith.constant 30 : index
        %c0_388 = arith.constant 0 : index
        %1310 = vector.load %arg3[%c30, %c0_388] : memref<32x64xf32, #tpu.memory_space<vmem>>, vector<1x64xf32>
        %1311 = arith.subf %1309, %1281 : vector<1x64xf32>
        %1312 = arith.mulf %1310, %1311 : vector<1x64xf32>
        %1313 = arith.addf %1281, %1312 : vector<1x64xf32>
        %c30_389 = arith.constant 30 : index
        %c0_390 = arith.constant 0 : index
        %1314 = vector.load %arg7[%c30_389, %c0_390] : memref<32x64xf32, #tpu.memory_space<vmem>>, vector<1x64xf32>
        tpu.vector_store %arg7[%c30_389, %c0_390], %1313 {strides = array<i32>} : memref<32x64xf32, #tpu.memory_space<vmem>>, vector<1x64xf32>,
        %1315 = arith.mulf %1312, %1312 : vector<1x64xf32>
        %1316 = arith.addf %1274, %1315 : vector<1x64xf32>
        %c30_391 = arith.constant 30 : index
        %c0_392 = arith.constant 0 : index
        %c0_393 = arith.constant 0 : index
        %1317 = vector.load %arg2[%c30_391, %c0_392, %c0_393] : memref<32x32x1xf32, #tpu.memory_space<vmem>>, vector<1x32x1xf32>
        %1318 = vector.shape_cast %1317 : vector<1x32x1xf32> to vector<32x1xf32>
        %1319 = vector.broadcast %1318 : vector<32x1xf32> to vector<32x64xf32>
        %1320 = vector.broadcast %1312 : vector<1x64xf32> to vector<32x64xf32>
        %1321 = arith.mulf %1319, %1320 : vector<32x64xf32>
        %1322 = arith.addf %1280, %1321 : vector<32x64xf32>
        %1323 = vector.extract_strided_slice %17 {offsets = [31, 0], sizes = [1, 64], strides = [1, 1]} : vector<32x64xf32> to vector<1x64xf32>
        %1324 = vector.extract_strided_slice %1322 {offsets = [31, 0], sizes = [1, 64], strides = [1, 1]} : vector<32x64xf32> to vector<1x64xf32>
        %1325 = arith.mulf %1324, %1324 : vector<1x64xf32>
        %1326 = vector.broadcast %1325 : vector<1x64xf32> to vector<2x64xf32>
        %1327 = arith.mulf %3, %1326 : vector<2x64xf32>
        %cst_394 = arith.constant dense<0.000000e+00> : vector<2xf32>
        %1328 = vector.multi_reduction <add>, %1327, %cst_394 [1] : vector<2x64xf32> to vector<2xf32>
        %1329 = vector.shape_cast %1328 : vector<2xf32> to vector<2x1xf32>
        %cst_395 = arith.constant 9.99999968E-21 : f32
        %1330 = vector.broadcast %cst_395 : f32 to vector<2x1xf32>
        %1331 = arith.cmpf ogt, %1329, %1330 : vector<2x1xf32>
        %cst_396 = arith.constant 1.000000e-30 : f32
        %1332 = vector.broadcast %cst_396 : f32 to vector<2x1xf32>
        %1333 = arith.maximumf %1329, %1332 : vector<2x1xf32>
        %1334 = math.rsqrt %1333 : vector<2x1xf32>
        %cst_397 = arith.constant 0.000000e+00 : f32
        %1335 = vector.broadcast %cst_397 : f32 to vector<2x1xf32>
        %1336 = arith.select %1331, %1334, %1335 : vector<2x1xi1>, vector<2x1xf32>
        %1337 = vector.extract_strided_slice %1336 {offsets = [0, 0], sizes = [1, 1], strides = [1, 1]} : vector<2x1xf32> to vector<1x1xf32>
        %1338 = vector.extract_strided_slice %3 {offsets = [0, 0], sizes = [1, 64], strides = [1, 1]} : vector<2x64xf32> to vector<1x64xf32>
        %1339 = vector.broadcast %1337 : vector<1x1xf32> to vector<1x64xf32>
        %1340 = arith.mulf %1339, %1338 : vector<1x64xf32>
        %1341 = vector.extract_strided_slice %1336 {offsets = [1, 0], sizes = [1, 1], strides = [1, 1]} : vector<2x1xf32> to vector<1x1xf32>
        %1342 = vector.extract_strided_slice %3 {offsets = [1, 0], sizes = [1, 64], strides = [1, 1]} : vector<2x64xf32> to vector<1x64xf32>
        %1343 = vector.broadcast %1341 : vector<1x1xf32> to vector<1x64xf32>
        %1344 = arith.mulf %1343, %1342 : vector<1x64xf32>
        %1345 = arith.addf %1340, %1344 : vector<1x64xf32>
        %1346 = arith.mulf %1324, %1345 : vector<1x64xf32>
        %cst_398 = arith.constant 0.000000e+00 : f32
        %1347 = vector.broadcast %cst_398 : f32 to vector<1x64xf32>
        %1348 = arith.subf %1347, %1346 : vector<1x64xf32>
        %cst_399 = arith.constant 0.000000e+00 : f32
        %1349 = vector.broadcast %cst_399 : f32 to vector<1x64xf32>
        %1350 = arith.cmpf ogt, %1345, %1349 : vector<1x64xf32>
        %1351 = arith.select %1350, %1348, %1323 : vector<1x64xi1>, vector<1x64xf32>
        %c31 = arith.constant 31 : index
        %c0_400 = arith.constant 0 : index
        %1352 = vector.load %arg3[%c31, %c0_400] : memref<32x64xf32, #tpu.memory_space<vmem>>, vector<1x64xf32>
        %1353 = arith.subf %1351, %1323 : vector<1x64xf32>
        %1354 = arith.mulf %1352, %1353 : vector<1x64xf32>
        %1355 = arith.addf %1323, %1354 : vector<1x64xf32>
        %c31_401 = arith.constant 31 : index
        %c0_402 = arith.constant 0 : index
        %1356 = vector.load %arg7[%c31_401, %c0_402] : memref<32x64xf32, #tpu.memory_space<vmem>>, vector<1x64xf32>
        tpu.vector_store %arg7[%c31_401, %c0_402], %1355 {strides = array<i32>} : memref<32x64xf32, #tpu.memory_space<vmem>>, vector<1x64xf32>,
        %1357 = arith.mulf %1354, %1354 : vector<1x64xf32>
        %1358 = arith.addf %1316, %1357 : vector<1x64xf32>
        %1359 = vector.shape_cast %1358 : vector<1x64xf32> to vector<1x1x64xf32>
        %cst_403 = arith.constant dense<0.000000e+00> : vector<1xf32>
        %1360 = vector.multi_reduction <add>, %1359, %cst_403 [1, 2] : vector<1x1x64xf32> to vector<1xf32>
        %1361 = vector.shape_cast %1360 : vector<1xf32> to vector<1x1x1xf32>
        %1362 = vector.extract %1361[0, 0, 0] : f32 from vector<1x1x1xf32>
        %c0_404 = arith.constant 0 : index
        %1363 = memref.load %arg8[%c0_404] : memref<1xf32, #tpu.memory_space<smem>>
        memref.store %1362, %arg8[%c0_404] : memref<1xf32, #tpu.memory_space<smem>>
      } else {
      }
    }
    %c0_6 = arith.constant 0 : index
    %c0_7 = arith.constant 0 : index
    %5 = vector.load %arg7[%c0_6, %c0_7] : memref<32x64xf32, #tpu.memory_space<vmem>>, vector<32x64xf32>
    %6 = vector.extract_strided_slice %5 {offsets = [0, 0], sizes = [1, 64], strides = [1, 1]} : vector<32x64xf32> to vector<1x64xf32>
    %7 = vector.broadcast %6 : vector<1x64xf32> to vector<32x64xf32>
    %8 = arith.mulf %5, %7 : vector<32x64xf32>
    %cst_8 = arith.constant dense<0.000000e+00> : vector<32x2xf32>
    %9 = tpu.matmul %8, %3, %cst_8 {dimension_numbers = #tpu.dot_dimension_numbers<[1], [1], [0], [0], [0, 0, 1, 0], [], []>} : vector<32x64xf32>, vector<2x64xf32>, vector<32x2xf32> -> vector<32x2xf32>
    %cst_9 = arith.constant 0.000000e+00 : f32
    %10 = vector.broadcast %cst_9 : f32 to vector<32x2xf32>
    %11 = arith.subf %10, %9 : vector<32x2xf32>
    %c0_10 = arith.constant 0 : index
    %c0_11 = arith.constant 0 : index
    %12 = vector.load %arg6[%c0_10, %c0_11] : memref<32x2xf32, #tpu.memory_space<vmem>>, vector<32x2xf32>
    tpu.vector_store %arg6[%c0_10, %c0_11], %11 {strides = array<i32>} : memref<32x2xf32, #tpu.memory_space<vmem>>, vector<32x2xf32>,
    return
  }
  func.func @transform_0(%arg0: i32) -> (i32, i32) {
    %c0_i32 = arith.constant 0 : i32
    %c0_i32_0 = arith.constant 0 : i32
    %c0_i32_1 = arith.constant 0 : i32
    return %c0_i32, %c0_i32_0 : i32, i32
  }
  func.func @transform_1(%arg0: i32) -> (i32, i32, i32) {
    %c0_i32 = arith.constant 0 : i32
    %c0_i32_0 = arith.constant 0 : i32
    %c0_i32_1 = arith.constant 0 : i32
    %c0_i32_2 = arith.constant 0 : i32
    return %c0_i32, %c0_i32_0, %c0_i32_1 : i32, i32, i32
  }
  func.func @transform_2(%arg0: i32) -> (i32, i32) {
    %c0_i32 = arith.constant 0 : i32
    %c0_i32_0 = arith.constant 0 : i32
    %c0_i32_1 = arith.constant 0 : i32
    return %c0_i32, %c0_i32_0 : i32, i32
  }
  func.func @transform_3(%arg0: i32) -> (i32, i32) {
    %c0_i32 = arith.constant 0 : i32
    %c0_i32_0 = arith.constant 0 : i32
    %c0_i32_1 = arith.constant 0 : i32
    return %c0_i32, %c0_i32_0 : i32, i32
  }
  func.func @transform_4(%arg0: i32) -> (i32, i32) {
    %c0_i32 = arith.constant 0 : i32
    %c0_i32_0 = arith.constant 0 : i32
    %c0_i32_1 = arith.constant 0 : i32
    return %c0_i32, %c0_i32_0 : i32, i32
  }
  func.func @transform_5(%arg0: i32) -> (i32, i32) {
    %c0_i32 = arith.constant 0 : i32
    %c0_i32_0 = arith.constant 0 : i32
    %c0_i32_1 = arith.constant 0 : i32
    return %c0_i32, %c0_i32_0 : i32, i32
  }
}

</mosaic_0001>

<llo_original>
// kernel: tpu_custom_call.1
$region0: #{tpu_custom_call.1}
  #allocation0 [shape = 'u32[]', space=smem, size = 0x4, offset = 0x4, fixed_abs, tag = 'smem constant byte address 0x4 - core index']
  #allocation1 [shape = 'u32[72,128]{1,0:T(1,128)}', space=vmem, size = 0x9000, scoped, tag = 'internal scratch']
  #allocation2 [shape = 'f32[32,64]{1,0:T(8,128)}', space=vmem, size = 0x4000, scoped, tag = 'scratch operand']
  #allocation3 [shape = 'f32[1]{0:T(128)}', space=smem, size = 0x200, scoped, tag = 'scratch operand']
  %s0 = inlined_call_operand.vmem [shape: f32[32,32], index: 0, kind: input, shape index: {}]
  %s1 = inlined_call_operand.vmem [shape: f32[32,32,1], index: 1, kind: input, shape index: {}]
  %s2 = inlined_call_operand.vmem [shape: f32[32,64], index: 2, kind: input, shape index: {}]
  %s3 = inlined_call_operand.vmem [shape: f32[2,64], index: 3, kind: input, shape index: {}]
  %s4 = inlined_call_operand.vmem [shape: f32[32,64], index: 4, kind: input, shape index: {}]
  %s5 = inlined_call_operand.vmem [shape: f32[32,2], index: 5, kind: output, shape index: {}]
  %s6 = sld [smem:[#allocation0]]
  $region41: #{tpu_custom_call.1} parent=0
    _
  %s8 = ssub.s32 1, %s6
  %s9 = scalar_select 0, %s8, %s6
  // Predicated region
  $region2: #{tpu_custom_call.1} parent=0 // pred_check
    _
  $region3: #{tpu_custom_call.1} parent=0 // pred_check_branch
    %11 = sbr.rel (0) target = $region5
  $region4: #{tpu_custom_call.1} parent=0 // pred_region
    _
  $region5: #{tpu_custom_call.1} parent=0 // pred_fallthru
    _
  // Predicated region
  $region6: #{tpu_custom_call.1} parent=0 // pred_check
    _
  $region7: #{tpu_custom_call.1} parent=0 // pred_check_branch
    %13 = sbr.rel (0) target = $region9
  $region8: #{tpu_custom_call.1} parent=0 // pred_region
    _
  $region9: #{tpu_custom_call.1} parent=0 // pred_fallthru
    _
  // Predicated region
  $region10: #{tpu_custom_call.1} parent=0 // pred_check
    _
  $region11: #{tpu_custom_call.1} parent=0 // pred_check_branch
    %15 = sbr.rel (0) target = $region13
  $region12: #{tpu_custom_call.1} parent=0 // pred_region
    _
  $region13: #{tpu_custom_call.1} parent=0 // pred_fallthru
    _
  // Predicated region
  $region14: #{tpu_custom_call.1} parent=0 // pred_check
    _
  $region15: #{tpu_custom_call.1} parent=0 // pred_check_branch
    %17 = sbr.rel (0) target = $region17
  $region16: #{tpu_custom_call.1} parent=0 // pred_region
    _
  $region17: #{tpu_custom_call.1} parent=0 // pred_fallthru
    _
  // Predicated region
  $region18: #{tpu_custom_call.1} parent=0 // pred_check
    _
  $region19: #{tpu_custom_call.1} parent=0 // pred_check_branch
    %19 = sbr.rel (0) target = $region21
  $region20: #{tpu_custom_call.1} parent=0 // pred_region
    _
  $region21: #{tpu_custom_call.1} parent=0 // pred_fallthru
    _
  %v20 = vld [vmem:[%s4] sm:$0xff]
  %v21 = vld [vmem:[%s4 + $0x8] sm:$0xff]
  %v22 = vld [vmem:[%s4 + $0x10] sm:$0xff]
  %v23 = vld [vmem:[%s4 + $0x18] sm:$0xff]
  %vm24 = vcmask 523264
  %25 = vst.msk [vmem:[#allocation2] sm:$0xff] %vm24, %v20
  %26 = vst.msk [vmem:[#allocation2 + $0x8] sm:$0xff] %vm24, %v21
  %27 = vst.msk [vmem:[#allocation2 + $0x10] sm:$0xff] %vm24, %v22
  %28 = vst.msk [vmem:[#allocation2 + $0x18] sm:$0xff] %vm24, %v23
  %s29 = scalar_lea.smem [#allocation3], 0
  %30 = sst [smem:[%s29]] 1e+30
  %v31 = vld [vmem:[%s3] sm:$0x3]
  loop: start=0, step=1, limit=100
  $region22: #{tpu_custom_call.1} parent=0 // loop_pre_header
    _
  $region23: #{tpu_custom_call.1} parent=0 // loop_header
    %s33 = sphi 0, %s37
    %p34 = scmp.ge.s32.totalorder %s33, 100
  $region24: #{tpu_custom_call.1} parent=0 // loop_header_branch
    %36 = sbr.rel (%p34) target = $region28
  $region25: #{tpu_custom_call.1} parent=0 // loop_body
    %s38 = sld [smem:[#allocation3]]
    %p39 = scmp.gt.f32.partialorder %s38, 1e-06
    // Predicated region
    $region29: #{tpu_custom_call.1} parent=25 // pred_check
      %p40 = pneg %p39
    $region30: #{tpu_custom_call.1} parent=25 // pred_check_branch
      %42 = sbr.rel (%p40) target = $region32
    $region31: #{tpu_custom_call.1} parent=25 // pred_region
      %v43 = vld [vmem:[#allocation2] sm:$0xff]
      %v44 = vld [vmem:[#allocation2 + $0x8] sm:$0xff]
      %v45 = vld [vmem:[#allocation2 + $0x10] sm:$0xff]
      %v46 = vld [vmem:[#allocation2 + $0x18] sm:$0xff]
      %v47 = vld [vmem:[%s0] sm:$0xff]
      %v48 = vld [vmem:[%s0 + $0x8] sm:$0xff]
      %v49 = vld [vmem:[%s0 + $0x10] sm:$0xff]
      %v50 = vld [vmem:[%s0 + $0x18] sm:$0xff]
      %vm51 = vcmask 261120
      %v53 = vsel %vm51, %v47, 0
      %v56 = vsel %vm51, %v48, 0
      %v59 = vsel %vm51, %v49, 0
      %v62 = vsel %vm51, %v50, 0
      %64 = vmatpush.msra.mxu0 0.0
      %65 = vmatpush.msra.mxu0 0.0
      %66 = vmatpush.msra.mxu0 0.0
      %67 = vmatpush.msra.mxu0 0.0
      %68 = vmatpush.msra.mxu0 0.0
      %69 = vmatpush.msra.mxu0 0.0
      %70 = vmatpush.msra.mxu0 0.0
      %71 = vmatpush.msra.mxu0 0.0
      %72 = vmatpush.msra.mxu0 0.0
      %73 = vmatpush.msra.mxu0 0.0
      %74 = vmatpush.msra.mxu0 0.0
      %75 = vmatpush.msra.mxu0 0.0
      %76 = vmatpush.msra.mxu0 %v46
      %77 = vmatpush.msra.mxu0 %v45
      %78 = vmatpush.msra.mxu0 %v44
      %79 = vmatpush.msra.mxu0 %v43
      %80 = vmatmul.f32.gmra.mxu0 %v53
      %v81 = vpop.f32.mrf.mxu0
      %v82 = vadd.f32 0.0, %v81
      %83 = vmatmul.f32.gmra.mxu0 %v56
      %v84 = vpop.f32.mrf.mxu0
      %v85 = vadd.f32 0.0, %v84
      %86 = vmatmul.f32.gmra.mxu0 %v59
      %v87 = vpop.f32.mrf.mxu0
      %v88 = vadd.f32 0.0, %v87
      %89 = vmatmul.f32.gmra.mxu0 %v62
      %v90 = vpop.f32.mrf.mxu0
      %v91 = vadd.f32 0.0, %v90
      %92 = vdwg.mxu0
      %v93 = vmul.f32 %v82, %v82
      %v94 = vperm.slane %v93, 0
      %v95 = vmul.f32 %v31, %v94
      %vm96 = vcmask 517120
      %v97 = vsel %vm96, %v95, 0.0
      %98 = vadd.xlane.f32.xlu0 %v97
      %v99 = vpop.xlane.xlu0 %98
      %vm100 = vcmp.gt.f32.partialorder %v99, 1e-20
      %v101 = vmax.f32 %v99, 1e-30
      %v102 = vrsqrt.pop %v101
      %v103 = vmul.f32 %v102, %v101
      %v104 = vmul.f32 %v103, %v102
      %v105 = vmul.f32 0.5, %v104
      %v106 = vsub.f32 1.5, %v105
      %v107 = vmul.f32 %v102, %v106
      %vm108 = vweird.f32 %v101
      %vm109 = vweird.f32 %v102
      %vm110 = vmor %vm108, %vm109
      %v111 = vsel %vm110, %v102, %v107
      %v112 = vsel %vm100, %v111, 0.0
      %v113 = vmul.f32 %v112, %v31
      %v115 = vrot.slane %v113, 1
      %v117 = vadd.f32 %v113, %v115
      %v118 = vmul.f32 %v82, %v117
      %v119 = vsub.f32 0.0, %v118
      %vm120 = vcmp.gt.f32.partialorder %v117, 0.0
      %v121 = vsel %vm120, %v119, %v43
      %v122 = vld [vmem:[%s2] sm:$0x1]
      %v123 = vsub.f32 %v121, %v43
      %v124 = vmul.f32 %v122, %v123
      %v125 = vadd.f32 %v43, %v124
      %vm126 = vcmask 516096
      %127 = vst.msk [vmem:[#allocation2] sm:$0x1] %vm126, %v125
      %v128 = vmul.f32 %v124, %v124
      %v129 = vadd.f32 %v128, 0.0
      %v130 = vld [vmem:[%s1] sm:$0xff]
      %v131 = vld [vmem:[%s1 + $0x8] sm:$0xff]
      %v132 = vld [vmem:[%s1 + $0x10] sm:$0xff]
      %v133 = vld [vmem:[%s1 + $0x18] sm:$0xff]
      %135 = vset.pattern.permute.xlu0 0
      %136 = vperm.xlu0 %135, %v130
      %v137 = vpop.permute.xlu0 %136
      %140 = vset.pattern.permute.xlu0 0
      %141 = vperm.xlu0 %140, %v131
      %v142 = vpop.permute.xlu0 %141
      %145 = vset.pattern.permute.xlu0 0
      %146 = vperm.xlu0 %145, %v132
      %v147 = vpop.permute.xlu0 %146
      %150 = vset.pattern.permute.xlu0 0
      %151 = vperm.xlu0 %150, %v133
      %v152 = vpop.permute.xlu0 %151
      %v154 = vperm.slane %v124, 0
      %v155 = vmul.f32 %v137, %v154
      %v156 = vmul.f32 %v142, %v154
      %v157 = vmul.f32 %v147, %v154
      %v158 = vmul.f32 %v152, %v154
      %v159 = vadd.f32 %v82, %v155
      %v160 = vadd.f32 %v85, %v156
      %v161 = vadd.f32 %v88, %v157
      %v162 = vadd.f32 %v91, %v158
      %v163 = vmul.f32 %v159, %v159
      %v164 = vperm.slane %v163, 1
      %v165 = vmul.f32 %v31, %v164
      %v166 = vsel %vm96, %v165, 0.0
      %167 = vadd.xlane.f32.xlu0 %v166
      %v168 = vpop.xlane.xlu0 %167
      %vm169 = vcmp.gt.f32.partialorder %v168, 1e-20
      %v170 = vmax.f32 %v168, 1e-30
      %v171 = vrsqrt.pop %v170
      %v172 = vmul.f32 %v171, %v170
      %v173 = vmul.f32 %v172, %v171
      %v174 = vmul.f32 0.5, %v173
      %v175 = vsub.f32 1.5, %v174
      %v176 = vmul.f32 %v171, %v175
      %vm177 = vweird.f32 %v170
      %vm178 = vweird.f32 %v171
      %vm179 = vmor %vm177, %vm178
      %v180 = vsel %vm179, %v171, %v176
      %v181 = vsel %vm169, %v180, 0.0
      %v182 = vmul.f32 %v181, %v31
      %v184 = vrot.slane %v182, 1
      %v186 = vadd.f32 %v182, %v184
      %v188 = vrot.slane %v186, 7
      %v190 = vmul.f32 %v159, %v188
      %v191 = vsub.f32 0.0, %v190
      %vm192 = vcmp.gt.f32.partialorder %v186, 0.0
      %v194 = vrot.slane %v191, 1
      %v197 = vrot.slane %v43, 1
      %v199 = vsel %vm192, %v194, %v197
      %v200 = vld [vmem:[%s2 + $0x1] sm:$0x1]
      %v201 = vsub.f32 %v199, %v197
      %v202 = vmul.f32 %v200, %v201
      %v204 = vrot.slane %v202, 7
      %v206 = vadd.f32 %v43, %v204
      %vm207 = vcmask 517121
      %208 = vst.msk [vmem:[#allocation2] sm:$0x2] %vm207, %v206
      %v209 = vmul.f32 %v202, %v202
      %v210 = vadd.f32 %v129, %v209
      %s211 = scalar_lea.vmem %s1, 32
      %v212 = vld [vmem:[%s211] sm:$0xff]
      %v213 = vld [vmem:[%s211 + $0x8] sm:$0xff]
      %v214 = vld [vmem:[%s211 + $0x10] sm:$0xff]
      %v215 = vld [vmem:[%s211 + $0x18] sm:$0xff]
      %217 = vset.pattern.permute.xlu0 0
      %218 = vperm.xlu0 %217, %v212
      %v219 = vpop.permute.xlu0 %218
      %222 = vset.pattern.permute.xlu0 0
      %223 = vperm.xlu0 %222, %v213
      %v224 = vpop.permute.xlu0 %223
      %227 = vset.pattern.permute.xlu0 0
      %228 = vperm.xlu0 %227, %v214
      %v229 = vpop.permute.xlu0 %228
      %232 = vset.pattern.permute.xlu0 0
      %233 = vperm.xlu0 %232, %v215
      %v234 = vpop.permute.xlu0 %233
      %v236 = vperm.slane %v202, 0
      %v237 = vmul.f32 %v219, %v236
      %v238 = vmul.f32 %v224, %v236
      %v239 = vmul.f32 %v229, %v236
      %v240 = vmul.f32 %v234, %v236
      %v241 = vadd.f32 %v159, %v237
      %v242 = vadd.f32 %v160, %v238
      %v243 = vadd.f32 %v161, %v239
      %v244 = vadd.f32 %v162, %v240
      %v245 = vmul.f32 %v241, %v241
      %v246 = vperm.slane %v245, 2
      %v247 = vmul.f32 %v31, %v246
      %v248 = vsel %vm96, %v247, 0.0
      %249 = vadd.xlane.f32.xlu0 %v248
      %v250 = vpop.xlane.xlu0 %249
      %vm251 = vcmp.gt.f32.partialorder %v250, 1e-20
      %v252 = vmax.f32 %v250, 1e-30
      %v253 = vrsqrt.pop %v252
      %v254 = vmul.f32 %v253, %v252
      %v255 = vmul.f32 %v254, %v253
      %v256 = vmul.f32 0.5, %v255
      %v257 = vsub.f32 1.5, %v256
      %v258 = vmul.f32 %v253, %v257
      %vm259 = vweird.f32 %v252
      %vm260 = vweird.f32 %v253
      %vm261 = vmor %vm259, %vm260
      %v262 = vsel %vm261, %v253, %v258
      %v263 = vsel %vm251, %v262, 0.0
      %v264 = vmul.f32 %v263, %v31
      %v266 = vrot.slane %v264, 1
      %v268 = vadd.f32 %v264, %v266
      %v270 = vrot.slane %v268, 6
      %v272 = vmul.f32 %v241, %v270
      %v273 = vsub.f32 0.0, %v272
      %vm274 = vcmp.gt.f32.partialorder %v268, 0.0
      %v276 = vrot.slane %v273, 2
      %v278 = vrot.slane %v43, 2
      %v280 = vsel %vm274, %v276, %v278
      %v281 = vld [vmem:[%s2 + $0x2] sm:$0x1]
      %v282 = vsub.f32 %v280, %v278
      %v283 = vmul.f32 %v281, %v282
      %v285 = vrot.slane %v283, 6
      %v287 = vadd.f32 %v43, %v285
      %vm288 = vcmask 518146
      %289 = vst.msk [vmem:[#allocation2] sm:$0x4] %vm288, %v287
      %v290 = vmul.f32 %v283, %v283
      %v291 = vadd.f32 %v210, %v290
      %s292 = scalar_lea.vmem %s1, 64
      %v293 = vld [vmem:[%s292] sm:$0xff]
      %v294 = vld [vmem:[%s292 + $0x8] sm:$0xff]
      %v295 = vld [vmem:[%s292 + $0x10] sm:$0xff]
      %v296 = vld [vmem:[%s292 + $0x18] sm:$0xff]
      %298 = vset.pattern.permute.xlu0 0
      %299 = vperm.xlu0 %298, %v293
      %v300 = vpop.permute.xlu0 %299
      %303 = vset.pattern.permute.xlu0 0
      %304 = vperm.xlu0 %303, %v294
      %v305 = vpop.permute.xlu0 %304
      %308 = vset.pattern.permute.xlu0 0
      %309 = vperm.xlu0 %308, %v295
      %v310 = vpop.permute.xlu0 %309
      %313 = vset.pattern.permute.xlu0 0
      %314 = vperm.xlu0 %313, %v296
      %v315 = vpop.permute.xlu0 %314
      %v317 = vperm.slane %v283, 0
      %v318 = vmul.f32 %v300, %v317
      %v319 = vmul.f32 %v305, %v317
      %v320 = vmul.f32 %v310, %v317
      %v321 = vmul.f32 %v315, %v317
      %v322 = vadd.f32 %v241, %v318
      %v323 = vadd.f32 %v242, %v319
      %v324 = vadd.f32 %v243, %v320
      %v325 = vadd.f32 %v244, %v321
      %v326 = vmul.f32 %v322, %v322
      %v327 = vperm.slane %v326, 3
      %v328 = vmul.f32 %v31, %v327
      %v329 = vsel %vm96, %v328, 0.0
      %330 = vadd.xlane.f32.xlu0 %v329
      %v331 = vpop.xlane.xlu0 %330
      %vm332 = vcmp.gt.f32.partialorder %v331, 1e-20
      %v333 = vmax.f32 %v331, 1e-30
      %v334 = vrsqrt.pop %v333
      %v335 = vmul.f32 %v334, %v333
      %v336 = vmul.f32 %v335, %v334
      %v337 = vmul.f32 0.5, %v336
      %v338 = vsub.f32 1.5, %v337
      %v339 = vmul.f32 %v334, %v338
      %vm340 = vweird.f32 %v333
      %vm341 = vweird.f32 %v334
      %vm342 = vmor %vm340, %vm341
      %v343 = vsel %vm342, %v334, %v339
      %v344 = vsel %vm332, %v343, 0.0
      %v345 = vmul.f32 %v344, %v31
      %v347 = vrot.slane %v345, 1
      %v349 = vadd.f32 %v345, %v347
      %v351 = vrot.slane %v349, 5
      %v353 = vmul.f32 %v322, %v351
      %v354 = vsub.f32 0.0, %v353
      %vm355 = vcmp.gt.f32.partialorder %v349, 0.0
      %v357 = vrot.slane %v354, 3
      %v359 = vrot.slane %v43, 3
      %v361 = vsel %vm355, %v357, %v359
      %v362 = vld [vmem:[%s2 + $0x3] sm:$0x1]
      %v363 = vsub.f32 %v361, %v359
      %v364 = vmul.f32 %v362, %v363
      %v366 = vrot.slane %v364, 5
      %v368 = vadd.f32 %v43, %v366
      %vm369 = vcmask 519171
      %370 = vst.msk [vmem:[#allocation2] sm:$0x8] %vm369, %v368
      %v371 = vmul.f32 %v364, %v364
      %v372 = vadd.f32 %v291, %v371
      %s373 = scalar_lea.vmem %s1, 96
      %v374 = vld [vmem:[%s373] sm:$0xff]
      %v375 = vld [vmem:[%s373 + $0x8] sm:$0xff]
      %v376 = vld [vmem:[%s373 + $0x10] sm:$0xff]
      %v377 = vld [vmem:[%s373 + $0x18] sm:$0xff]
      %379 = vset.pattern.permute.xlu0 0
      %380 = vperm.xlu0 %379, %v374
      %v381 = vpop.permute.xlu0 %380
      %384 = vset.pattern.permute.xlu0 0
      %385 = vperm.xlu0 %384, %v375
      %v386 = vpop.permute.xlu0 %385
      %389 = vset.pattern.permute.xlu0 0
      %390 = vperm.xlu0 %389, %v376
      %v391 = vpop.permute.xlu0 %390
      %394 = vset.pattern.permute.xlu0 0
      %395 = vperm.xlu0 %394, %v377
      %v396 = vpop.permute.xlu0 %395
      %v398 = vperm.slane %v364, 0
      %v399 = vmul.f32 %v381, %v398
      %v400 = vmul.f32 %v386, %v398
      %v401 = vmul.f32 %v391, %v398
      %v402 = vmul.f32 %v396, %v398
      %v403 = vadd.f32 %v322, %v399
      %v404 = vadd.f32 %v323, %v400
      %v405 = vadd.f32 %v324, %v401
      %v406 = vadd.f32 %v325, %v402
      %v407 = vmul.f32 %v403, %v403
      %v408 = vperm.slane %v407, 4
      %v409 = vmul.f32 %v31, %v408
      %v410 = vsel %vm96, %v409, 0.0
      %411 = vadd.xlane.f32.xlu0 %v410
      %v412 = vpop.xlane.xlu0 %411
      %vm413 = vcmp.gt.f32.partialorder %v412, 1e-20
      %v414 = vmax.f32 %v412, 1e-30
      %v415 = vrsqrt.pop %v414
      %v416 = vmul.f32 %v415, %v414
      %v417 = vmul.f32 %v416, %v415
      %v418 = vmul.f32 0.5, %v417
      %v419 = vsub.f32 1.5, %v418
      %v420 = vmul.f32 %v415, %v419
      %vm421 = vweird.f32 %v414
      %vm422 = vweird.f32 %v415
      %vm423 = vmor %vm421, %vm422
      %v424 = vsel %vm423, %v415, %v420
      %v425 = vsel %vm413, %v424, 0.0
      %v426 = vmul.f32 %v425, %v31
      %v428 = vrot.slane %v426, 1
      %v430 = vadd.f32 %v426, %v428
      %v432 = vrot.slane %v430, 4
      %v434 = vmul.f32 %v403, %v432
      %v435 = vsub.f32 0.0, %v434
      %vm436 = vcmp.gt.f32.partialorder %v430, 0.0
      %v438 = vrot.slane %v435, 4
      %v440 = vrot.slane %v43, 4
      %v442 = vsel %vm436, %v438, %v440
      %v443 = vld [vmem:[%s2 + $0x4] sm:$0x1]
      %v444 = vsub.f32 %v442, %v440
      %v445 = vmul.f32 %v443, %v444
      %v447 = vrot.slane %v445, 4
      %v449 = vadd.f32 %v43, %v447
      %vm450 = vcmask 520196
      %451 = vst.msk [vmem:[#allocation2] sm:$0x10] %vm450, %v449
      %v452 = vmul.f32 %v445, %v445
      %v453 = vadd.f32 %v372, %v452
      %s454 = scalar_lea.vmem %s1, 128
      %v455 = vld [vmem:[%s454] sm:$0xff]
      %v456 = vld [vmem:[%s454 + $0x8] sm:$0xff]
      %v457 = vld [vmem:[%s454 + $0x10] sm:$0xff]
      %v458 = vld [vmem:[%s454 + $0x18] sm:$0xff]
      %460 = vset.pattern.permute.xlu0 0
      %461 = vperm.xlu0 %460, %v455
      %v462 = vpop.permute.xlu0 %461
      %465 = vset.pattern.permute.xlu0 0
      %466 = vperm.xlu0 %465, %v456
      %v467 = vpop.permute.xlu0 %466
      %470 = vset.pattern.permute.xlu0 0
      %471 = vperm.xlu0 %470, %v457
      %v472 = vpop.permute.xlu0 %471
      %475 = vset.pattern.permute.xlu0 0
      %476 = vperm.xlu0 %475, %v458
      %v477 = vpop.permute.xlu0 %476
      %v479 = vperm.slane %v445, 0
      %v480 = vmul.f32 %v462, %v479
      %v481 = vmul.f32 %v467, %v479
      %v482 = vmul.f32 %v472, %v479
      %v483 = vmul.f32 %v477, %v479
      %v484 = vadd.f32 %v403, %v480
      %v485 = vadd.f32 %v404, %v481
      %v486 = vadd.f32 %v405, %v482
      %v487 = vadd.f32 %v406, %v483
      %v488 = vmul.f32 %v484, %v484
      %v489 = vperm.slane %v488, 5
      %v490 = vmul.f32 %v31, %v489
      %v491 = vsel %vm96, %v490, 0.0
      %492 = vadd.xlane.f32.xlu0 %v491
      %v493 = vpop.xlane.xlu0 %492
      %vm494 = vcmp.gt.f32.partialorder %v493, 1e-20
      %v495 = vmax.f32 %v493, 1e-30
      %v496 = vrsqrt.pop %v495
      %v497 = vmul.f32 %v496, %v495
      %v498 = vmul.f32 %v497, %v496
      %v499 = vmul.f32 0.5, %v498
      %v500 = vsub.f32 1.5, %v499
      %v501 = vmul.f32 %v496, %v500
      %vm502 = vweird.f32 %v495
      %vm503 = vweird.f32 %v496
      %vm504 = vmor %vm502, %vm503
      %v505 = vsel %vm504, %v496, %v501
      %v506 = vsel %vm494, %v505, 0.0
      %v507 = vmul.f32 %v506, %v31
      %v509 = vrot.slane %v507, 1
      %v511 = vadd.f32 %v507, %v509
      %v513 = vrot.slane %v511, 3
      %v515 = vmul.f32 %v484, %v513
      %v516 = vsub.f32 0.0, %v515
      %vm517 = vcmp.gt.f32.partialorder %v511, 0.0
      %v519 = vrot.slane %v516, 5
      %v521 = vrot.slane %v43, 5
      %v523 = vsel %vm517, %v519, %v521
      %v524 = vld [vmem:[%s2 + $0x5] sm:$0x1]
      %v525 = vsub.f32 %v523, %v521
      %v526 = vmul.f32 %v524, %v525
      %v528 = vrot.slane %v526, 3
      %v530 = vadd.f32 %v43, %v528
      %vm531 = vcmask 521221
      %532 = vst.msk [vmem:[#allocation2] sm:$0x20] %vm531, %v530
      %v533 = vmul.f32 %v526, %v526
      %v534 = vadd.f32 %v453, %v533
      %s535 = scalar_lea.vmem %s1, 160
      %v536 = vld [vmem:[%s535] sm:$0xff]
      %v537 = vld [vmem:[%s535 + $0x8] sm:$0xff]
      %v538 = vld [vmem:[%s535 + $0x10] sm:$0xff]
      %v539 = vld [vmem:[%s535 + $0x18] sm:$0xff]
      %541 = vset.pattern.permute.xlu0 0
      %542 = vperm.xlu0 %541, %v536
      %v543 = vpop.permute.xlu0 %542
      %546 = vset.pattern.permute.xlu0 0
      %547 = vperm.xlu0 %546, %v537
      %v548 = vpop.permute.xlu0 %547
      %551 = vset.pattern.permute.xlu0 0
      %552 = vperm.xlu0 %551, %v538
      %v553 = vpop.permute.xlu0 %552
      %556 = vset.pattern.permute.xlu0 0
      %557 = vperm.xlu0 %556, %v539
      %v558 = vpop.permute.xlu0 %557
      %v560 = vperm.slane %v526, 0
      %v561 = vmul.f32 %v543, %v560
      %v562 = vmul.f32 %v548, %v560
      %v563 = vmul.f32 %v553, %v560
      %v564 = vmul.f32 %v558, %v560
      %v565 = vadd.f32 %v484, %v561
      %v566 = vadd.f32 %v485, %v562
      %v567 = vadd.f32 %v486, %v563
      %v568 = vadd.f32 %v487, %v564
      %v569 = vmul.f32 %v565, %v565
      %v570 = vperm.slane %v569, 6
      %v571 = vmul.f32 %v31, %v570
      %v572 = vsel %vm96, %v571, 0.0
      %573 = vadd.xlane.f32.xlu0 %v572
      %v574 = vpop.xlane.xlu0 %573
      %vm575 = vcmp.gt.f32.partialorder %v574, 1e-20
      %v576 = vmax.f32 %v574, 1e-30
      %v577 = vrsqrt.pop %v576
      %v578 = vmul.f32 %v577, %v576
      %v579 = vmul.f32 %v578, %v577
      %v580 = vmul.f32 0.5, %v579
      %v581 = vsub.f32 1.5, %v580
      %v582 = vmul.f32 %v577, %v581
      %vm583 = vweird.f32 %v576
      %vm584 = vweird.f32 %v577
      %vm585 = vmor %vm583, %vm584
      %v586 = vsel %vm585, %v577, %v582
      %v587 = vsel %vm575, %v586, 0.0
      %v588 = vmul.f32 %v587, %v31
      %v590 = vrot.slane %v588, 1
      %v592 = vadd.f32 %v588, %v590
      %v594 = vrot.slane %v592, 2
      %v596 = vmul.f32 %v565, %v594
      %v597 = vsub.f32 0.0, %v596
      %vm598 = vcmp.gt.f32.partialorder %v592, 0.0
      %v600 = vrot.slane %v597, 6
      %v602 = vrot.slane %v43, 6
      %v604 = vsel %vm598, %v600, %v602
      %v605 = vld [vmem:[%s2 + $0x6] sm:$0x1]
      %v606 = vsub.f32 %v604, %v602
      %v607 = vmul.f32 %v605, %v606
      %v609 = vrot.slane %v607, 2
      %v611 = vadd.f32 %v43, %v609
      %vm612 = vcmask 522246
      %613 = vst.msk [vmem:[#allocation2] sm:$0x40] %vm612, %v611
      %v614 = vmul.f32 %v607, %v607
      %v615 = vadd.f32 %v534, %v614
      %s616 = scalar_lea.vmem %s1, 192
      %v617 = vld [vmem:[%s616] sm:$0xff]
      %v618 = vld [vmem:[%s616 + $0x8] sm:$0xff]
      %v619 = vld [vmem:[%s616 + $0x10] sm:$0xff]
      %v620 = vld [vmem:[%s616 + $0x18] sm:$0xff]
      %622 = vset.pattern.permute.xlu0 0
      %623 = vperm.xlu0 %622, %v617
      %v624 = vpop.permute.xlu0 %623
      %627 = vset.pattern.permute.xlu0 0
      %628 = vperm.xlu0 %627, %v618
      %v629 = vpop.permute.xlu0 %628
      %632 = vset.pattern.permute.xlu0 0
      %633 = vperm.xlu0 %632, %v619
      %v634 = vpop.permute.xlu0 %633
      %637 = vset.pattern.permute.xlu0 0
      %638 = vperm.xlu0 %637, %v620
      %v639 = vpop.permute.xlu0 %638
      %v641 = vperm.slane %v607, 0
      %v642 = vmul.f32 %v624, %v641
      %v643 = vmul.f32 %v629, %v641
      %v644 = vmul.f32 %v634, %v641
      %v645 = vmul.f32 %v639, %v641
      %v646 = vadd.f32 %v565, %v642
      %v647 = vadd.f32 %v566, %v643
      %v648 = vadd.f32 %v567, %v644
      %v649 = vadd.f32 %v568, %v645
      %v650 = vmul.f32 %v646, %v646
      %v651 = vperm.slane %v650, 7
      %v652 = vmul.f32 %v31, %v651
      %v653 = vsel %vm96, %v652, 0.0
      %654 = vadd.xlane.f32.xlu0 %v653
      %v655 = vpop.xlane.xlu0 %654
      %vm656 = vcmp.gt.f32.partialorder %v655, 1e-20
      %v657 = vmax.f32 %v655, 1e-30
      %v658 = vrsqrt.pop %v657
      %v659 = vmul.f32 %v658, %v657
      %v660 = vmul.f32 %v659, %v658
      %v661 = vmul.f32 0.5, %v660
      %v662 = vsub.f32 1.5, %v661
      %v663 = vmul.f32 %v658, %v662
      %vm664 = vweird.f32 %v657
      %vm665 = vweird.f32 %v658
      %vm666 = vmor %vm664, %vm665
      %v667 = vsel %vm666, %v658, %v663
      %v668 = vsel %vm656, %v667, 0.0
      %v669 = vmul.f32 %v668, %v31
      %v671 = vrot.slane %v669, 1
      %v673 = vadd.f32 %v669, %v671
      %v675 = vrot.slane %v673, 1
      %v677 = vmul.f32 %v646, %v675
      %v678 = vsub.f32 0.0, %v677
      %vm679 = vcmp.gt.f32.partialorder %v673, 0.0
      %v681 = vrot.slane %v678, 7
      %v683 = vrot.slane %v43, 7
      %v685 = vsel %vm679, %v681, %v683
      %v686 = vld [vmem:[%s2 + $0x7] sm:$0x1]
      %v687 = vsub.f32 %v685, %v683
      %v688 = vmul.f32 %v686, %v687
      %v690 = vrot.slane %v688, 1
      %v692 = vadd.f32 %v43, %v690
      %vm693 = vcmask 523271
      %694 = vst.msk [vmem:[#allocation2] sm:$0x80] %vm693, %v692
      %v695 = vmul.f32 %v688, %v688
      %v696 = vadd.f32 %v615, %v695
      %s697 = scalar_lea.vmem %s1, 224
      %v698 = vld [vmem:[%s697 + $0x8] sm:$0xff]
      %v699 = vld [vmem:[%s697 + $0x10] sm:$0xff]
      %v700 = vld [vmem:[%s697 + $0x18] sm:$0xff]
      %702 = vset.pattern.permute.xlu0 0
      %703 = vperm.xlu0 %702, %v698
      %v704 = vpop.permute.xlu0 %703
      %707 = vset.pattern.permute.xlu0 0
      %708 = vperm.xlu0 %707, %v699
      %v709 = vpop.permute.xlu0 %708
      %712 = vset.pattern.permute.xlu0 0
      %713 = vperm.xlu0 %712, %v700
      %v714 = vpop.permute.xlu0 %713
      %v716 = vperm.slane %v688, 0
      %v717 = vmul.f32 %v704, %v716
      %v718 = vmul.f32 %v709, %v716
      %v719 = vmul.f32 %v714, %v716
      %v720 = vadd.f32 %v647, %v717
      %v721 = vadd.f32 %v648, %v718
      %v722 = vadd.f32 %v649, %v719
      %v723 = vmul.f32 %v720, %v720
      %v724 = vperm.slane %v723, 0
      %v725 = vmul.f32 %v31, %v724
      %v726 = vsel %vm96, %v725, 0.0
      %727 = vadd.xlane.f32.xlu0 %v726
      %v728 = vpop.xlane.xlu0 %727
      %vm729 = vcmp.gt.f32.partialorder %v728, 1e-20
      %v730 = vmax.f32 %v728, 1e-30
      %v731 = vrsqrt.pop %v730
      %v732 = vmul.f32 %v731, %v730
      %v733 = vmul.f32 %v732, %v731
      %v734 = vmul.f32 0.5, %v733
      %v735 = vsub.f32 1.5, %v734
      %v736 = vmul.f32 %v731, %v735
      %vm737 = vweird.f32 %v730
      %vm738 = vweird.f32 %v731
      %vm739 = vmor %vm737, %vm738
      %v740 = vsel %vm739, %v731, %v736
      %v741 = vsel %vm729, %v740, 0.0
      %v742 = vmul.f32 %v741, %v31
      %v744 = vrot.slane %v742, 1
      %v746 = vadd.f32 %v742, %v744
      %v747 = vmul.f32 %v720, %v746
      %v748 = vsub.f32 0.0, %v747
      %vm749 = vcmp.gt.f32.partialorder %v746, 0.0
      %v750 = vsel %vm749, %v748, %v44
      %v751 = vld [vmem:[%s2 + $0x8] sm:$0x1]
      %v752 = vsub.f32 %v750, %v44
      %v753 = vmul.f32 %v751, %v752
      %v754 = vadd.f32 %v44, %v753
      %755 = vst.msk [vmem:[#allocation2 + $0x8] sm:$0x1] %vm126, %v754
      %v756 = vmul.f32 %v753, %v753
      %v757 = vadd.f32 %v696, %v756
      %s758 = scalar_lea.vmem %s1, 256
      %v759 = vld [vmem:[%s758 + $0x8] sm:$0xff]
      %v760 = vld [vmem:[%s758 + $0x10] sm:$0xff]
      %v761 = vld [vmem:[%s758 + $0x18] sm:$0xff]
      %763 = vset.pattern.permute.xlu0 0
      %764 = vperm.xlu0 %763, %v759
      %v765 = vpop.permute.xlu0 %764
      %768 = vset.pattern.permute.xlu0 0
      %769 = vperm.xlu0 %768, %v760
      %v770 = vpop.permute.xlu0 %769
      %773 = vset.pattern.permute.xlu0 0
      %774 = vperm.xlu0 %773, %v761
      %v775 = vpop.permute.xlu0 %774
      %v777 = vperm.slane %v753, 0
      %v778 = vmul.f32 %v765, %v777
      %v779 = vmul.f32 %v770, %v777
      %v780 = vmul.f32 %v775, %v777
      %v781 = vadd.f32 %v720, %v778
      %v782 = vadd.f32 %v721, %v779
      %v783 = vadd.f32 %v722, %v780
      %v784 = vmul.f32 %v781, %v781
      %v785 = vperm.slane %v784, 1
      %v786 = vmul.f32 %v31, %v785
      %v787 = vsel %vm96, %v786, 0.0
      %788 = vadd.xlane.f32.xlu0 %v787
      %v789 = vpop.xlane.xlu0 %788
      %vm790 = vcmp.gt.f32.partialorder %v789, 1e-20
      %v791 = vmax.f32 %v789, 1e-30
      %v792 = vrsqrt.pop %v791
      %v793 = vmul.f32 %v792, %v791
      %v794 = vmul.f32 %v793, %v792
      %v795 = vmul.f32 0.5, %v794
      %v796 = vsub.f32 1.5, %v795
      %v797 = vmul.f32 %v792, %v796
      %vm798 = vweird.f32 %v791
      %vm799 = vweird.f32 %v792
      %vm800 = vmor %vm798, %vm799
      %v801 = vsel %vm800, %v792, %v797
      %v802 = vsel %vm790, %v801, 0.0
      %v803 = vmul.f32 %v802, %v31
      %v805 = vrot.slane %v803, 1
      %v807 = vadd.f32 %v803, %v805
      %v809 = vrot.slane %v807, 7
      %v811 = vmul.f32 %v781, %v809
      %v812 = vsub.f32 0.0, %v811
      %vm813 = vcmp.gt.f32.partialorder %v807, 0.0
      %v815 = vrot.slane %v812, 1
      %v818 = vrot.slane %v44, 1
      %v820 = vsel %vm813, %v815, %v818
      %v821 = vld [vmem:[%s2 + $0x9] sm:$0x1]
      %v822 = vsub.f32 %v820, %v818
      %v823 = vmul.f32 %v821, %v822
      %v825 = vrot.slane %v823, 7
      %v827 = vadd.f32 %v44, %v825
      %828 = vst.msk [vmem:[#allocation2 + $0x8] sm:$0x2] %vm207, %v827
      %v829 = vmul.f32 %v823, %v823
      %v830 = vadd.f32 %v757, %v829
      %s831 = scalar_lea.vmem %s1, 288
      %v832 = vld [vmem:[%s831 + $0x8] sm:$0xff]
      %v833 = vld [vmem:[%s831 + $0x10] sm:$0xff]
      %v834 = vld [vmem:[%s831 + $0x18] sm:$0xff]
      %836 = vset.pattern.permute.xlu0 0
      %837 = vperm.xlu0 %836, %v832
      %v838 = vpop.permute.xlu0 %837
      %841 = vset.pattern.permute.xlu0 0
      %842 = vperm.xlu0 %841, %v833
      %v843 = vpop.permute.xlu0 %842
      %846 = vset.pattern.permute.xlu0 0
      %847 = vperm.xlu0 %846, %v834
      %v848 = vpop.permute.xlu0 %847
      %v850 = vperm.slane %v823, 0
      %v851 = vmul.f32 %v838, %v850
      %v852 = vmul.f32 %v843, %v850
      %v853 = vmul.f32 %v848, %v850
      %v854 = vadd.f32 %v781, %v851
      %v855 = vadd.f32 %v782, %v852
      %v856 = vadd.f32 %v783, %v853
      %v857 = vmul.f32 %v854, %v854
      %v858 = vperm.slane %v857, 2
      %v859 = vmul.f32 %v31, %v858
      %v860 = vsel %vm96, %v859, 0.0
      %861 = vadd.xlane.f32.xlu0 %v860
      %v862 = vpop.xlane.xlu0 %861
      %vm863 = vcmp.gt.f32.partialorder %v862, 1e-20
      %v864 = vmax.f32 %v862, 1e-30
      %v865 = vrsqrt.pop %v864
      %v866 = vmul.f32 %v865, %v864
      %v867 = vmul.f32 %v866, %v865
      %v868 = vmul.f32 0.5, %v867
      %v869 = vsub.f32 1.5, %v868
      %v870 = vmul.f32 %v865, %v869
      %vm871 = vweird.f32 %v864
      %vm872 = vweird.f32 %v865
      %vm873 = vmor %vm871, %vm872
      %v874 = vsel %vm873, %v865, %v870
      %v875 = vsel %vm863, %v874, 0.0
      %v876 = vmul.f32 %v875, %v31
      %v878 = vrot.slane %v876, 1
      %v880 = vadd.f32 %v876, %v878
      %v882 = vrot.slane %v880, 6
      %v884 = vmul.f32 %v854, %v882
      %v885 = vsub.f32 0.0, %v884
      %vm886 = vcmp.gt.f32.partialorder %v880, 0.0
      %v888 = vrot.slane %v885, 2
      %v890 = vrot.slane %v44, 2
      %v892 = vsel %vm886, %v888, %v890
      %v893 = vld [vmem:[%s2 + $0xa] sm:$0x1]
      %v894 = vsub.f32 %v892, %v890
      %v895 = vmul.f32 %v893, %v894
      %v897 = vrot.slane %v895, 6
      %v899 = vadd.f32 %v44, %v897
      %900 = vst.msk [vmem:[#allocation2 + $0x8] sm:$0x4] %vm288, %v899
      %v901 = vmul.f32 %v895, %v895
      %v902 = vadd.f32 %v830, %v901
      %s903 = scalar_lea.vmem %s1, 320
      %v904 = vld [vmem:[%s903 + $0x8] sm:$0xff]
      %v905 = vld [vmem:[%s903 + $0x10] sm:$0xff]
      %v906 = vld [vmem:[%s903 + $0x18] sm:$0xff]
      %908 = vset.pattern.permute.xlu0 0
      %909 = vperm.xlu0 %908, %v904
      %v910 = vpop.permute.xlu0 %909
      %913 = vset.pattern.permute.xlu0 0
      %914 = vperm.xlu0 %913, %v905
      %v915 = vpop.permute.xlu0 %914
      %918 = vset.pattern.permute.xlu0 0
      %919 = vperm.xlu0 %918, %v906
      %v920 = vpop.permute.xlu0 %919
      %v922 = vperm.slane %v895, 0
      %v923 = vmul.f32 %v910, %v922
      %v924 = vmul.f32 %v915, %v922
      %v925 = vmul.f32 %v920, %v922
      %v926 = vadd.f32 %v854, %v923
      %v927 = vadd.f32 %v855, %v924
      %v928 = vadd.f32 %v856, %v925
      %v929 = vmul.f32 %v926, %v926
      %v930 = vperm.slane %v929, 3
      %v931 = vmul.f32 %v31, %v930
      %v932 = vsel %vm96, %v931, 0.0
      %933 = vadd.xlane.f32.xlu0 %v932
      %v934 = vpop.xlane.xlu0 %933
      %vm935 = vcmp.gt.f32.partialorder %v934, 1e-20
      %v936 = vmax.f32 %v934, 1e-30
      %v937 = vrsqrt.pop %v936
      %v938 = vmul.f32 %v937, %v936
      %v939 = vmul.f32 %v938, %v937
      %v940 = vmul.f32 0.5, %v939
      %v941 = vsub.f32 1.5, %v940
      %v942 = vmul.f32 %v937, %v941
      %vm943 = vweird.f32 %v936
      %vm944 = vweird.f32 %v937
      %vm945 = vmor %vm943, %vm944
      %v946 = vsel %vm945, %v937, %v942
      %v947 = vsel %vm935, %v946, 0.0
      %v948 = vmul.f32 %v947, %v31
      %v950 = vrot.slane %v948, 1
      %v952 = vadd.f32 %v948, %v950
      %v954 = vrot.slane %v952, 5
      %v956 = vmul.f32 %v926, %v954
      %v957 = vsub.f32 0.0, %v956
      %vm958 = vcmp.gt.f32.partialorder %v952, 0.0
      %v960 = vrot.slane %v957, 3
      %v962 = vrot.slane %v44, 3
      %v964 = vsel %vm958, %v960, %v962
      %v965 = vld [vmem:[%s2 + $0xb] sm:$0x1]
      %v966 = vsub.f32 %v964, %v962
      %v967 = vmul.f32 %v965, %v966
      %v969 = vrot.slane %v967, 5
      %v971 = vadd.f32 %v44, %v969
      %972 = vst.msk [vmem:[#allocation2 + $0x8] sm:$0x8] %vm369, %v971
      %v973 = vmul.f32 %v967, %v967
      %v974 = vadd.f32 %v902, %v973
      %s975 = scalar_lea.vmem %s1, 352
      %v976 = vld [vmem:[%s975 + $0x8] sm:$0xff]
      %v977 = vld [vmem:[%s975 + $0x10] sm:$0xff]
      %v978 = vld [vmem:[%s975 + $0x18] sm:$0xff]
      %980 = vset.pattern.permute.xlu0 0
      %981 = vperm.xlu0 %980, %v976
      %v982 = vpop.permute.xlu0 %981
      %985 = vset.pattern.permute.xlu0 0
      %986 = vperm.xlu0 %985, %v977
      %v987 = vpop.permute.xlu0 %986
      %990 = vset.pattern.permute.xlu0 0
      %991 = vperm.xlu0 %990, %v978
      %v992 = vpop.permute.xlu0 %991
      %v994 = vperm.slane %v967, 0
      %v995 = vmul.f32 %v982, %v994
      %v996 = vmul.f32 %v987, %v994
      %v997 = vmul.f32 %v992, %v994
      %v998 = vadd.f32 %v926, %v995
      %v999 = vadd.f32 %v927, %v996
      %v1000 = vadd.f32 %v928, %v997
      %v1001 = vmul.f32 %v998, %v998
      %v1002 = vperm.slane %v1001, 4
      %v1003 = vmul.f32 %v31, %v1002
      %v1004 = vsel %vm96, %v1003, 0.0
      %1005 = vadd.xlane.f32.xlu0 %v1004
      %v1006 = vpop.xlane.xlu0 %1005
      %vm1007 = vcmp.gt.f32.partialorder %v1006, 1e-20
      %v1008 = vmax.f32 %v1006, 1e-30
      %v1009 = vrsqrt.pop %v1008
      %v1010 = vmul.f32 %v1009, %v1008
      %v1011 = vmul.f32 %v1010, %v1009
      %v1012 = vmul.f32 0.5, %v1011
      %v1013 = vsub.f32 1.5, %v1012
      %v1014 = vmul.f32 %v1009, %v1013
      %vm1015 = vweird.f32 %v1008
      %vm1016 = vweird.f32 %v1009
      %vm1017 = vmor %vm1015, %vm1016
      %v1018 = vsel %vm1017, %v1009, %v1014
      %v1019 = vsel %vm1007, %v1018, 0.0
      %v1020 = vmul.f32 %v1019, %v31
      %v1022 = vrot.slane %v1020, 1
      %v1024 = vadd.f32 %v1020, %v1022
      %v1026 = vrot.slane %v1024, 4
      %v1028 = vmul.f32 %v998, %v1026
      %v1029 = vsub.f32 0.0, %v1028
      %vm1030 = vcmp.gt.f32.partialorder %v1024, 0.0
      %v1032 = vrot.slane %v1029, 4
      %v1034 = vrot.slane %v44, 4
      %v1036 = vsel %vm1030, %v1032, %v1034
      %v1037 = vld [vmem:[%s2 + $0xc] sm:$0x1]
      %v1038 = vsub.f32 %v1036, %v1034
      %v1039 = vmul.f32 %v1037, %v1038
      %v1041 = vrot.slane %v1039, 4
      %v1043 = vadd.f32 %v44, %v1041
      %1044 = vst.msk [vmem:[#allocation2 + $0x8] sm:$0x10] %vm450, %v1043
      %v1045 = vmul.f32 %v1039, %v1039
      %v1046 = vadd.f32 %v974, %v1045
      %s1047 = scalar_lea.vmem %s1, 384
      %v1048 = vld [vmem:[%s1047 + $0x8] sm:$0xff]
      %v1049 = vld [vmem:[%s1047 + $0x10] sm:$0xff]
      %v1050 = vld [vmem:[%s1047 + $0x18] sm:$0xff]
      %1052 = vset.pattern.permute.xlu0 0
      %1053 = vperm.xlu0 %1052, %v1048
      %v1054 = vpop.permute.xlu0 %1053
      %1057 = vset.pattern.permute.xlu0 0
      %1058 = vperm.xlu0 %1057, %v1049
      %v1059 = vpop.permute.xlu0 %1058
      %1062 = vset.pattern.permute.xlu0 0
      %1063 = vperm.xlu0 %1062, %v1050
      %v1064 = vpop.permute.xlu0 %1063
      %v1066 = vperm.slane %v1039, 0
      %v1067 = vmul.f32 %v1054, %v1066
      %v1068 = vmul.f32 %v1059, %v1066
      %v1069 = vmul.f32 %v1064, %v1066
      %v1070 = vadd.f32 %v998, %v1067
      %v1071 = vadd.f32 %v999, %v1068
      %v1072 = vadd.f32 %v1000, %v1069
      %v1073 = vmul.f32 %v1070, %v1070
      %v1074 = vperm.slane %v1073, 5
      %v1075 = vmul.f32 %v31, %v1074
      %v1076 = vsel %vm96, %v1075, 0.0
      %1077 = vadd.xlane.f32.xlu0 %v1076
      %v1078 = vpop.xlane.xlu0 %1077
      %vm1079 = vcmp.gt.f32.partialorder %v1078, 1e-20
      %v1080 = vmax.f32 %v1078, 1e-30
      %v1081 = vrsqrt.pop %v1080
      %v1082 = vmul.f32 %v1081, %v1080
      %v1083 = vmul.f32 %v1082, %v1081
      %v1084 = vmul.f32 0.5, %v1083
      %v1085 = vsub.f32 1.5, %v1084
      %v1086 = vmul.f32 %v1081, %v1085
      %vm1087 = vweird.f32 %v1080
      %vm1088 = vweird.f32 %v1081
      %vm1089 = vmor %vm1087, %vm1088
      %v1090 = vsel %vm1089, %v1081, %v1086
      %v1091 = vsel %vm1079, %v1090, 0.0
      %v1092 = vmul.f32 %v1091, %v31
      %v1094 = vrot.slane %v1092, 1
      %v1096 = vadd.f32 %v1092, %v1094
      %v1098 = vrot.slane %v1096, 3
      %v1100 = vmul.f32 %v1070, %v1098
      %v1101 = vsub.f32 0.0, %v1100
      %vm1102 = vcmp.gt.f32.partialorder %v1096, 0.0
      %v1104 = vrot.slane %v1101, 5
      %v1106 = vrot.slane %v44, 5
      %v1108 = vsel %vm1102, %v1104, %v1106
      %v1109 = vld [vmem:[%s2 + $0xd] sm:$0x1]
      %v1110 = vsub.f32 %v1108, %v1106
      %v1111 = vmul.f32 %v1109, %v1110
      %v1113 = vrot.slane %v1111, 3
      %v1115 = vadd.f32 %v44, %v1113
      %1116 = vst.msk [vmem:[#allocation2 + $0x8] sm:$0x20] %vm531, %v1115
      %v1117 = vmul.f32 %v1111, %v1111
      %v1118 = vadd.f32 %v1046, %v1117
      %s1119 = scalar_lea.vmem %s1, 416
      %v1120 = vld [vmem:[%s1119 + $0x8] sm:$0xff]
      %v1121 = vld [vmem:[%s1119 + $0x10] sm:$0xff]
      %v1122 = vld [vmem:[%s1119 + $0x18] sm:$0xff]
      %1124 = vset.pattern.permute.xlu0 0
      %1125 = vperm.xlu0 %1124, %v1120
      %v1126 = vpop.permute.xlu0 %1125
      %1129 = vset.pattern.permute.xlu0 0
      %1130 = vperm.xlu0 %1129, %v1121
      %v1131 = vpop.permute.xlu0 %1130
      %1134 = vset.pattern.permute.xlu0 0
      %1135 = vperm.xlu0 %1134, %v1122
      %v1136 = vpop.permute.xlu0 %1135
      %v1138 = vperm.slane %v1111, 0
      %v1139 = vmul.f32 %v1126, %v1138
      %v1140 = vmul.f32 %v1131, %v1138
      %v1141 = vmul.f32 %v1136, %v1138
      %v1142 = vadd.f32 %v1070, %v1139
      %v1143 = vadd.f32 %v1071, %v1140
      %v1144 = vadd.f32 %v1072, %v1141
      %v1145 = vmul.f32 %v1142, %v1142
      %v1146 = vperm.slane %v1145, 6
      %v1147 = vmul.f32 %v31, %v1146
      %v1148 = vsel %vm96, %v1147, 0.0
      %1149 = vadd.xlane.f32.xlu0 %v1148
      %v1150 = vpop.xlane.xlu0 %1149
      %vm1151 = vcmp.gt.f32.partialorder %v1150, 1e-20
      %v1152 = vmax.f32 %v1150, 1e-30
      %v1153 = vrsqrt.pop %v1152
      %v1154 = vmul.f32 %v1153, %v1152
      %v1155 = vmul.f32 %v1154, %v1153
      %v1156 = vmul.f32 0.5, %v1155
      %v1157 = vsub.f32 1.5, %v1156
      %v1158 = vmul.f32 %v1153, %v1157
      %vm1159 = vweird.f32 %v1152
      %vm1160 = vweird.f32 %v1153
      %vm1161 = vmor %vm1159, %vm1160
      %v1162 = vsel %vm1161, %v1153, %v1158
      %v1163 = vsel %vm1151, %v1162, 0.0
      %v1164 = vmul.f32 %v1163, %v31
      %v1166 = vrot.slane %v1164, 1
      %v1168 = vadd.f32 %v1164, %v1166
      %v1170 = vrot.slane %v1168, 2
      %v1172 = vmul.f32 %v1142, %v1170
      %v1173 = vsub.f32 0.0, %v1172
      %vm1174 = vcmp.gt.f32.partialorder %v1168, 0.0
      %v1176 = vrot.slane %v1173, 6
      %v1178 = vrot.slane %v44, 6
      %v1180 = vsel %vm1174, %v1176, %v1178
      %v1181 = vld [vmem:[%s2 + $0xe] sm:$0x1]
      %v1182 = vsub.f32 %v1180, %v1178
      %v1183 = vmul.f32 %v1181, %v1182
      %v1185 = vrot.slane %v1183, 2
      %v1187 = vadd.f32 %v44, %v1185
      %1188 = vst.msk [vmem:[#allocation2 + $0x8] sm:$0x40] %vm612, %v1187
      %v1189 = vmul.f32 %v1183, %v1183
      %v1190 = vadd.f32 %v1118, %v1189
      %s1191 = scalar_lea.vmem %s1, 448
      %v1192 = vld [vmem:[%s1191 + $0x8] sm:$0xff]
      %v1193 = vld [vmem:[%s1191 + $0x10] sm:$0xff]
      %v1194 = vld [vmem:[%s1191 + $0x18] sm:$0xff]
      %1196 = vset.pattern.permute.xlu0 0
      %1197 = vperm.xlu0 %1196, %v1192
      %v1198 = vpop.permute.xlu0 %1197
      %1201 = vset.pattern.permute.xlu0 0
      %1202 = vperm.xlu0 %1201, %v1193
      %v1203 = vpop.permute.xlu0 %1202
      %1206 = vset.pattern.permute.xlu0 0
      %1207 = vperm.xlu0 %1206, %v1194
      %v1208 = vpop.permute.xlu0 %1207
      %v1210 = vperm.slane %v1183, 0
      %v1211 = vmul.f32 %v1198, %v1210
      %v1212 = vmul.f32 %v1203, %v1210
      %v1213 = vmul.f32 %v1208, %v1210
      %v1214 = vadd.f32 %v1142, %v1211
      %v1215 = vadd.f32 %v1143, %v1212
      %v1216 = vadd.f32 %v1144, %v1213
      %v1217 = vmul.f32 %v1214, %v1214
      %v1218 = vperm.slane %v1217, 7
      %v1219 = vmul.f32 %v31, %v1218
      %v1220 = vsel %vm96, %v1219, 0.0
      %1221 = vadd.xlane.f32.xlu0 %v1220
      %v1222 = vpop.xlane.xlu0 %1221
      %vm1223 = vcmp.gt.f32.partialorder %v1222, 1e-20
      %v1224 = vmax.f32 %v1222, 1e-30
      %v1225 = vrsqrt.pop %v1224
      %v1226 = vmul.f32 %v1225, %v1224
      %v1227 = vmul.f32 %v1226, %v1225
      %v1228 = vmul.f32 0.5, %v1227
      %v1229 = vsub.f32 1.5, %v1228
      %v1230 = vmul.f32 %v1225, %v1229
      %vm1231 = vweird.f32 %v1224
      %vm1232 = vweird.f32 %v1225
      %vm1233 = vmor %vm1231, %vm1232
      %v1234 = vsel %vm1233, %v1225, %v1230
      %v1235 = vsel %vm1223, %v1234, 0.0
      %v1236 = vmul.f32 %v1235, %v31
      %v1238 = vrot.slane %v1236, 1
      %v1240 = vadd.f32 %v1236, %v1238
      %v1242 = vrot.slane %v1240, 1
      %v1244 = vmul.f32 %v1214, %v1242
      %v1245 = vsub.f32 0.0, %v1244
      %vm1246 = vcmp.gt.f32.partialorder %v1240, 0.0
      %v1248 = vrot.slane %v1245, 7
      %v1250 = vrot.slane %v44, 7
      %v1252 = vsel %vm1246, %v1248, %v1250
      %v1253 = vld [vmem:[%s2 + $0xf] sm:$0x1]
      %v1254 = vsub.f32 %v1252, %v1250
      %v1255 = vmul.f32 %v1253, %v1254
      %v1257 = vrot.slane %v1255, 1
      %v1259 = vadd.f32 %v44, %v1257
      %1260 = vst.msk [vmem:[#allocation2 + $0x8] sm:$0x80] %vm693, %v1259
      %v1261 = vmul.f32 %v1255, %v1255
      %v1262 = vadd.f32 %v1190, %v1261
      %s1263 = scalar_lea.vmem %s1, 480
      %v1264 = vld [vmem:[%s1263 + $0x10] sm:$0xff]
      %v1265 = vld [vmem:[%s1263 + $0x18] sm:$0xff]
      %1267 = vset.pattern.permute.xlu0 0
      %1268 = vperm.xlu0 %1267, %v1264
      %v1269 = vpop.permute.xlu0 %1268
      %1272 = vset.pattern.permute.xlu0 0
      %1273 = vperm.xlu0 %1272, %v1265
      %v1274 = vpop.permute.xlu0 %1273
      %v1276 = vperm.slane %v1255, 0
      %v1277 = vmul.f32 %v1269, %v1276
      %v1278 = vmul.f32 %v1274, %v1276
      %v1279 = vadd.f32 %v1215, %v1277
      %v1280 = vadd.f32 %v1216, %v1278
      %v1281 = vmul.f32 %v1279, %v1279
      %v1282 = vperm.slane %v1281, 0
      %v1283 = vmul.f32 %v31, %v1282
      %v1284 = vsel %vm96, %v1283, 0.0
      %1285 = vadd.xlane.f32.xlu0 %v1284
      %v1286 = vpop.xlane.xlu0 %1285
      %vm1287 = vcmp.gt.f32.partialorder %v1286, 1e-20
      %v1288 = vmax.f32 %v1286, 1e-30
      %v1289 = vrsqrt.pop %v1288
      %v1290 = vmul.f32 %v1289, %v1288
      %v1291 = vmul.f32 %v1290, %v1289
      %v1292 = vmul.f32 0.5, %v1291
      %v1293 = vsub.f32 1.5, %v1292
      %v1294 = vmul.f32 %v1289, %v1293
      %vm1295 = vweird.f32 %v1288
      %vm1296 = vweird.f32 %v1289
      %vm1297 = vmor %vm1295, %vm1296
      %v1298 = vsel %vm1297, %v1289, %v1294
      %v1299 = vsel %vm1287, %v1298, 0.0
      %v1300 = vmul.f32 %v1299, %v31
      %v1302 = vrot.slane %v1300, 1
      %v1304 = vadd.f32 %v1300, %v1302
      %v1305 = vmul.f32 %v1279, %v1304
      %v1306 = vsub.f32 0.0, %v1305
      %vm1307 = vcmp.gt.f32.partialorder %v1304, 0.0
      %v1308 = vsel %vm1307, %v1306, %v45
      %v1309 = vld [vmem:[%s2 + $0x10] sm:$0x1]
      %v1310 = vsub.f32 %v1308, %v45
      %v1311 = vmul.f32 %v1309, %v1310
      %v1312 = vadd.f32 %v45, %v1311
      %1313 = vst.msk [vmem:[#allocation2 + $0x10] sm:$0x1] %vm126, %v1312
      %v1314 = vmul.f32 %v1311, %v1311
      %v1315 = vadd.f32 %v1262, %v1314
      %s1316 = scalar_lea.vmem %s1, 512
      %v1317 = vld [vmem:[%s1316 + $0x10] sm:$0xff]
      %v1318 = vld [vmem:[%s1316 + $0x18] sm:$0xff]
      %1320 = vset.pattern.permute.xlu0 0
      %1321 = vperm.xlu0 %1320, %v1317
      %v1322 = vpop.permute.xlu0 %1321
      %1325 = vset.pattern.permute.xlu0 0
      %1326 = vperm.xlu0 %1325, %v1318
      %v1327 = vpop.permute.xlu0 %1326
      %v1329 = vperm.slane %v1311, 0
      %v1330 = vmul.f32 %v1322, %v1329
      %v1331 = vmul.f32 %v1327, %v1329
      %v1332 = vadd.f32 %v1279, %v1330
      %v1333 = vadd.f32 %v1280, %v1331
      %v1334 = vmul.f32 %v1332, %v1332
      %v1335 = vperm.slane %v1334, 1
      %v1336 = vmul.f32 %v31, %v1335
      %v1337 = vsel %vm96, %v1336, 0.0
      %1338 = vadd.xlane.f32.xlu0 %v1337
      %v1339 = vpop.xlane.xlu0 %1338
      %vm1340 = vcmp.gt.f32.partialorder %v1339, 1e-20
      %v1341 = vmax.f32 %v1339, 1e-30
      %v1342 = vrsqrt.pop %v1341
      %v1343 = vmul.f32 %v1342, %v1341
      %v1344 = vmul.f32 %v1343, %v1342
      %v1345 = vmul.f32 0.5, %v1344
      %v1346 = vsub.f32 1.5, %v1345
      %v1347 = vmul.f32 %v1342, %v1346
      %vm1348 = vweird.f32 %v1341
      %vm1349 = vweird.f32 %v1342
      %vm1350 = vmor %vm1348, %vm1349
      %v1351 = vsel %vm1350, %v1342, %v1347
      %v1352 = vsel %vm1340, %v1351, 0.0
      %v1353 = vmul.f32 %v1352, %v31
      %v1355 = vrot.slane %v1353, 1
      %v1357 = vadd.f32 %v1353, %v1355
      %v1359 = vrot.slane %v1357, 7
      %v1361 = vmul.f32 %v1332, %v1359
      %v1362 = vsub.f32 0.0, %v1361
      %vm1363 = vcmp.gt.f32.partialorder %v1357, 0.0
      %v1365 = vrot.slane %v1362, 1
      %v1368 = vrot.slane %v45, 1
      %v1370 = vsel %vm1363, %v1365, %v1368
      %v1371 = vld [vmem:[%s2 + $0x11] sm:$0x1]
      %v1372 = vsub.f32 %v1370, %v1368
      %v1373 = vmul.f32 %v1371, %v1372
      %v1375 = vrot.slane %v1373, 7
      %v1377 = vadd.f32 %v45, %v1375
      %1378 = vst.msk [vmem:[#allocation2 + $0x10] sm:$0x2] %vm207, %v1377
      %v1379 = vmul.f32 %v1373, %v1373
      %v1380 = vadd.f32 %v1315, %v1379
      %s1381 = scalar_lea.vmem %s1, 544
      %v1382 = vld [vmem:[%s1381 + $0x10] sm:$0xff]
      %v1383 = vld [vmem:[%s1381 + $0x18] sm:$0xff]
      %1385 = vset.pattern.permute.xlu0 0
      %1386 = vperm.xlu0 %1385, %v1382
      %v1387 = vpop.permute.xlu0 %1386
      %1390 = vset.pattern.permute.xlu0 0
      %1391 = vperm.xlu0 %1390, %v1383
      %v1392 = vpop.permute.xlu0 %1391
      %v1394 = vperm.slane %v1373, 0
      %v1395 = vmul.f32 %v1387, %v1394
      %v1396 = vmul.f32 %v1392, %v1394
      %v1397 = vadd.f32 %v1332, %v1395
      %v1398 = vadd.f32 %v1333, %v1396
      %v1399 = vmul.f32 %v1397, %v1397
      %v1400 = vperm.slane %v1399, 2
      %v1401 = vmul.f32 %v31, %v1400
      %v1402 = vsel %vm96, %v1401, 0.0
      %1403 = vadd.xlane.f32.xlu0 %v1402
      %v1404 = vpop.xlane.xlu0 %1403
      %vm1405 = vcmp.gt.f32.partialorder %v1404, 1e-20
      %v1406 = vmax.f32 %v1404, 1e-30
      %v1407 = vrsqrt.pop %v1406
      %v1408 = vmul.f32 %v1407, %v1406
      %v1409 = vmul.f32 %v1408, %v1407
      %v1410 = vmul.f32 0.5, %v1409
      %v1411 = vsub.f32 1.5, %v1410
      %v1412 = vmul.f32 %v1407, %v1411
      %vm1413 = vweird.f32 %v1406
      %vm1414 = vweird.f32 %v1407
      %vm1415 = vmor %vm1413, %vm1414
      %v1416 = vsel %vm1415, %v1407, %v1412
      %v1417 = vsel %vm1405, %v1416, 0.0
      %v1418 = vmul.f32 %v1417, %v31
      %v1420 = vrot.slane %v1418, 1
      %v1422 = vadd.f32 %v1418, %v1420
      %v1424 = vrot.slane %v1422, 6
      %v1426 = vmul.f32 %v1397, %v1424
      %v1427 = vsub.f32 0.0, %v1426
      %vm1428 = vcmp.gt.f32.partialorder %v1422, 0.0
      %v1430 = vrot.slane %v1427, 2
      %v1432 = vrot.slane %v45, 2
      %v1434 = vsel %vm1428, %v1430, %v1432
      %v1435 = vld [vmem:[%s2 + $0x12] sm:$0x1]
      %v1436 = vsub.f32 %v1434, %v1432
      %v1437 = vmul.f32 %v1435, %v1436
      %v1439 = vrot.slane %v1437, 6
      %v1441 = vadd.f32 %v45, %v1439
      %1442 = vst.msk [vmem:[#allocation2 + $0x10] sm:$0x4] %vm288, %v1441
      %v1443 = vmul.f32 %v1437, %v1437
      %v1444 = vadd.f32 %v1380, %v1443
      %s1445 = scalar_lea.vmem %s1, 576
      %v1446 = vld [vmem:[%s1445 + $0x10] sm:$0xff]
      %v1447 = vld [vmem:[%s1445 + $0x18] sm:$0xff]
      %1449 = vset.pattern.permute.xlu0 0
      %1450 = vperm.xlu0 %1449, %v1446
      %v1451 = vpop.permute.xlu0 %1450
      %1454 = vset.pattern.permute.xlu0 0
      %1455 = vperm.xlu0 %1454, %v1447
      %v1456 = vpop.permute.xlu0 %1455
      %v1458 = vperm.slane %v1437, 0
      %v1459 = vmul.f32 %v1451, %v1458
      %v1460 = vmul.f32 %v1456, %v1458
      %v1461 = vadd.f32 %v1397, %v1459
      %v1462 = vadd.f32 %v1398, %v1460
      %v1463 = vmul.f32 %v1461, %v1461
      %v1464 = vperm.slane %v1463, 3
      %v1465 = vmul.f32 %v31, %v1464
      %v1466 = vsel %vm96, %v1465, 0.0
      %1467 = vadd.xlane.f32.xlu0 %v1466
      %v1468 = vpop.xlane.xlu0 %1467
      %vm1469 = vcmp.gt.f32.partialorder %v1468, 1e-20
      %v1470 = vmax.f32 %v1468, 1e-30
      %v1471 = vrsqrt.pop %v1470
      %v1472 = vmul.f32 %v1471, %v1470
      %v1473 = vmul.f32 %v1472, %v1471
      %v1474 = vmul.f32 0.5, %v1473
      %v1475 = vsub.f32 1.5, %v1474
      %v1476 = vmul.f32 %v1471, %v1475
      %vm1477 = vweird.f32 %v1470
      %vm1478 = vweird.f32 %v1471
      %vm1479 = vmor %vm1477, %vm1478
      %v1480 = vsel %vm1479, %v1471, %v1476
      %v1481 = vsel %vm1469, %v1480, 0.0
      %v1482 = vmul.f32 %v1481, %v31
      %v1484 = vrot.slane %v1482, 1
      %v1486 = vadd.f32 %v1482, %v1484
      %v1488 = vrot.slane %v1486, 5
      %v1490 = vmul.f32 %v1461, %v1488
      %v1491 = vsub.f32 0.0, %v1490
      %vm1492 = vcmp.gt.f32.partialorder %v1486, 0.0
      %v1494 = vrot.slane %v1491, 3
      %v1496 = vrot.slane %v45, 3
      %v1498 = vsel %vm1492, %v1494, %v1496
      %v1499 = vld [vmem:[%s2 + $0x13] sm:$0x1]
      %v1500 = vsub.f32 %v1498, %v1496
      %v1501 = vmul.f32 %v1499, %v1500
      %v1503 = vrot.slane %v1501, 5
      %v1505 = vadd.f32 %v45, %v1503
      %1506 = vst.msk [vmem:[#allocation2 + $0x10] sm:$0x8] %vm369, %v1505
      %v1507 = vmul.f32 %v1501, %v1501
      %v1508 = vadd.f32 %v1444, %v1507
      %s1509 = scalar_lea.vmem %s1, 608
      %v1510 = vld [vmem:[%s1509 + $0x10] sm:$0xff]
      %v1511 = vld [vmem:[%s1509 + $0x18] sm:$0xff]
      %1513 = vset.pattern.permute.xlu0 0
      %1514 = vperm.xlu0 %1513, %v1510
      %v1515 = vpop.permute.xlu0 %1514
      %1518 = vset.pattern.permute.xlu0 0
      %1519 = vperm.xlu0 %1518, %v1511
      %v1520 = vpop.permute.xlu0 %1519
      %v1522 = vperm.slane %v1501, 0
      %v1523 = vmul.f32 %v1515, %v1522
      %v1524 = vmul.f32 %v1520, %v1522
      %v1525 = vadd.f32 %v1461, %v1523
      %v1526 = vadd.f32 %v1462, %v1524
      %v1527 = vmul.f32 %v1525, %v1525
      %v1528 = vperm.slane %v1527, 4
      %v1529 = vmul.f32 %v31, %v1528
      %v1530 = vsel %vm96, %v1529, 0.0
      %1531 = vadd.xlane.f32.xlu0 %v1530
      %v1532 = vpop.xlane.xlu0 %1531
      %vm1533 = vcmp.gt.f32.partialorder %v1532, 1e-20
      %v1534 = vmax.f32 %v1532, 1e-30
      %v1535 = vrsqrt.pop %v1534
      %v1536 = vmul.f32 %v1535, %v1534
      %v1537 = vmul.f32 %v1536, %v1535
      %v1538 = vmul.f32 0.5, %v1537
      %v1539 = vsub.f32 1.5, %v1538
      %v1540 = vmul.f32 %v1535, %v1539
      %vm1541 = vweird.f32 %v1534
      %vm1542 = vweird.f32 %v1535
      %vm1543 = vmor %vm1541, %vm1542
      %v1544 = vsel %vm1543, %v1535, %v1540
      %v1545 = vsel %vm1533, %v1544, 0.0
      %v1546 = vmul.f32 %v1545, %v31
      %v1548 = vrot.slane %v1546, 1
      %v1550 = vadd.f32 %v1546, %v1548
      %v1552 = vrot.slane %v1550, 4
      %v1554 = vmul.f32 %v1525, %v1552
      %v1555 = vsub.f32 0.0, %v1554
      %vm1556 = vcmp.gt.f32.partialorder %v1550, 0.0
      %v1558 = vrot.slane %v1555, 4
      %v1560 = vrot.slane %v45, 4
      %v1562 = vsel %vm1556, %v1558, %v1560
      %v1563 = vld [vmem:[%s2 + $0x14] sm:$0x1]
      %v1564 = vsub.f32 %v1562, %v1560
      %v1565 = vmul.f32 %v1563, %v1564
      %v1567 = vrot.slane %v1565, 4
      %v1569 = vadd.f32 %v45, %v1567
      %1570 = vst.msk [vmem:[#allocation2 + $0x10] sm:$0x10] %vm450, %v1569
      %v1571 = vmul.f32 %v1565, %v1565
      %v1572 = vadd.f32 %v1508, %v1571
      %s1573 = scalar_lea.vmem %s1, 640
      %v1574 = vld [vmem:[%s1573 + $0x10] sm:$0xff]
      %v1575 = vld [vmem:[%s1573 + $0x18] sm:$0xff]
      %1577 = vset.pattern.permute.xlu0 0
      %1578 = vperm.xlu0 %1577, %v1574
      %v1579 = vpop.permute.xlu0 %1578
      %1582 = vset.pattern.permute.xlu0 0
      %1583 = vperm.xlu0 %1582, %v1575
      %v1584 = vpop.permute.xlu0 %1583
      %v1586 = vperm.slane %v1565, 0
      %v1587 = vmul.f32 %v1579, %v1586
      %v1588 = vmul.f32 %v1584, %v1586
      %v1589 = vadd.f32 %v1525, %v1587
      %v1590 = vadd.f32 %v1526, %v1588
      %v1591 = vmul.f32 %v1589, %v1589
      %v1592 = vperm.slane %v1591, 5
      %v1593 = vmul.f32 %v31, %v1592
      %v1594 = vsel %vm96, %v1593, 0.0
      %1595 = vadd.xlane.f32.xlu0 %v1594
      %v1596 = vpop.xlane.xlu0 %1595
      %vm1597 = vcmp.gt.f32.partialorder %v1596, 1e-20
      %v1598 = vmax.f32 %v1596, 1e-30
      %v1599 = vrsqrt.pop %v1598
      %v1600 = vmul.f32 %v1599, %v1598
      %v1601 = vmul.f32 %v1600, %v1599
      %v1602 = vmul.f32 0.5, %v1601
      %v1603 = vsub.f32 1.5, %v1602
      %v1604 = vmul.f32 %v1599, %v1603
      %vm1605 = vweird.f32 %v1598
      %vm1606 = vweird.f32 %v1599
      %vm1607 = vmor %vm1605, %vm1606
      %v1608 = vsel %vm1607, %v1599, %v1604
      %v1609 = vsel %vm1597, %v1608, 0.0
      %v1610 = vmul.f32 %v1609, %v31
      %v1612 = vrot.slane %v1610, 1
      %v1614 = vadd.f32 %v1610, %v1612
      %v1616 = vrot.slane %v1614, 3
      %v1618 = vmul.f32 %v1589, %v1616
      %v1619 = vsub.f32 0.0, %v1618
      %vm1620 = vcmp.gt.f32.partialorder %v1614, 0.0
      %v1622 = vrot.slane %v1619, 5
      %v1624 = vrot.slane %v45, 5
      %v1626 = vsel %vm1620, %v1622, %v1624
      %v1627 = vld [vmem:[%s2 + $0x15] sm:$0x1]
      %v1628 = vsub.f32 %v1626, %v1624
      %v1629 = vmul.f32 %v1627, %v1628
      %v1631 = vrot.slane %v1629, 3
      %v1633 = vadd.f32 %v45, %v1631
      %1634 = vst.msk [vmem:[#allocation2 + $0x10] sm:$0x20] %vm531, %v1633
      %v1635 = vmul.f32 %v1629, %v1629
      %v1636 = vadd.f32 %v1572, %v1635
      %s1637 = scalar_lea.vmem %s1, 672
      %v1638 = vld [vmem:[%s1637 + $0x10] sm:$0xff]
      %v1639 = vld [vmem:[%s1637 + $0x18] sm:$0xff]
      %1641 = vset.pattern.permute.xlu0 0
      %1642 = vperm.xlu0 %1641, %v1638
      %v1643 = vpop.permute.xlu0 %1642
      %1646 = vset.pattern.permute.xlu0 0
      %1647 = vperm.xlu0 %1646, %v1639
      %v1648 = vpop.permute.xlu0 %1647
      %v1650 = vperm.slane %v1629, 0
      %v1651 = vmul.f32 %v1643, %v1650
      %v1652 = vmul.f32 %v1648, %v1650
      %v1653 = vadd.f32 %v1589, %v1651
      %v1654 = vadd.f32 %v1590, %v1652
      %v1655 = vmul.f32 %v1653, %v1653
      %v1656 = vperm.slane %v1655, 6
      %v1657 = vmul.f32 %v31, %v1656
      %v1658 = vsel %vm96, %v1657, 0.0
      %1659 = vadd.xlane.f32.xlu0 %v1658
      %v1660 = vpop.xlane.xlu0 %1659
      %vm1661 = vcmp.gt.f32.partialorder %v1660, 1e-20
      %v1662 = vmax.f32 %v1660, 1e-30
      %v1663 = vrsqrt.pop %v1662
      %v1664 = vmul.f32 %v1663, %v1662
      %v1665 = vmul.f32 %v1664, %v1663
      %v1666 = vmul.f32 0.5, %v1665
      %v1667 = vsub.f32 1.5, %v1666
      %v1668 = vmul.f32 %v1663, %v1667
      %vm1669 = vweird.f32 %v1662
      %vm1670 = vweird.f32 %v1663
      %vm1671 = vmor %vm1669, %vm1670
      %v1672 = vsel %vm1671, %v1663, %v1668
      %v1673 = vsel %vm1661, %v1672, 0.0
      %v1674 = vmul.f32 %v1673, %v31
      %v1676 = vrot.slane %v1674, 1
      %v1678 = vadd.f32 %v1674, %v1676
      %v1680 = vrot.slane %v1678, 2
      %v1682 = vmul.f32 %v1653, %v1680
      %v1683 = vsub.f32 0.0, %v1682
      %vm1684 = vcmp.gt.f32.partialorder %v1678, 0.0
      %v1686 = vrot.slane %v1683, 6
      %v1688 = vrot.slane %v45, 6
      %v1690 = vsel %vm1684, %v1686, %v1688
      %v1691 = vld [vmem:[%s2 + $0x16] sm:$0x1]
      %v1692 = vsub.f32 %v1690, %v1688
      %v1693 = vmul.f32 %v1691, %v1692
      %v1695 = vrot.slane %v1693, 2
      %v1697 = vadd.f32 %v45, %v1695
      %1698 = vst.msk [vmem:[#allocation2 + $0x10] sm:$0x40] %vm612, %v1697
      %v1699 = vmul.f32 %v1693, %v1693
      %v1700 = vadd.f32 %v1636, %v1699
      %s1701 = scalar_lea.vmem %s1, 704
      %v1702 = vld [vmem:[%s1701 + $0x10] sm:$0xff]
      %v1703 = vld [vmem:[%s1701 + $0x18] sm:$0xff]
      %1705 = vset.pattern.permute.xlu0 0
      %1706 = vperm.xlu0 %1705, %v1702
      %v1707 = vpop.permute.xlu0 %1706
      %1710 = vset.pattern.permute.xlu0 0
      %1711 = vperm.xlu0 %1710, %v1703
      %v1712 = vpop.permute.xlu0 %1711
      %v1714 = vperm.slane %v1693, 0
      %v1715 = vmul.f32 %v1707, %v1714
      %v1716 = vmul.f32 %v1712, %v1714
      %v1717 = vadd.f32 %v1653, %v1715
      %v1718 = vadd.f32 %v1654, %v1716
      %v1719 = vmul.f32 %v1717, %v1717
      %v1720 = vperm.slane %v1719, 7
      %v1721 = vmul.f32 %v31, %v1720
      %v1722 = vsel %vm96, %v1721, 0.0
      %1723 = vadd.xlane.f32.xlu0 %v1722
      %v1724 = vpop.xlane.xlu0 %1723
      %vm1725 = vcmp.gt.f32.partialorder %v1724, 1e-20
      %v1726 = vmax.f32 %v1724, 1e-30
      %v1727 = vrsqrt.pop %v1726
      %v1728 = vmul.f32 %v1727, %v1726
      %v1729 = vmul.f32 %v1728, %v1727
      %v1730 = vmul.f32 0.5, %v1729
      %v1731 = vsub.f32 1.5, %v1730
      %v1732 = vmul.f32 %v1727, %v1731
      %vm1733 = vweird.f32 %v1726
      %vm1734 = vweird.f32 %v1727
      %vm1735 = vmor %vm1733, %vm1734
      %v1736 = vsel %vm1735, %v1727, %v1732
      %v1737 = vsel %vm1725, %v1736, 0.0
      %v1738 = vmul.f32 %v1737, %v31
      %v1740 = vrot.slane %v1738, 1
      %v1742 = vadd.f32 %v1738, %v1740
      %v1744 = vrot.slane %v1742, 1
      %v1746 = vmul.f32 %v1717, %v1744
      %v1747 = vsub.f32 0.0, %v1746
      %vm1748 = vcmp.gt.f32.partialorder %v1742, 0.0
      %v1750 = vrot.slane %v1747, 7
      %v1752 = vrot.slane %v45, 7
      %v1754 = vsel %vm1748, %v1750, %v1752
      %v1755 = vld [vmem:[%s2 + $0x17] sm:$0x1]
      %v1756 = vsub.f32 %v1754, %v1752
      %v1757 = vmul.f32 %v1755, %v1756
      %v1759 = vrot.slane %v1757, 1
      %v1761 = vadd.f32 %v45, %v1759
      %1762 = vst.msk [vmem:[#allocation2 + $0x10] sm:$0x80] %vm693, %v1761
      %v1763 = vmul.f32 %v1757, %v1757
      %v1764 = vadd.f32 %v1700, %v1763
      %s1765 = scalar_lea.vmem %s1, 736
      %v1766 = vld [vmem:[%s1765 + $0x18] sm:$0xff]
      %1768 = vset.pattern.permute.xlu0 0
      %1769 = vperm.xlu0 %1768, %v1766
      %v1770 = vpop.permute.xlu0 %1769
      %v1772 = vperm.slane %v1757, 0
      %v1773 = vmul.f32 %v1770, %v1772
      %v1774 = vadd.f32 %v1718, %v1773
      %v1775 = vmul.f32 %v1774, %v1774
      %v1776 = vperm.slane %v1775, 0
      %v1777 = vmul.f32 %v31, %v1776
      %v1778 = vsel %vm96, %v1777, 0.0
      %1779 = vadd.xlane.f32.xlu0 %v1778
      %v1780 = vpop.xlane.xlu0 %1779
      %vm1781 = vcmp.gt.f32.partialorder %v1780, 1e-20
      %v1782 = vmax.f32 %v1780, 1e-30
      %v1783 = vrsqrt.pop %v1782
      %v1784 = vmul.f32 %v1783, %v1782
      %v1785 = vmul.f32 %v1784, %v1783
      %v1786 = vmul.f32 0.5, %v1785
      %v1787 = vsub.f32 1.5, %v1786
      %v1788 = vmul.f32 %v1783, %v1787
      %vm1789 = vweird.f32 %v1782
      %vm1790 = vweird.f32 %v1783
      %vm1791 = vmor %vm1789, %vm1790
      %v1792 = vsel %vm1791, %v1783, %v1788
      %v1793 = vsel %vm1781, %v1792, 0.0
      %v1794 = vmul.f32 %v1793, %v31
      %v1796 = vrot.slane %v1794, 1
      %v1798 = vadd.f32 %v1794, %v1796
      %v1799 = vmul.f32 %v1774, %v1798
      %v1800 = vsub.f32 0.0, %v1799
      %vm1801 = vcmp.gt.f32.partialorder %v1798, 0.0
      %v1802 = vsel %vm1801, %v1800, %v46
      %v1803 = vld [vmem:[%s2 + $0x18] sm:$0x1]
      %v1804 = vsub.f32 %v1802, %v46
      %v1805 = vmul.f32 %v1803, %v1804
      %v1806 = vadd.f32 %v46, %v1805
      %1807 = vst.msk [vmem:[#allocation2 + $0x18] sm:$0x1] %vm126, %v1806
      %v1808 = vmul.f32 %v1805, %v1805
      %v1809 = vadd.f32 %v1764, %v1808
      %s1810 = scalar_lea.vmem %s1, 768
      %v1811 = vld [vmem:[%s1810 + $0x18] sm:$0xff]
      %1813 = vset.pattern.permute.xlu0 0
      %1814 = vperm.xlu0 %1813, %v1811
      %v1815 = vpop.permute.xlu0 %1814
      %v1817 = vperm.slane %v1805, 0
      %v1818 = vmul.f32 %v1815, %v1817
      %v1819 = vadd.f32 %v1774, %v1818
      %v1820 = vmul.f32 %v1819, %v1819
      %v1821 = vperm.slane %v1820, 1
      %v1822 = vmul.f32 %v31, %v1821
      %v1823 = vsel %vm96, %v1822, 0.0
      %1824 = vadd.xlane.f32.xlu0 %v1823
      %v1825 = vpop.xlane.xlu0 %1824
      %vm1826 = vcmp.gt.f32.partialorder %v1825, 1e-20
      %v1827 = vmax.f32 %v1825, 1e-30
      %v1828 = vrsqrt.pop %v1827
      %v1829 = vmul.f32 %v1828, %v1827
      %v1830 = vmul.f32 %v1829, %v1828
      %v1831 = vmul.f32 0.5, %v1830
      %v1832 = vsub.f32 1.5, %v1831
      %v1833 = vmul.f32 %v1828, %v1832
      %vm1834 = vweird.f32 %v1827
      %vm1835 = vweird.f32 %v1828
      %vm1836 = vmor %vm1834, %vm1835
      %v1837 = vsel %vm1836, %v1828, %v1833
      %v1838 = vsel %vm1826, %v1837, 0.0
      %v1839 = vmul.f32 %v1838, %v31
      %v1841 = vrot.slane %v1839, 1
      %v1843 = vadd.f32 %v1839, %v1841
      %v1845 = vrot.slane %v1843, 7
      %v1847 = vmul.f32 %v1819, %v1845
      %v1848 = vsub.f32 0.0, %v1847
      %vm1849 = vcmp.gt.f32.partialorder %v1843, 0.0
      %v1851 = vrot.slane %v1848, 1
      %v1854 = vrot.slane %v46, 1
      %v1856 = vsel %vm1849, %v1851, %v1854
      %v1857 = vld [vmem:[%s2 + $0x19] sm:$0x1]
      %v1858 = vsub.f32 %v1856, %v1854
      %v1859 = vmul.f32 %v1857, %v1858
      %v1861 = vrot.slane %v1859, 7
      %v1863 = vadd.f32 %v46, %v1861
      %1864 = vst.msk [vmem:[#allocation2 + $0x18] sm:$0x2] %vm207, %v1863
      %v1865 = vmul.f32 %v1859, %v1859
      %v1866 = vadd.f32 %v1809, %v1865
      %s1867 = scalar_lea.vmem %s1, 800
      %v1868 = vld [vmem:[%s1867 + $0x18] sm:$0xff]
      %1870 = vset.pattern.permute.xlu0 0
      %1871 = vperm.xlu0 %1870, %v1868
      %v1872 = vpop.permute.xlu0 %1871
      %v1874 = vperm.slane %v1859, 0
      %v1875 = vmul.f32 %v1872, %v1874
      %v1876 = vadd.f32 %v1819, %v1875
      %v1877 = vmul.f32 %v1876, %v1876
      %v1878 = vperm.slane %v1877, 2
      %v1879 = vmul.f32 %v31, %v1878
      %v1880 = vsel %vm96, %v1879, 0.0
      %1881 = vadd.xlane.f32.xlu0 %v1880
      %v1882 = vpop.xlane.xlu0 %1881
      %vm1883 = vcmp.gt.f32.partialorder %v1882, 1e-20
      %v1884 = vmax.f32 %v1882, 1e-30
      %v1885 = vrsqrt.pop %v1884
      %v1886 = vmul.f32 %v1885, %v1884
      %v1887 = vmul.f32 %v1886, %v1885
      %v1888 = vmul.f32 0.5, %v1887
      %v1889 = vsub.f32 1.5, %v1888
      %v1890 = vmul.f32 %v1885, %v1889
      %vm1891 = vweird.f32 %v1884
      %vm1892 = vweird.f32 %v1885
      %vm1893 = vmor %vm1891, %vm1892
      %v1894 = vsel %vm1893, %v1885, %v1890
      %v1895 = vsel %vm1883, %v1894, 0.0
      %v1896 = vmul.f32 %v1895, %v31
      %v1898 = vrot.slane %v1896, 1
      %v1900 = vadd.f32 %v1896, %v1898
      %v1902 = vrot.slane %v1900, 6
      %v1904 = vmul.f32 %v1876, %v1902
      %v1905 = vsub.f32 0.0, %v1904
      %vm1906 = vcmp.gt.f32.partialorder %v1900, 0.0
      %v1908 = vrot.slane %v1905, 2
      %v1910 = vrot.slane %v46, 2
      %v1912 = vsel %vm1906, %v1908, %v1910
      %v1913 = vld [vmem:[%s2 + $0x1a] sm:$0x1]
      %v1914 = vsub.f32 %v1912, %v1910
      %v1915 = vmul.f32 %v1913, %v1914
      %v1917 = vrot.slane %v1915, 6
      %v1919 = vadd.f32 %v46, %v1917
      %1920 = vst.msk [vmem:[#allocation2 + $0x18] sm:$0x4] %vm288, %v1919
      %v1921 = vmul.f32 %v1915, %v1915
      %v1922 = vadd.f32 %v1866, %v1921
      %s1923 = scalar_lea.vmem %s1, 832
      %v1924 = vld [vmem:[%s1923 + $0x18] sm:$0xff]
      %1926 = vset.pattern.permute.xlu0 0
      %1927 = vperm.xlu0 %1926, %v1924
      %v1928 = vpop.permute.xlu0 %1927
      %v1930 = vperm.slane %v1915, 0
      %v1931 = vmul.f32 %v1928, %v1930
      %v1932 = vadd.f32 %v1876, %v1931
      %v1933 = vmul.f32 %v1932, %v1932
      %v1934 = vperm.slane %v1933, 3
      %v1935 = vmul.f32 %v31, %v1934
      %v1936 = vsel %vm96, %v1935, 0.0
      %1937 = vadd.xlane.f32.xlu0 %v1936
      %v1938 = vpop.xlane.xlu0 %1937
      %vm1939 = vcmp.gt.f32.partialorder %v1938, 1e-20
      %v1940 = vmax.f32 %v1938, 1e-30
      %v1941 = vrsqrt.pop %v1940
      %v1942 = vmul.f32 %v1941, %v1940
      %v1943 = vmul.f32 %v1942, %v1941
      %v1944 = vmul.f32 0.5, %v1943
      %v1945 = vsub.f32 1.5, %v1944
      %v1946 = vmul.f32 %v1941, %v1945
      %vm1947 = vweird.f32 %v1940
      %vm1948 = vweird.f32 %v1941
      %vm1949 = vmor %vm1947, %vm1948
      %v1950 = vsel %vm1949, %v1941, %v1946
      %v1951 = vsel %vm1939, %v1950, 0.0
      %v1952 = vmul.f32 %v1951, %v31
      %v1954 = vrot.slane %v1952, 1
      %v1956 = vadd.f32 %v1952, %v1954
      %v1958 = vrot.slane %v1956, 5
      %v1960 = vmul.f32 %v1932, %v1958
      %v1961 = vsub.f32 0.0, %v1960
      %vm1962 = vcmp.gt.f32.partialorder %v1956, 0.0
      %v1964 = vrot.slane %v1961, 3
      %v1966 = vrot.slane %v46, 3
      %v1968 = vsel %vm1962, %v1964, %v1966
      %v1969 = vld [vmem:[%s2 + $0x1b] sm:$0x1]
      %v1970 = vsub.f32 %v1968, %v1966
      %v1971 = vmul.f32 %v1969, %v1970
      %v1973 = vrot.slane %v1971, 5
      %v1975 = vadd.f32 %v46, %v1973
      %1976 = vst.msk [vmem:[#allocation2 + $0x18] sm:$0x8] %vm369, %v1975
      %v1977 = vmul.f32 %v1971, %v1971
      %v1978 = vadd.f32 %v1922, %v1977
      %s1979 = scalar_lea.vmem %s1, 864
      %v1980 = vld [vmem:[%s1979 + $0x18] sm:$0xff]
      %1982 = vset.pattern.permute.xlu0 0
      %1983 = vperm.xlu0 %1982, %v1980
      %v1984 = vpop.permute.xlu0 %1983
      %v1986 = vperm.slane %v1971, 0
      %v1987 = vmul.f32 %v1984, %v1986
      %v1988 = vadd.f32 %v1932, %v1987
      %v1989 = vmul.f32 %v1988, %v1988
      %v1990 = vperm.slane %v1989, 4
      %v1991 = vmul.f32 %v31, %v1990
      %v1992 = vsel %vm96, %v1991, 0.0
      %1993 = vadd.xlane.f32.xlu0 %v1992
      %v1994 = vpop.xlane.xlu0 %1993
      %vm1995 = vcmp.gt.f32.partialorder %v1994, 1e-20
      %v1996 = vmax.f32 %v1994, 1e-30
      %v1997 = vrsqrt.pop %v1996
      %v1998 = vmul.f32 %v1997, %v1996
      %v1999 = vmul.f32 %v1998, %v1997
      %v2000 = vmul.f32 0.5, %v1999
      %v2001 = vsub.f32 1.5, %v2000
      %v2002 = vmul.f32 %v1997, %v2001
      %vm2003 = vweird.f32 %v1996
      %vm2004 = vweird.f32 %v1997
      %vm2005 = vmor %vm2003, %vm2004
      %v2006 = vsel %vm2005, %v1997, %v2002
      %v2007 = vsel %vm1995, %v2006, 0.0
      %v2008 = vmul.f32 %v2007, %v31
      %v2010 = vrot.slane %v2008, 1
      %v2012 = vadd.f32 %v2008, %v2010
      %v2014 = vrot.slane %v2012, 4
      %v2016 = vmul.f32 %v1988, %v2014
      %v2017 = vsub.f32 0.0, %v2016
      %vm2018 = vcmp.gt.f32.partialorder %v2012, 0.0
      %v2020 = vrot.slane %v2017, 4
      %v2022 = vrot.slane %v46, 4
      %v2024 = vsel %vm2018, %v2020, %v2022
      %v2025 = vld [vmem:[%s2 + $0x1c] sm:$0x1]
      %v2026 = vsub.f32 %v2024, %v2022
      %v2027 = vmul.f32 %v2025, %v2026
      %v2029 = vrot.slane %v2027, 4
      %v2031 = vadd.f32 %v46, %v2029
      %2032 = vst.msk [vmem:[#allocation2 + $0x18] sm:$0x10] %vm450, %v2031
      %v2033 = vmul.f32 %v2027, %v2027
      %v2034 = vadd.f32 %v1978, %v2033
      %s2035 = scalar_lea.vmem %s1, 896
      %v2036 = vld [vmem:[%s2035 + $0x18] sm:$0xff]
      %2038 = vset.pattern.permute.xlu0 0
      %2039 = vperm.xlu0 %2038, %v2036
      %v2040 = vpop.permute.xlu0 %2039
      %v2042 = vperm.slane %v2027, 0
      %v2043 = vmul.f32 %v2040, %v2042
      %v2044 = vadd.f32 %v1988, %v2043
      %v2045 = vmul.f32 %v2044, %v2044
      %v2046 = vperm.slane %v2045, 5
      %v2047 = vmul.f32 %v31, %v2046
      %v2048 = vsel %vm96, %v2047, 0.0
      %2049 = vadd.xlane.f32.xlu0 %v2048
      %v2050 = vpop.xlane.xlu0 %2049
      %vm2051 = vcmp.gt.f32.partialorder %v2050, 1e-20
      %v2052 = vmax.f32 %v2050, 1e-30
      %v2053 = vrsqrt.pop %v2052
      %v2054 = vmul.f32 %v2053, %v2052
      %v2055 = vmul.f32 %v2054, %v2053
      %v2056 = vmul.f32 0.5, %v2055
      %v2057 = vsub.f32 1.5, %v2056
      %v2058 = vmul.f32 %v2053, %v2057
      %vm2059 = vweird.f32 %v2052
      %vm2060 = vweird.f32 %v2053
      %vm2061 = vmor %vm2059, %vm2060
      %v2062 = vsel %vm2061, %v2053, %v2058
      %v2063 = vsel %vm2051, %v2062, 0.0
      %v2064 = vmul.f32 %v2063, %v31
      %v2066 = vrot.slane %v2064, 1
      %v2068 = vadd.f32 %v2064, %v2066
      %v2070 = vrot.slane %v2068, 3
      %v2072 = vmul.f32 %v2044, %v2070
      %v2073 = vsub.f32 0.0, %v2072
      %vm2074 = vcmp.gt.f32.partialorder %v2068, 0.0
      %v2076 = vrot.slane %v2073, 5
      %v2078 = vrot.slane %v46, 5
      %v2080 = vsel %vm2074, %v2076, %v2078
      %v2081 = vld [vmem:[%s2 + $0x1d] sm:$0x1]
      %v2082 = vsub.f32 %v2080, %v2078
      %v2083 = vmul.f32 %v2081, %v2082
      %v2085 = vrot.slane %v2083, 3
      %v2087 = vadd.f32 %v46, %v2085
      %2088 = vst.msk [vmem:[#allocation2 + $0x18] sm:$0x20] %vm531, %v2087
      %v2089 = vmul.f32 %v2083, %v2083
      %v2090 = vadd.f32 %v2034, %v2089
      %s2091 = scalar_lea.vmem %s1, 928
      %v2092 = vld [vmem:[%s2091 + $0x18] sm:$0xff]
      %2094 = vset.pattern.permute.xlu0 0
      %2095 = vperm.xlu0 %2094, %v2092
      %v2096 = vpop.permute.xlu0 %2095
      %v2098 = vperm.slane %v2083, 0
      %v2099 = vmul.f32 %v2096, %v2098
      %v2100 = vadd.f32 %v2044, %v2099
      %v2101 = vmul.f32 %v2100, %v2100
      %v2102 = vperm.slane %v2101, 6
      %v2103 = vmul.f32 %v31, %v2102
      %v2104 = vsel %vm96, %v2103, 0.0
      %2105 = vadd.xlane.f32.xlu0 %v2104
      %v2106 = vpop.xlane.xlu0 %2105
      %vm2107 = vcmp.gt.f32.partialorder %v2106, 1e-20
      %v2108 = vmax.f32 %v2106, 1e-30
      %v2109 = vrsqrt.pop %v2108
      %v2110 = vmul.f32 %v2109, %v2108
      %v2111 = vmul.f32 %v2110, %v2109
      %v2112 = vmul.f32 0.5, %v2111
      %v2113 = vsub.f32 1.5, %v2112
      %v2114 = vmul.f32 %v2109, %v2113
      %vm2115 = vweird.f32 %v2108
      %vm2116 = vweird.f32 %v2109
      %vm2117 = vmor %vm2115, %vm2116
      %v2118 = vsel %vm2117, %v2109, %v2114
      %v2119 = vsel %vm2107, %v2118, 0.0
      %v2120 = vmul.f32 %v2119, %v31
      %v2122 = vrot.slane %v2120, 1
      %v2124 = vadd.f32 %v2120, %v2122
      %v2126 = vrot.slane %v2124, 2
      %v2128 = vmul.f32 %v2100, %v2126
      %v2129 = vsub.f32 0.0, %v2128
      %vm2130 = vcmp.gt.f32.partialorder %v2124, 0.0
      %v2132 = vrot.slane %v2129, 6
      %v2134 = vrot.slane %v46, 6
      %v2136 = vsel %vm2130, %v2132, %v2134
      %v2137 = vld [vmem:[%s2 + $0x1e] sm:$0x1]
      %v2138 = vsub.f32 %v2136, %v2134
      %v2139 = vmul.f32 %v2137, %v2138
      %v2141 = vrot.slane %v2139, 2
      %v2143 = vadd.f32 %v46, %v2141
      %2144 = vst.msk [vmem:[#allocation2 + $0x18] sm:$0x40] %vm612, %v2143
      %v2145 = vmul.f32 %v2139, %v2139
      %v2146 = vadd.f32 %v2090, %v2145
      %s2147 = scalar_lea.vmem %s1, 960
      %v2148 = vld [vmem:[%s2147 + $0x18] sm:$0xff]
      %2150 = vset.pattern.permute.xlu0 0
      %2151 = vperm.xlu0 %2150, %v2148
      %v2152 = vpop.permute.xlu0 %2151
      %v2154 = vperm.slane %v2139, 0
      %v2155 = vmul.f32 %v2152, %v2154
      %v2156 = vadd.f32 %v2100, %v2155
      %v2157 = vmul.f32 %v2156, %v2156
      %v2158 = vperm.slane %v2157, 7
      %v2159 = vmul.f32 %v31, %v2158
      %v2160 = vsel %vm96, %v2159, 0.0
      %2161 = vadd.xlane.f32.xlu0 %v2160
      %v2162 = vpop.xlane.xlu0 %2161
      %vm2163 = vcmp.gt.f32.partialorder %v2162, 1e-20
      %v2164 = vmax.f32 %v2162, 1e-30
      %v2165 = vrsqrt.pop %v2164
      %v2166 = vmul.f32 %v2165, %v2164
      %v2167 = vmul.f32 %v2166, %v2165
      %v2168 = vmul.f32 0.5, %v2167
      %v2169 = vsub.f32 1.5, %v2168
      %v2170 = vmul.f32 %v2165, %v2169
      %vm2171 = vweird.f32 %v2164
      %vm2172 = vweird.f32 %v2165
      %vm2173 = vmor %vm2171, %vm2172
      %v2174 = vsel %vm2173, %v2165, %v2170
      %v2175 = vsel %vm2163, %v2174, 0.0
      %v2176 = vmul.f32 %v2175, %v31
      %v2178 = vrot.slane %v2176, 1
      %v2180 = vadd.f32 %v2176, %v2178
      %v2182 = vrot.slane %v2180, 1
      %v2184 = vmul.f32 %v2156, %v2182
      %v2185 = vsub.f32 0.0, %v2184
      %vm2186 = vcmp.gt.f32.partialorder %v2180, 0.0
      %v2188 = vrot.slane %v2185, 7
      %v2190 = vrot.slane %v46, 7
      %v2192 = vsel %vm2186, %v2188, %v2190
      %v2193 = vld [vmem:[%s2 + $0x1f] sm:$0x1]
      %v2194 = vsub.f32 %v2192, %v2190
      %v2195 = vmul.f32 %v2193, %v2194
      %v2197 = vrot.slane %v2195, 1
      %v2199 = vadd.f32 %v46, %v2197
      %2200 = vst.msk [vmem:[#allocation2 + $0x18] sm:$0x80] %vm693, %v2199
      %v2201 = vmul.f32 %v2195, %v2195
      %v2202 = vadd.f32 %v2146, %v2201
      %v2203 = vsel %vm126, %v2202, 0.0
      %2204 = vadd.xlane.f32.xlu0 %v2203
      %v2205 = vpop.xlane.xlu0 %2204
      %v2206 = vrot.slane %v2205, 4
      %v2207 = vadd.f32 %v2205, %v2206
      %v2208 = vrot.slane %v2207, 2
      %v2209 = vadd.f32 %v2207, %v2208
      %v2210 = vrot.slane %v2209, 1
      %v2211 = vadd.f32 %v2209, %v2210
      %s2212 = vtos %v2211
      %2213 = sst [smem:[%s29]] %s2212
    $region32: #{tpu_custom_call.1} parent=25 // pred_fallthru
      _
  $region26: #{tpu_custom_call.1} parent=0 // loop_footer
    %s37 = sadd.s32 1, %s33
  $region27: #{tpu_custom_call.1} parent=0 // loop_footer_branch
    %32 = sbr.rel target = $region23
  $region28: #{tpu_custom_call.1} parent=0 // loop_exit
    _
  %v2214 = vld [vmem:[#allocation2] sm:$0xff]
  %v2215 = vld [vmem:[#allocation2 + $0x8] sm:$0xff]
  %v2216 = vld [vmem:[#allocation2 + $0x10] sm:$0xff]
  %v2217 = vld [vmem:[#allocation2 + $0x18] sm:$0xff]
  %v2218 = vperm.slane %v2214, 0
  %v2219 = vmul.f32 %v2214, %v2218
  %v2220 = vmul.f32 %v2215, %v2218
  %v2221 = vmul.f32 %v2216, %v2218
  %v2222 = vmul.f32 %v2217, %v2218
  %v2224 = vsel %vm24, %v2219, 0
  %v2227 = vsel %vm24, %v2220, 0
  %v2230 = vsel %vm24, %v2221, 0
  %v2233 = vsel %vm24, %v2222, 0
  %v2236 = vsel %vm24, %v31, 0
  %2238 = vmatpush.xpose.msra.mxu0 0.0
  %2239 = vmatpush.xpose.msra.mxu0 0.0
  %2240 = vmatpush.xpose.msra.mxu0 0.0
  %2241 = vmatpush.xpose.msra.mxu0 0.0
  %2242 = vmatpush.xpose.msra.mxu0 0.0
  %2243 = vmatpush.xpose.msra.mxu0 0.0
  %2244 = vmatpush.xpose.msra.mxu0 0.0
  %2245 = vmatpush.xpose.msra.mxu0 0.0
  %2246 = vmatpush.xpose.msra.mxu0 0.0
  %2247 = vmatpush.xpose.msra.mxu0 0.0
  %2248 = vmatpush.xpose.msra.mxu0 0.0
  %2249 = vmatpush.xpose.msra.mxu0 0.0
  %2250 = vmatpush.xpose.msra.mxu0 0.0
  %2251 = vmatpush.xpose.msra.mxu0 0.0
  %2252 = vmatpush.xpose.msra.mxu0 0.0
  %2253 = vmatpush.xpose.msra.mxu0 %v2236
  %2254 = vmatmul.f32.gmra.mxu0 %v2224
  %v2255 = vpop.f32.mrf.mxu0
  %v2256 = vadd.f32 0.0, %v2255
  %2257 = vmatmul.f32.gmra.mxu0 %v2227
  %v2258 = vpop.f32.mrf.mxu0
  %v2259 = vadd.f32 0.0, %v2258
  %2260 = vmatmul.f32.gmra.mxu0 %v2230
  %v2261 = vpop.f32.mrf.mxu0
  %v2262 = vadd.f32 0.0, %v2261
  %2263 = vmatmul.f32.gmra.mxu0 %v2233
  %v2264 = vpop.f32.mrf.mxu0
  %v2265 = vadd.f32 0.0, %v2264
  %2266 = vdwg.mxu0
  %v2267 = vsub.f32 0.0, %v2256
  %v2268 = vsub.f32 0.0, %v2259
  %v2269 = vsub.f32 0.0, %v2262
  %v2270 = vsub.f32 0.0, %v2265
  %vm2271 = vcmask 15360
  %2272 = vst.msk [vmem:[%s5] sm:$0xff] %vm2271, %v2267
  %2273 = vst.msk [vmem:[%s5 + $0x8] sm:$0xff] %vm2271, %v2268
  %2274 = vst.msk [vmem:[%s5 + $0x10] sm:$0xff] %vm2271, %v2269
  %2275 = vst.msk [vmem:[%s5 + $0x18] sm:$0xff] %vm2271, %v2270
  // Predicated region
  $region33: #{tpu_custom_call.1} parent=0 // pred_check
    _
  $region34: #{tpu_custom_call.1} parent=0 // pred_check_branch
    %2277 = sbr.rel (0) target = $region36
  $region35: #{tpu_custom_call.1} parent=0 // pred_region
    _
  $region36: #{tpu_custom_call.1} parent=0 // pred_fallthru
    _
  // Predicated region
  $region37: #{tpu_custom_call.1} parent=0 // pred_check
    _
  $region38: #{tpu_custom_call.1} parent=0 // pred_check_branch
    %2279 = sbr.rel (0) target = $region40
  $region39: #{tpu_custom_call.1} parent=0 // pred_region
    _
  $region40: #{tpu_custom_call.1} parent=0 // pred_fallthru
    _

</llo_original>
